<compile_context>
chip_gen: v5e
topology: v5e:2x2
jax: 0.10.0
libtpu: 0.0.40
codegen_flags: <defaults>
</compile_context>

<pallas_src>
import functools

import jax
import jax.numpy as jnp
from jax.experimental import pallas as pl
from jax.experimental.pallas import tpu as pltpu


# ----------------------------------------------------------------------------
# helpers
# ----------------------------------------------------------------------------
def _round_up(x, m):
    return ((x + m - 1) // m) * m


# ----------------------------------------------------------------------------
# Pallas kernels: fused matmul + bias (+ residual) + optional ReLU epilogue
# ----------------------------------------------------------------------------
def _mm_bias_act_kernel(a_ref, b_ref, bias_ref, o_ref, *, relu):
    y = jnp.dot(a_ref[...], b_ref[...], preferred_element_type=jnp.float32)
    y = y + bias_ref[...]
    if relu:
        y = jnp.maximum(y, 0.0)
    o_ref[...] = y.astype(o_ref.dtype)


def _mm_bias_res_act_kernel(a_ref, b_ref, bias_ref, r_ref, o_ref, *, relu):
    y = jnp.dot(a_ref[...], b_ref[...], preferred_element_type=jnp.float32)
    y = y + bias_ref[...] + r_ref[...].astype(jnp.float32)
    if relu:
        y = jnp.maximum(y, 0.0)
    o_ref[...] = y.astype(o_ref.dtype)


def dense(a2d, w_bf16, bias, residual=None, relu=True, out_dtype=jnp.bfloat16):
    """Fused (M,Kp)@(Kp,N) + bias (+residual) (+ReLU) -> (M,N) out_dtype.

    a2d:      bf16 (M, Kp) activation / im2col patch slab (K pre-padded).
    w_bf16:   bf16 (Kp, N) BN-folded, pre-padded weight matrix.
    bias:     f32  (1, N) folded-BN shift.
    residual: optional bf16 (M, N); upcast to f32 inside the kernel.
    """
    M, Kp = a2d.shape
    Kp2, N = w_bf16.shape
    assert Kp == Kp2

    # Tiny GEMMs (layer2+ at 32x32 input, fc head): plain XLA beats padded
    # Pallas tiles here (per review: keep the bypass for late layers / fc).
    if M < 64 or N < 64:
        y = jnp.dot(a2d.astype(jnp.bfloat16), w_bf16,
                    preferred_element_type=jnp.float32) + bias
        if residual is not None:
            y = y + residual.astype(jnp.float32)
        if relu:
            y = jnp.maximum(y, 0.0)
        return y.astype(out_dtype)

    a = a2d if a2d.dtype == jnp.bfloat16 else a2d.astype(jnp.bfloat16)

    # Pad M up to a multiple of 128 so row tiles always feed >=128 MXU rows
    # (no TM=8 collapse); the padded tail is sliced off afterwards.
    Mp = _round_up(M, 128)
    if Mp != M:
        a = jnp.pad(a, ((0, Mp - M), (0, 0)))
    TM = 256 if Mp % 256 == 0 else 128
    # Lane-dense 128-wide output tiles; N=64 layers keep full-extent TN=64
    # paired with large TM (fills the MXU M side).
    TN = 128 if N % 128 == 0 else N
    # Ensure >=2 grid steps: keeps both v7x TensorCores busy and gives the
    # software pipeline at least one step of DMA/compute overlap.
    if (Mp // TM) * (N // TN) < 2 and TM >= 128:
        TM //= 2

    mt, nt = Mp // TM, N // TN
    # Grid order: make the operand with the larger total re-fetch cost
    # stationary w.r.t. the inner axis (Pallas skips DMAs on repeated indices).
    a_bytes, b_bytes = Mp * Kp * 2, Kp * N * 2
    m_outer = (mt - 1) * b_bytes <= (nt - 1) * a_bytes
    if m_outer:
        grid = (mt, nt)
        amap = lambda i, j: (i, 0)
        bmap = lambda i, j: (0, j)
        omap = lambda i, j: (i, j)
    else:
        grid = (nt, mt)
        amap = lambda j, i: (i, 0)
        bmap = lambda j, i: (0, j)
        omap = lambda j, i: (i, j)

    in_specs = [
        pl.BlockSpec((TM, Kp), amap),   # patch tile, full (padded) K
        pl.BlockSpec((Kp, TN), bmap),   # weight tile, full (padded) K
        pl.BlockSpec((1, TN), bmap),    # per-channel folded-BN bias
    ]
    args = [a, w_bf16, bias]
    if residual is not None:
        r = (residual if residual.dtype == jnp.bfloat16
             else residual.astype(jnp.bfloat16))
        if Mp != M:
            r = jnp.pad(r, ((0, Mp - M), (0, 0)))
        in_specs.append(pl.BlockSpec((TM, TN), omap))
        args.append(r)
        kernel = functools.partial(_mm_bias_res_act_kernel, relu=relu)
    else:
        kernel = functools.partial(_mm_bias_act_kernel, relu=relu)

    out = pl.pallas_call(
        kernel,
        out_shape=jax.ShapeDtypeStruct((Mp, N), out_dtype),
        grid_spec=pltpu.PrefetchScalarGridSpec(
            num_scalar_prefetch=0,
            grid=grid,
            in_specs=in_specs,
            out_specs=pl.BlockSpec((TM, TN), omap),
        ),
        compiler_params=pltpu.CompilerParams(
            dimension_semantics=("parallel", "parallel"),
            vmem_limit_bytes=48 * 1024 * 1024),
    )(*args)
    return out[:M] if Mp != M else out


# ----------------------------------------------------------------------------
# Conv / pool glue (NHWC bf16, plain JAX); matmul + epilogue run in Pallas
# ----------------------------------------------------------------------------
def im2col_nhwc(x, kh, kw, stride, pad, k_padded):
    """bf16 NHWC -> (N*OH*OW, k_padded) patch slab (K zero-padded, bf16)."""
    n, h, w, c = x.shape
    oh = (h + 2 * pad - kh) // stride + 1
    ow = (w + 2 * pad - kw) // stride + 1
    xp = jnp.pad(x, ((0, 0), (pad, pad), (pad, pad), (0, 0)))
    cols = [xp[:, i:i + stride * oh:stride, j:j + stride * ow:stride, :]
            for i in range(kh) for j in range(kw)]
    k = kh * kw * c
    if k_padded > k:
        cols.append(jnp.zeros((n, oh, ow, k_padded - k), x.dtype))
    patches = jnp.concatenate(cols, axis=-1)          # (N, OH, OW, k_padded)
    return patches.reshape(n * oh * ow, k_padded), oh, ow


def conv_bn(x, p, stride, pad, relu=True, residual=None):
    """NHWC conv + folded-BN bias (+ residual) (+ ReLU) -> NHWC bf16."""
    n = x.shape[0]
    kp, oc = p['w'].shape
    patches, oh, ow = im2col_nhwc(x, p['kh'], p['kw'], stride, pad, kp)
    out2d = dense(patches, p['w'], p['b'], residual=residual, relu=relu)
    return out2d.reshape(n, oh, ow, oc)


def maxpool2d_nhwc(x, k=3, stride=2, pad=1):
    n, h, w, c = x.shape
    oh = (h + 2 * pad - k) // stride + 1
    ow = (w + 2 * pad - k) // stride + 1
    xp = jnp.pad(x, ((0, 0), (pad, pad), (pad, pad), (0, 0)),
                 constant_values=-jnp.inf)
    out = jnp.full((n, oh, ow, c), -jnp.inf, x.dtype)
    for i in range(k):
        for j in range(k):
            out = jnp.maximum(
                out, xp[:, i:i + stride * oh:stride,
                        j:j + stride * ow:stride, :])
    return out


# ----------------------------------------------------------------------------
# Deterministic parameters (resnet18 shapes), BN folded into weights at init
# ----------------------------------------------------------------------------
class ParamGen:
    def __init__(self, seed):
        self._key = jax.random.PRNGKey(seed)

    def normal(self, shape):
        self._key, sub = jax.random.split(self._key)
        return jax.random.normal(sub, shape, jnp.float32)

    def conv(self, shape):
        oc, ic, kh, kw = shape
        return self.normal(shape) / jnp.sqrt(float(ic * kh * kw))


def make_bn(pg, c, eps=1e-5):
    gamma = 1.0 + 0.05 * pg.normal((c,))
    beta = 0.05 * pg.normal((c,))
    mean = 0.05 * pg.normal((c,))
    var = 1.0 + 0.05 * jnp.abs(pg.normal((c,)))
    scale = gamma / jnp.sqrt(var + eps)          # inference-mode BN
    shift = beta - mean * scale
    return scale, shift


def make_conv_bn(pg, cin, cout, k):
    """Conv weight with BN scale folded in; pre-reshaped / K-padded / bf16."""
    w = pg.conv((cout, cin, k, k))
    scale, shift = make_bn(pg, cout)
    wf = w * scale[:, None, None, None]          # fold BN scale per out-channel
    kdim = cin * k * k
    kp = _round_up(kdim, 128)
    # row order (kh, kw, cin) matches im2col_nhwc column order
    wmat = wf.transpose(2, 3, 1, 0).reshape(kdim, cout)
    wmat = jnp.pad(wmat, ((0, kp - kdim), (0, 0))).astype(jnp.bfloat16)
    return {'w': wmat,
            'b': shift.reshape(1, cout).astype(jnp.float32),
            'kh': k, 'kw': k}


def make_block(pg, cin, cout, stride):
    p = {'stride': stride,
         'conv1': make_conv_bn(pg, cin, cout, 3),
         'conv2': make_conv_bn(pg, cout, cout, 3)}
    if stride != 1 or cin != cout:
        p['down'] = make_conv_bn(pg, cin, cout, 1)
    return p


def init_params(num_classes=3, seed=0):
    pg = ParamGen(seed)
    params = {'conv1': make_conv_bn(pg, 3, 64, 7)}
    cfgs = [('layer1', 64, 64, 1), ('layer2', 64, 128, 2),
            ('layer3', 128, 256, 2), ('layer4', 256, 512, 2)]
    for name, cin, cout, stride in cfgs:
        params[name] = [make_block(pg, cin, cout, stride),
                        make_block(pg, cout, cout, 1)]
    fc_w = pg.normal((512, num_classes)) / jnp.sqrt(512.0)
    fc_b = 0.01 * pg.normal((num_classes,))
    params['fc'] = {'w': fc_w.astype(jnp.bfloat16),
                    'b': fc_b.reshape(1, num_classes).astype(jnp.float32)}
    return params


# ----------------------------------------------------------------------------
# Forward pass (resnet18 with fc replaced by Linear(512, num_classes))
# ----------------------------------------------------------------------------
def basic_block(x, p):
    stride = p['stride']
    out = conv_bn(x, p['conv1'], stride, 1, relu=True)
    if 'down' in p:
        idt = conv_bn(x, p['down'], stride, 0, relu=False)
    else:
        idt = x
    oc = p['conv2']['w'].shape[1]
    res2d = idt.reshape(-1, oc)                  # NHWC flatten matches row order
    return conv_bn(out, p['conv2'], 1, 1, relu=True, residual=res2d)


def alzheimernet_forward(x_nchw, params):
    # single NCHW->NHWC transpose + f32->bf16 cast at entry; bf16 thereafter
    x = x_nchw.transpose(0, 2, 3, 1).astype(jnp.bfloat16)
    out = conv_bn(x, params['conv1'], 2, 3, relu=True)     # 7x7/2 + BN + ReLU
    out = maxpool2d_nhwc(out, 3, 2, 1)
    for layer in ('layer1', 'layer2', 'layer3', 'layer4'):
        for blk in params[layer]:
            out = basic_block(out, blk)
    feat = jnp.mean(out.astype(jnp.float32), axis=(1, 2))  # adaptive avgpool
    return dense(feat.astype(jnp.bfloat16), params['fc']['w'],
                 params['fc']['b'], relu=False, out_dtype=jnp.float32)


# ----------------------------------------------------------------------------
if __name__ == "__main__":
    key = jax.random.PRNGKey(0)
    x = jax.random.normal(key, (2, 3, 32, 32), jnp.float32)   # NCHW input

    params = init_params(num_classes=3, seed=0)
    fwd = jax.jit(lambda inp: alzheimernet_forward(inp, params))

    logits = fwd(x)
    jax.block_until_ready(logits)
    assert logits.shape == (2, 3)
    assert bool(jnp.all(jnp.isfinite(logits)))
    print("KERNEL_OK")
</pallas_src>

<mosaic_0001>
module attributes {stable_mosaic.version = 11 : i64} {
  func.func @_mm_bias_act_kernel(%arg0: i32, %arg1: i32, %arg2: memref<256x256xbf16, #tpu.memory_space<vmem>>, %arg3: memref<256x64xbf16, #tpu.memory_space<vmem>>, %arg4: memref<1x64xf32, #tpu.memory_space<vmem>>, %arg5: memref<256x64xbf16, #tpu.memory_space<vmem>>) attributes {dimension_semantics = [#tpu.dimension_semantics<parallel>, #tpu.dimension_semantics<parallel>], iteration_bounds = array<i64: 1, 2>, scalar_prefetch = 0 : i64, scratch_operands = 0 : i64, tpu.core_type = #tpu.core_type<tc>, window_params = [{transform_indices = @transform_0, window_bounds = array<i64: 256, 256>}, {transform_indices = @transform_1, window_bounds = array<i64: 256, 64>}, {transform_indices = @transform_2, window_bounds = array<i64: 1, 64>}, {transform_indices = @transform_3, window_bounds = array<i64: 256, 64>}]} {
    %c0 = arith.constant 0 : index
    %c0_0 = arith.constant 0 : index
    %0 = vector.load %arg2[%c0, %c0_0] : memref<256x256xbf16, #tpu.memory_space<vmem>>, vector<256x256xbf16>
    %c0_1 = arith.constant 0 : index
    %c0_2 = arith.constant 0 : index
    %1 = vector.load %arg3[%c0_1, %c0_2] : memref<256x64xbf16, #tpu.memory_space<vmem>>, vector<256x64xbf16>
    %cst = arith.constant dense<0.000000e+00> : vector<256x64xf32>
    %2 = tpu.matmul %0, %1, %cst {dimension_numbers = #tpu.dot_dimension_numbers<[1], [0], [0], [1], [0, 0, 1, 1], [], []>} : vector<256x256xbf16>, vector<256x64xbf16>, vector<256x64xf32> -> vector<256x64xf32>
    %c0_3 = arith.constant 0 : index
    %c0_4 = arith.constant 0 : index
    %3 = vector.load %arg4[%c0_3, %c0_4] : memref<1x64xf32, #tpu.memory_space<vmem>>, vector<1x64xf32>
    %4 = vector.broadcast %3 : vector<1x64xf32> to vector<256x64xf32>
    %5 = arith.addf %2, %4 : vector<256x64xf32>
    %cst_5 = arith.constant 0.000000e+00 : f32
    %6 = vector.broadcast %cst_5 : f32 to vector<256x64xf32>
    %7 = arith.maximumf %5, %6 : vector<256x64xf32>
    %8 = arith.truncf %7 : vector<256x64xf32> to vector<256x64xbf16>
    %c0_6 = arith.constant 0 : index
    %c0_7 = arith.constant 0 : index
    %9 = vector.load %arg5[%c0_6, %c0_7] : memref<256x64xbf16, #tpu.memory_space<vmem>>, vector<256x64xbf16>
    tpu.vector_store %arg5[%c0_6, %c0_7], %8 {strides = array<i32>} : memref<256x64xbf16, #tpu.memory_space<vmem>>, vector<256x64xbf16>,
    return
  }
  func.func @transform_0(%arg0: i32, %arg1: i32) -> (i32, i32) {
    %c0_i32 = arith.constant 0 : i32
    %c0_i32_0 = arith.constant 0 : i32
    return %arg1, %c0_i32 : i32, i32
  }
  func.func @transform_1(%arg0: i32, %arg1: i32) -> (i32, i32) {
    %c0_i32 = arith.constant 0 : i32
    %c0_i32_0 = arith.constant 0 : i32
    return %c0_i32, %arg0 : i32, i32
  }
  func.func @transform_2(%arg0: i32, %arg1: i32) -> (i32, i32) {
    %c0_i32 = arith.constant 0 : i32
    %c0_i32_0 = arith.constant 0 : i32
    return %c0_i32, %arg0 : i32, i32
  }
  func.func @transform_3(%arg0: i32, %arg1: i32) -> (i32, i32) {
    %c0_i32 = arith.constant 0 : i32
    return %arg1, %arg0 : i32, i32
  }
}

module attributes {stable_mosaic.version = 11 : i64} {
  func.func @_mm_bias_act_kernel(%arg0: i32, %arg1: i32, %arg2: memref<64x640xbf16, #tpu.memory_space<vmem>>, %arg3: memref<640x64xbf16, #tpu.memory_space<vmem>>, %arg4: memref<1x64xf32, #tpu.memory_space<vmem>>, %arg5: memref<64x64xbf16, #tpu.memory_space<vmem>>) attributes {dimension_semantics = [#tpu.dimension_semantics<parallel>, #tpu.dimension_semantics<parallel>], iteration_bounds = array<i64: 1, 2>, scalar_prefetch = 0 : i64, scratch_operands = 0 : i64, tpu.core_type = #tpu.core_type<tc>, window_params = [{transform_indices = @transform_0, window_bounds = array<i64: 64, 640>}, {transform_indices = @transform_1, window_bounds = array<i64: 640, 64>}, {transform_indices = @transform_2, window_bounds = array<i64: 1, 64>}, {transform_indices = @transform_3, window_bounds = array<i64: 64, 64>}]} {
    %c0 = arith.constant 0 : index
    %c0_0 = arith.constant 0 : index
    %0 = vector.load %arg2[%c0, %c0_0] : memref<64x640xbf16, #tpu.memory_space<vmem>>, vector<64x640xbf16>
    %c0_1 = arith.constant 0 : index
    %c0_2 = arith.constant 0 : index
    %1 = vector.load %arg3[%c0_1, %c0_2] : memref<640x64xbf16, #tpu.memory_space<vmem>>, vector<640x64xbf16>
    %cst = arith.constant dense<0.000000e+00> : vector<64x64xf32>
    %2 = tpu.matmul %0, %1, %cst {dimension_numbers = #tpu.dot_dimension_numbers<[1], [0], [0], [1], [0, 0, 1, 1], [], []>} : vector<64x640xbf16>, vector<640x64xbf16>, vector<64x64xf32> -> vector<64x64xf32>
    %c0_3 = arith.constant 0 : index
    %c0_4 = arith.constant 0 : index
    %3 = vector.load %arg4[%c0_3, %c0_4] : memref<1x64xf32, #tpu.memory_space<vmem>>, vector<1x64xf32>
    %4 = vector.broadcast %3 : vector<1x64xf32> to vector<64x64xf32>
    %5 = arith.addf %2, %4 : vector<64x64xf32>
    %cst_5 = arith.constant 0.000000e+00 : f32
    %6 = vector.broadcast %cst_5 : f32 to vector<64x64xf32>
    %7 = arith.maximumf %5, %6 : vector<64x64xf32>
    %8 = arith.truncf %7 : vector<64x64xf32> to vector<64x64xbf16>
    %c0_6 = arith.constant 0 : index
    %c0_7 = arith.constant 0 : index
    %9 = vector.load %arg5[%c0_6, %c0_7] : memref<64x64xbf16, #tpu.memory_space<vmem>>, vector<64x64xbf16>
    tpu.vector_store %arg5[%c0_6, %c0_7], %8 {strides = array<i32>} : memref<64x64xbf16, #tpu.memory_space<vmem>>, vector<64x64xbf16>,
    return
  }
  func.func @transform_0(%arg0: i32, %arg1: i32) -> (i32, i32) {
    %c0_i32 = arith.constant 0 : i32
    %c0_i32_0 = arith.constant 0 : i32
    return %arg1, %c0_i32 : i32, i32
  }
  func.func @transform_1(%arg0: i32, %arg1: i32) -> (i32, i32) {
    %c0_i32 = arith.constant 0 : i32
    %c0_i32_0 = arith.constant 0 : i32
    return %c0_i32, %arg0 : i32, i32
  }
  func.func @transform_2(%arg0: i32, %arg1: i32) -> (i32, i32) {
    %c0_i32 = arith.constant 0 : i32
    %c0_i32_0 = arith.constant 0 : i32
    return %c0_i32, %arg0 : i32, i32
  }
  func.func @transform_3(%arg0: i32, %arg1: i32) -> (i32, i32) {
    %c0_i32 = arith.constant 0 : i32
    return %arg1, %arg0 : i32, i32
  }
}

module attributes {stable_mosaic.version = 11 : i64} {
  func.func @_mm_bias_res_act_kernel(%arg0: i32, %arg1: i32, %arg2: memref<64x640xbf16, #tpu.memory_space<vmem>>, %arg3: memref<640x64xbf16, #tpu.memory_space<vmem>>, %arg4: memref<1x64xf32, #tpu.memory_space<vmem>>, %arg5: memref<64x64xbf16, #tpu.memory_space<vmem>>, %arg6: memref<64x64xbf16, #tpu.memory_space<vmem>>) attributes {dimension_semantics = [#tpu.dimension_semantics<parallel>, #tpu.dimension_semantics<parallel>], iteration_bounds = array<i64: 1, 2>, scalar_prefetch = 0 : i64, scratch_operands = 0 : i64, tpu.core_type = #tpu.core_type<tc>, window_params = [{transform_indices = @transform_0, window_bounds = array<i64: 64, 640>}, {transform_indices = @transform_1, window_bounds = array<i64: 640, 64>}, {transform_indices = @transform_2, window_bounds = array<i64: 1, 64>}, {transform_indices = @transform_3, window_bounds = array<i64: 64, 64>}, {transform_indices = @transform_4, window_bounds = array<i64: 64, 64>}]} {
    %c0 = arith.constant 0 : index
    %c0_0 = arith.constant 0 : index
    %0 = vector.load %arg2[%c0, %c0_0] : memref<64x640xbf16, #tpu.memory_space<vmem>>, vector<64x640xbf16>
    %c0_1 = arith.constant 0 : index
    %c0_2 = arith.constant 0 : index
    %1 = vector.load %arg3[%c0_1, %c0_2] : memref<640x64xbf16, #tpu.memory_space<vmem>>, vector<640x64xbf16>
    %cst = arith.constant dense<0.000000e+00> : vector<64x64xf32>
    %2 = tpu.matmul %0, %1, %cst {dimension_numbers = #tpu.dot_dimension_numbers<[1], [0], [0], [1], [0, 0, 1, 1], [], []>} : vector<64x640xbf16>, vector<640x64xbf16>, vector<64x64xf32> -> vector<64x64xf32>
    %c0_3 = arith.constant 0 : index
    %c0_4 = arith.constant 0 : index
    %3 = vector.load %arg4[%c0_3, %c0_4] : memref<1x64xf32, #tpu.memory_space<vmem>>, vector<1x64xf32>
    %4 = vector.broadcast %3 : vector<1x64xf32> to vector<64x64xf32>
    %5 = arith.addf %2, %4 : vector<64x64xf32>
    %c0_5 = arith.constant 0 : index
    %c0_6 = arith.constant 0 : index
    %6 = vector.load %arg5[%c0_5, %c0_6] : memref<64x64xbf16, #tpu.memory_space<vmem>>, vector<64x64xbf16>
    %7 = arith.extf %6 : vector<64x64xbf16> to vector<64x64xf32>
    %8 = arith.addf %5, %7 : vector<64x64xf32>
    %cst_7 = arith.constant 0.000000e+00 : f32
    %9 = vector.broadcast %cst_7 : f32 to vector<64x64xf32>
    %10 = arith.maximumf %8, %9 : vector<64x64xf32>
    %11 = arith.truncf %10 : vector<64x64xf32> to vector<64x64xbf16>
    %c0_8 = arith.constant 0 : index
    %c0_9 = arith.constant 0 : index
    %12 = vector.load %arg6[%c0_8, %c0_9] : memref<64x64xbf16, #tpu.memory_space<vmem>>, vector<64x64xbf16>
    tpu.vector_store %arg6[%c0_8, %c0_9], %11 {strides = array<i32>} : memref<64x64xbf16, #tpu.memory_space<vmem>>, vector<64x64xbf16>,
    return
  }
  func.func @transform_0(%arg0: i32, %arg1: i32) -> (i32, i32) {
    %c0_i32 = arith.constant 0 : i32
    %c0_i32_0 = arith.constant 0 : i32
    return %arg1, %c0_i32 : i32, i32
  }
  func.func @transform_1(%arg0: i32, %arg1: i32) -> (i32, i32) {
    %c0_i32 = arith.constant 0 : i32
    %c0_i32_0 = arith.constant 0 : i32
    return %c0_i32, %arg0 : i32, i32
  }
  func.func @transform_2(%arg0: i32, %arg1: i32) -> (i32, i32) {
    %c0_i32 = arith.constant 0 : i32
    %c0_i32_0 = arith.constant 0 : i32
    return %c0_i32, %arg0 : i32, i32
  }
  func.func @transform_3(%arg0: i32, %arg1: i32) -> (i32, i32) {
    %c0_i32 = arith.constant 0 : i32
    return %arg1, %arg0 : i32, i32
  }
  func.func @transform_4(%arg0: i32, %arg1: i32) -> (i32, i32) {
    %c0_i32 = arith.constant 0 : i32
    return %arg1, %arg0 : i32, i32
  }
}

module attributes {stable_mosaic.version = 11 : i64} {
  func.func @_mm_bias_act_kernel(%arg0: i32, %arg1: i32, %arg2: memref<64x640xbf16, #tpu.memory_space<vmem>>, %arg3: memref<640x64xbf16, #tpu.memory_space<vmem>>, %arg4: memref<1x64xf32, #tpu.memory_space<vmem>>, %arg5: memref<64x64xbf16, #tpu.memory_space<vmem>>) attributes {dimension_semantics = [#tpu.dimension_semantics<parallel>, #tpu.dimension_semantics<parallel>], iteration_bounds = array<i64: 1, 2>, scalar_prefetch = 0 : i64, scratch_operands = 0 : i64, tpu.core_type = #tpu.core_type<tc>, window_params = [{transform_indices = @transform_0, window_bounds = array<i64: 64, 640>}, {transform_indices = @transform_1, window_bounds = array<i64: 640, 64>}, {transform_indices = @transform_2, window_bounds = array<i64: 1, 64>}, {transform_indices = @transform_3, window_bounds = array<i64: 64, 64>}]} {
    %c0 = arith.constant 0 : index
    %c0_0 = arith.constant 0 : index
    %0 = vector.load %arg2[%c0, %c0_0] : memref<64x640xbf16, #tpu.memory_space<vmem>>, vector<64x640xbf16>
    %c0_1 = arith.constant 0 : index
    %c0_2 = arith.constant 0 : index
    %1 = vector.load %arg3[%c0_1, %c0_2] : memref<640x64xbf16, #tpu.memory_space<vmem>>, vector<640x64xbf16>
    %cst = arith.constant dense<0.000000e+00> : vector<64x64xf32>
    %2 = tpu.matmul %0, %1, %cst {dimension_numbers = #tpu.dot_dimension_numbers<[1], [0], [0], [1], [0, 0, 1, 1], [], []>} : vector<64x640xbf16>, vector<640x64xbf16>, vector<64x64xf32> -> vector<64x64xf32>
    %c0_3 = arith.constant 0 : index
    %c0_4 = arith.constant 0 : index
    %3 = vector.load %arg4[%c0_3, %c0_4] : memref<1x64xf32, #tpu.memory_space<vmem>>, vector<1x64xf32>
    %4 = vector.broadcast %3 : vector<1x64xf32> to vector<64x64xf32>
    %5 = arith.addf %2, %4 : vector<64x64xf32>
    %cst_5 = arith.constant 0.000000e+00 : f32
    %6 = vector.broadcast %cst_5 : f32 to vector<64x64xf32>
    %7 = arith.maximumf %5, %6 : vector<64x64xf32>
    %8 = arith.truncf %7 : vector<64x64xf32> to vector<64x64xbf16>
    %c0_6 = arith.constant 0 : index
    %c0_7 = arith.constant 0 : index
    %9 = vector.load %arg5[%c0_6, %c0_7] : memref<64x64xbf16, #tpu.memory_space<vmem>>, vector<64x64xbf16>
    tpu.vector_store %arg5[%c0_6, %c0_7], %8 {strides = array<i32>} : memref<64x64xbf16, #tpu.memory_space<vmem>>, vector<64x64xbf16>,
    return
  }
  func.func @transform_0(%arg0: i32, %arg1: i32) -> (i32, i32) {
    %c0_i32 = arith.constant 0 : i32
    %c0_i32_0 = arith.constant 0 : i32
    return %arg1, %c0_i32 : i32, i32
  }
  func.func @transform_1(%arg0: i32, %arg1: i32) -> (i32, i32) {
    %c0_i32 = arith.constant 0 : i32
    %c0_i32_0 = arith.constant 0 : i32
    return %c0_i32, %arg0 : i32, i32
  }
  func.func @transform_2(%arg0: i32, %arg1: i32) -> (i32, i32) {
    %c0_i32 = arith.constant 0 : i32
    %c0_i32_0 = arith.constant 0 : i32
    return %c0_i32, %arg0 : i32, i32
  }
  func.func @transform_3(%arg0: i32, %arg1: i32) -> (i32, i32) {
    %c0_i32 = arith.constant 0 : i32
    return %arg1, %arg0 : i32, i32
  }
}

module attributes {stable_mosaic.version = 11 : i64} {
  func.func @_mm_bias_res_act_kernel(%arg0: i32, %arg1: i32, %arg2: memref<64x640xbf16, #tpu.memory_space<vmem>>, %arg3: memref<640x64xbf16, #tpu.memory_space<vmem>>, %arg4: memref<1x64xf32, #tpu.memory_space<vmem>>, %arg5: memref<64x64xbf16, #tpu.memory_space<vmem>>, %arg6: memref<64x64xbf16, #tpu.memory_space<vmem>>) attributes {dimension_semantics = [#tpu.dimension_semantics<parallel>, #tpu.dimension_semantics<parallel>], iteration_bounds = array<i64: 1, 2>, scalar_prefetch = 0 : i64, scratch_operands = 0 : i64, tpu.core_type = #tpu.core_type<tc>, window_params = [{transform_indices = @transform_0, window_bounds = array<i64: 64, 640>}, {transform_indices = @transform_1, window_bounds = array<i64: 640, 64>}, {transform_indices = @transform_2, window_bounds = array<i64: 1, 64>}, {transform_indices = @transform_3, window_bounds = array<i64: 64, 64>}, {transform_indices = @transform_4, window_bounds = array<i64: 64, 64>}]} {
    %c0 = arith.constant 0 : index
    %c0_0 = arith.constant 0 : index
    %0 = vector.load %arg2[%c0, %c0_0] : memref<64x640xbf16, #tpu.memory_space<vmem>>, vector<64x640xbf16>
    %c0_1 = arith.constant 0 : index
    %c0_2 = arith.constant 0 : index
    %1 = vector.load %arg3[%c0_1, %c0_2] : memref<640x64xbf16, #tpu.memory_space<vmem>>, vector<640x64xbf16>
    %cst = arith.constant dense<0.000000e+00> : vector<64x64xf32>
    %2 = tpu.matmul %0, %1, %cst {dimension_numbers = #tpu.dot_dimension_numbers<[1], [0], [0], [1], [0, 0, 1, 1], [], []>} : vector<64x640xbf16>, vector<640x64xbf16>, vector<64x64xf32> -> vector<64x64xf32>
    %c0_3 = arith.constant 0 : index
    %c0_4 = arith.constant 0 : index
    %3 = vector.load %arg4[%c0_3, %c0_4] : memref<1x64xf32, #tpu.memory_space<vmem>>, vector<1x64xf32>
    %4 = vector.broadcast %3 : vector<1x64xf32> to vector<64x64xf32>
    %5 = arith.addf %2, %4 : vector<64x64xf32>
    %c0_5 = arith.constant 0 : index
    %c0_6 = arith.constant 0 : index
    %6 = vector.load %arg5[%c0_5, %c0_6] : memref<64x64xbf16, #tpu.memory_space<vmem>>, vector<64x64xbf16>
    %7 = arith.extf %6 : vector<64x64xbf16> to vector<64x64xf32>
    %8 = arith.addf %5, %7 : vector<64x64xf32>
    %cst_7 = arith.constant 0.000000e+00 : f32
    %9 = vector.broadcast %cst_7 : f32 to vector<64x64xf32>
    %10 = arith.maximumf %8, %9 : vector<64x64xf32>
    %11 = arith.truncf %10 : vector<64x64xf32> to vector<64x64xbf16>
    %c0_8 = arith.constant 0 : index
    %c0_9 = arith.constant 0 : index
    %12 = vector.load %arg6[%c0_8, %c0_9] : memref<64x64xbf16, #tpu.memory_space<vmem>>, vector<64x64xbf16>
    tpu.vector_store %arg6[%c0_8, %c0_9], %11 {strides = array<i32>} : memref<64x64xbf16, #tpu.memory_space<vmem>>, vector<64x64xbf16>,
    return
  }
  func.func @transform_0(%arg0: i32, %arg1: i32) -> (i32, i32) {
    %c0_i32 = arith.constant 0 : i32
    %c0_i32_0 = arith.constant 0 : i32
    return %arg1, %c0_i32 : i32, i32
  }
  func.func @transform_1(%arg0: i32, %arg1: i32) -> (i32, i32) {
    %c0_i32 = arith.constant 0 : i32
    %c0_i32_0 = arith.constant 0 : i32
    return %c0_i32, %arg0 : i32, i32
  }
  func.func @transform_2(%arg0: i32, %arg1: i32) -> (i32, i32) {
    %c0_i32 = arith.constant 0 : i32
    %c0_i32_0 = arith.constant 0 : i32
    return %c0_i32, %arg0 : i32, i32
  }
  func.func @transform_3(%arg0: i32, %arg1: i32) -> (i32, i32) {
    %c0_i32 = arith.constant 0 : i32
    return %arg1, %arg0 : i32, i32
  }
  func.func @transform_4(%arg0: i32, %arg1: i32) -> (i32, i32) {
    %c0_i32 = arith.constant 0 : i32
    return %arg1, %arg0 : i32, i32
  }
}

</mosaic_0001>

<llo_original>
// kernel: _lambda_.5
$region0: #{_lambda_.5}
  #allocation0 [shape = 'u32[]', space=smem, size = 0x4, offset = 0x4, fixed_abs, tag = 'smem constant byte address 0x4 - core index']
  #allocation1 [shape = 'u32[72,128]{1,0:T(1,128)}', space=vmem, size = 0x9000, scoped, tag = 'internal scratch']
  %s0 = inlined_call_operand.vmem [shape: bf16[512,256], index: 0, kind: input, shape index: {}]
  %s1 = inlined_call_operand.vmem [shape: bf16[256,64], index: 1, kind: input, shape index: {}]
  %s2 = inlined_call_operand.vmem [shape: f32[1,64], index: 2, kind: input, shape index: {}]
  %s3 = inlined_call_operand.vmem [shape: bf16[512,64], index: 3, kind: output, shape index: {}]
  %s4 = sld [smem:[#allocation0]]
  $region45: #{_lambda_.5} parent=0
    _
  %s6 = ssub.s32 1, %s4
  %s7 = scalar_select 0, %s6, %s4
  loop: start=0, step=1, limit=4
  $region2: #{_lambda_.5} parent=0 // loop_pre_header
    _
  $region3: #{_lambda_.5} parent=0 // loop_header
    %s9 = sphi 0, %s13
    %p10 = scmp.ge.s32.totalorder %s9, 4
    %s16 = sphi 0, %s28
    %s17 = sphi 0, %s24
    %s18 = sphi 0, %s16
    %s19 = sphi 0, %s17
    %s20 = sphi 0, %s18
    %s21 = sphi 0, %s19
    %s31 = sphi 0, %s33
    %s34 = sphi 0, %s31
    %s35 = sphi 0, %s34
    %s51 = sphi 0, %s35
    %s57 = sphi 0, %s59
    %s60 = sphi 0, %s57
    %s61 = sphi 0, %s60
    %s77 = sphi 0, %s61
    %s83 = sphi 0, %s85
    %s86 = sphi 0, %s83
    %s87 = sphi 0, %s86
    %s103 = sphi 0, %s87
    %s111 = sphi 0, %s113
    %s114 = sphi 0, %s111
    %s115 = sphi 0, %s114
    %s131 = sphi 0, %s115
  $region4: #{_lambda_.5} parent=0 // loop_header_branch
    %12 = sbr.rel (%p10) target = $region8
  $region5: #{_lambda_.5} parent=0 // loop_body
    %s14 = ssub.s32 %s9, 1
    %s15 = ssub.s32 %s9, 2
    %s22 = sadd.s32 1, %s17
    %p23 = scmp.ge.s32.totalorder %s22, 2
    %s24 = scalar_select %p23, 0, %s22
    %s25 = sadd.s32 1, %s16
    %s26 = scalar_select %p23, %s25, %s16
    %p27 = scmp.ge.s32.totalorder %s26, 1
    %s28 = scalar_select %p27, 0, %s26
    %s29 = ssub.s32 %s17, %s24
    %p30 = scmp.eq.s32.totalorder %s29, 0
    %s32 = sadd.s32 %s31, 1
    %s33 = scalar_select %p30, %s31, %s32
    %p36 = pneg %p30
    %p37 = scmp.eq.s32.totalorder %s9, 1
    %p38 = por %p36, %p37
    %p39 = scmp.ne.s32.totalorder %s31, %s34
    %p40 = scmp.eq.s32.totalorder %s9, 0
    %p41 = por %p39, %p40
    %p42 = scmp.ne.s32.totalorder %s31, %s34
    %p43 = scmp.eq.s32.totalorder %s14, 1
    %p44 = por %p42, %p43
    %p45 = scmp.ne.s32.totalorder %s34, %s35
    %p46 = scmp.eq.s32.totalorder %s14, 0
    %p47 = por %p45, %p46
    %p48 = scmp.ne.s32.totalorder %s34, %s35
    %p49 = scmp.eq.s32.totalorder %s15, 1
    %p50 = por %p48, %p49
    %p52 = scmp.ne.s32.totalorder %s35, %s51
    %p53 = scmp.eq.s32.totalorder %s15, 0
    %p54 = por %p52, %p53
    %s55 = ssub.s32 %s16, %s28
    %p56 = scmp.eq.s32.totalorder %s55, 0
    %s58 = sadd.s32 %s57, 1
    %s59 = scalar_select %p56, %s57, %s58
    %p62 = pneg %p56
    %p63 = scmp.eq.s32.totalorder %s9, 1
    %p64 = por %p62, %p63
    %p65 = scmp.ne.s32.totalorder %s57, %s60
    %p66 = scmp.eq.s32.totalorder %s9, 0
    %p67 = por %p65, %p66
    %p68 = scmp.ne.s32.totalorder %s57, %s60
    %p69 = scmp.eq.s32.totalorder %s14, 1
    %p70 = por %p68, %p69
    %p71 = scmp.ne.s32.totalorder %s60, %s61
    %p72 = scmp.eq.s32.totalorder %s14, 0
    %p73 = por %p71, %p72
    %p74 = scmp.ne.s32.totalorder %s60, %s61
    %p75 = scmp.eq.s32.totalorder %s15, 1
    %p76 = por %p74, %p75
    %p78 = scmp.ne.s32.totalorder %s61, %s77
    %p79 = scmp.eq.s32.totalorder %s15, 0
    %p80 = por %p78, %p79
    %s81 = ssub.s32 %s16, %s28
    %p82 = scmp.eq.s32.totalorder %s81, 0
    %s84 = sadd.s32 %s83, 1
    %s85 = scalar_select %p82, %s83, %s84
    %p88 = pneg %p82
    %p89 = scmp.eq.s32.totalorder %s9, 1
    %p90 = por %p88, %p89
    %p91 = scmp.ne.s32.totalorder %s83, %s86
    %p92 = scmp.eq.s32.totalorder %s9, 0
    %p93 = por %p91, %p92
    %p94 = scmp.ne.s32.totalorder %s83, %s86
    %p95 = scmp.eq.s32.totalorder %s14, 1
    %p96 = por %p94, %p95
    %p97 = scmp.ne.s32.totalorder %s86, %s87
    %p98 = scmp.eq.s32.totalorder %s14, 0
    %p99 = por %p97, %p98
    %p100 = scmp.ne.s32.totalorder %s86, %s87
    %p101 = scmp.eq.s32.totalorder %s15, 1
    %p102 = por %p100, %p101
    %p104 = scmp.ne.s32.totalorder %s87, %s103
    %p105 = scmp.eq.s32.totalorder %s15, 0
    %p106 = por %p104, %p105
    %s107 = ssub.s32 %s17, %s24
    %s108 = ssub.s32 %s16, %s28
    %s109 = sor.u32 %s107, %s108
    %p110 = scmp.eq.s32.totalorder %s109, 0
    %s112 = sadd.s32 %s111, 1
    %s113 = scalar_select %p110, %s111, %s112
    %p116 = pneg %p110
    %p117 = scmp.eq.s32.totalorder %s9, 1
    %p118 = por %p116, %p117
    %p119 = scmp.ne.s32.totalorder %s111, %s114
    %p120 = scmp.eq.s32.totalorder %s9, 0
    %p121 = por %p119, %p120
    %p122 = scmp.ne.s32.totalorder %s111, %s114
    %p123 = scmp.eq.s32.totalorder %s14, 1
    %p124 = por %p122, %p123
    %p125 = scmp.ne.s32.totalorder %s114, %s115
    %p126 = scmp.eq.s32.totalorder %s14, 0
    %p127 = por %p125, %p126
    %p128 = scmp.ne.s32.totalorder %s114, %s115
    %p129 = scmp.eq.s32.totalorder %s15, 1
    %p130 = por %p128, %p129
    %p132 = scmp.ne.s32.totalorder %s115, %s131
    %p133 = scmp.eq.s32.totalorder %s15, 0
    %p134 = por %p132, %p133
    %p135 = scmp.le.s32.totalorder 1, %s9
    %p136 = scmp.lt.s32.totalorder %s9, 3
    %p137 = pnand %p135, %p136
    %p138 = pneg %p137
    // Predicated region
    $region9: #{_lambda_.5} parent=5 // pred_check
      _
    $region10: #{_lambda_.5} parent=5 // pred_check_branch
      %140 = sbr.rel (%p137) target = $region12
    $region11: #{_lambda_.5} parent=5 // pred_region
      %s141 = ssub.s32 %s9, 1
      // Predicated region
      $region13: #{_lambda_.5} parent=11 // pred_check
        %p142 = pneg %p73
      $region14: #{_lambda_.5} parent=11 // pred_check_branch
        %144 = sbr.rel (%p142) target = $region16
      $region15: #{_lambda_.5} parent=11 // pred_region
        %p145 = scmp.lt.s32.totalorder %s18, 0
        %s146 = scalar_select %p145, %s18, 0
        %s147 = smul.addr %s146, 4
        %s148 = scalar_lea.vmem %s1, %s147
      $region16: #{_lambda_.5} parent=11 // pred_fallthru
        _
      // Predicated region
      $region17: #{_lambda_.5} parent=11 // pred_check
        %p149 = pneg %p99
      $region18: #{_lambda_.5} parent=11 // pred_check_branch
        %151 = sbr.rel (%p149) target = $region20
      $region19: #{_lambda_.5} parent=11 // pred_region
        %p152 = scmp.lt.s32.totalorder %s18, 0
        %s153 = scalar_select %p152, %s18, 0
        %s154 = scalar_lea.vmem %s2, %s153
      $region20: #{_lambda_.5} parent=11 // pred_fallthru
        _
    $region12: #{_lambda_.5} parent=5 // pred_fallthru
      _
    %p155 = scmp.lt.s32.totalorder %s9, 2
    // Predicated region
    $region21: #{_lambda_.5} parent=5 // pred_check
      %p156 = pneg %p155
    $region22: #{_lambda_.5} parent=5 // pred_check_branch
      %158 = sbr.rel (%p156) target = $region24
    $region23: #{_lambda_.5} parent=5 // pred_region
      // Predicated region
      $region25: #{_lambda_.5} parent=23 // pred_check
        %p159 = pneg %p41
      $region26: #{_lambda_.5} parent=23 // pred_check_branch
        %161 = sbr.rel (%p159) target = $region28
      $region27: #{_lambda_.5} parent=23 // pred_region
        %s162 = smul.u32 32, %s17
        %p163 = scmp.lt.s32.totalorder %s162, 63
        %s164 = scalar_select %p163, %s162, 63
        %s165 = smul.addr %s164, 2
        %s166 = smul.addr %s165, 4
        %s167 = scalar_lea.vmem %s0, %s166
        %s168 = smul.u32 32, %s17
      $region28: #{_lambda_.5} parent=23 // pred_fallthru
        _
    $region24: #{_lambda_.5} parent=5 // pred_fallthru
      _
    %p169 = scmp.le.s32.totalorder 1, %s9
    %p170 = scmp.lt.s32.totalorder %s9, 3
    %p171 = pnand %p169, %p170
    %p172 = pneg %p171
    // Predicated region
    $region29: #{_lambda_.5} parent=5 // pred_check
      _
    $region30: #{_lambda_.5} parent=5 // pred_check_branch
      %174 = sbr.rel (%p171) target = $region32
    $region31: #{_lambda_.5} parent=5 // pred_region
      %s175 = ssub.s32 %s9, 1
      %s176 = smul.u32 32, %s19
      %p177 = scmp.lt.s32.totalorder %s176, 63
      %s178 = scalar_select %p177, %s176, 63
      %s179 = smul.addr %s178, 2
      %s180 = smul.addr %s179, 4
      %s181 = scalar_lea.vmem %s0, %s180
      %p182 = pneg %p47
      %p183 = pneg %p44
      %p184 = scmp.lt.s32.totalorder %s18, 0
      %s185 = scalar_select %p184, %s18, 0
      %s186 = smul.addr %s185, 4
      %s187 = scalar_lea.vmem %s1, %s186
      %p188 = pneg %p73
      %p189 = pneg %p70
      %p190 = scmp.lt.s32.totalorder %s18, 0
      %s191 = scalar_select %p190, %s18, 0
      %s192 = scalar_lea.vmem %s2, %s191
      %p193 = pneg %p99
      %p194 = pneg %p96
      %p195 = pneg %p127
      %p196 = pneg %p124
      %s197 = smul.u32 32, %s19
      %p198 = scmp.lt.s32.totalorder %s197, 63
      %s199 = scalar_select %p198, %s197, 63
      %p200 = scmp.lt.s32.totalorder %s18, 0
      %s201 = scalar_select %p200, %s18, 0
      %s202 = sadd.s32 %s201, %s199
      %s203 = smul.addr %s202, 4
      %s204 = scalar_lea.vmem %s3, %s203
      %s205 = smul.u32 32, %s19
      %p206 = scmp.lt.s32.totalorder %s205, 63
      %s207 = scalar_select %p206, %s205, 63
      %s208 = smul.addr %s207, 2
      %s209 = smul.addr %s208, 4
      %s210 = scalar_lea.vmem %s0, %s209
      %s211 = smul.u32 32, %s19
      %p212 = scmp.lt.s32.totalorder %s18, 0
      %s213 = scalar_select %p212, %s18, 0
      %s214 = smul.addr %s213, 4
      %s215 = scalar_lea.vmem %s1, %s214
      %p216 = scmp.lt.s32.totalorder %s18, 0
      %s217 = scalar_select %p216, %s18, 0
      %s218 = scalar_lea.vmem %s2, %s217
      %s219 = smul.u32 32, %s19
      %p220 = scmp.lt.s32.totalorder %s219, 63
      %s221 = scalar_select %p220, %s219, 63
      %p222 = scmp.lt.s32.totalorder %s18, 0
      %s223 = scalar_select %p222, %s18, 0
      %s224 = sadd.s32 %s223, %s221
      %s225 = smul.addr %s224, 4
      %s226 = scalar_lea.vmem %s3, %s225
      %s227 = smul.u32 32, %s19
      %v228 = vld [vmem:[%s210] sm:$0xff]
      %v229 = vld [vmem:[%s210 + $0x8] sm:$0xff]
      %v230 = vld [vmem:[%s210 + $0x10] sm:$0xff]
      %v231 = vld [vmem:[%s210 + $0x18] sm:$0xff]
      %v232 = vld [vmem:[%s210 + $0x20] sm:$0xff]
      %v233 = vld [vmem:[%s210 + $0x28] sm:$0xff]
      %v234 = vld [vmem:[%s210 + $0x30] sm:$0xff]
      %v235 = vld [vmem:[%s210 + $0x38] sm:$0xff]
      %v236 = vld [vmem:[%s210 + $0x40] sm:$0xff]
      %v237 = vld [vmem:[%s210 + $0x48] sm:$0xff]
      %v238 = vld [vmem:[%s210 + $0x50] sm:$0xff]
      %v239 = vld [vmem:[%s210 + $0x58] sm:$0xff]
      %v240 = vld [vmem:[%s210 + $0x60] sm:$0xff]
      %v241 = vld [vmem:[%s210 + $0x68] sm:$0xff]
      %v242 = vld [vmem:[%s210 + $0x70] sm:$0xff]
      %v243 = vld [vmem:[%s210 + $0x78] sm:$0xff]
      %v244 = vld [vmem:[%s210 + $0x80] sm:$0xff]
      %v245 = vld [vmem:[%s210 + $0x88] sm:$0xff]
      %v246 = vld [vmem:[%s210 + $0x90] sm:$0xff]
      %v247 = vld [vmem:[%s210 + $0x98] sm:$0xff]
      %v248 = vld [vmem:[%s210 + $0xa0] sm:$0xff]
      %v249 = vld [vmem:[%s210 + $0xa8] sm:$0xff]
      %v250 = vld [vmem:[%s210 + $0xb0] sm:$0xff]
      %v251 = vld [vmem:[%s210 + $0xb8] sm:$0xff]
      %v252 = vld [vmem:[%s210 + $0xc0] sm:$0xff]
      %v253 = vld [vmem:[%s210 + $0xc8] sm:$0xff]
      %v254 = vld [vmem:[%s210 + $0xd0] sm:$0xff]
      %v255 = vld [vmem:[%s210 + $0xd8] sm:$0xff]
      %v256 = vld [vmem:[%s210 + $0xe0] sm:$0xff]
      %v257 = vld [vmem:[%s210 + $0xe8] sm:$0xff]
      %v258 = vld [vmem:[%s210 + $0xf0] sm:$0xff]
      %v259 = vld [vmem:[%s210 + $0xf8] sm:$0xff]
      %v260 = vld [vmem:[%s215] sm:$0xf]
      %v261 = vld [vmem:[%s215 + $0x4] sm:$0xf]
      %v262 = vld [vmem:[%s215 + $0x8] sm:$0xf]
      %v263 = vld [vmem:[%s215 + $0xc] sm:$0xf]
      %v264 = vld [vmem:[%s215 + $0x10] sm:$0xf]
      %v265 = vld [vmem:[%s215 + $0x14] sm:$0xf]
      %v266 = vld [vmem:[%s215 + $0x18] sm:$0xf]
      %v267 = vld [vmem:[%s215 + $0x1c] sm:$0xf]
      %v268 = vld [vmem:[%s215 + $0x20] sm:$0xf]
      %v269 = vld [vmem:[%s215 + $0x24] sm:$0xf]
      %v270 = vld [vmem:[%s215 + $0x28] sm:$0xf]
      %v271 = vld [vmem:[%s215 + $0x2c] sm:$0xf]
      %v272 = vld [vmem:[%s215 + $0x30] sm:$0xf]
      %v273 = vld [vmem:[%s215 + $0x34] sm:$0xf]
      %v274 = vld [vmem:[%s215 + $0x38] sm:$0xf]
      %v275 = vld [vmem:[%s215 + $0x3c] sm:$0xf]
      %v276 = vld [vmem:[%s215 + $0x40] sm:$0xf]
      %v277 = vld [vmem:[%s215 + $0x44] sm:$0xf]
      %v278 = vld [vmem:[%s215 + $0x48] sm:$0xf]
      %v279 = vld [vmem:[%s215 + $0x4c] sm:$0xf]
      %v280 = vld [vmem:[%s215 + $0x50] sm:$0xf]
      %v281 = vld [vmem:[%s215 + $0x54] sm:$0xf]
      %v282 = vld [vmem:[%s215 + $0x58] sm:$0xf]
      %v283 = vld [vmem:[%s215 + $0x5c] sm:$0xf]
      %v284 = vld [vmem:[%s215 + $0x60] sm:$0xf]
      %v285 = vld [vmem:[%s215 + $0x64] sm:$0xf]
      %v286 = vld [vmem:[%s215 + $0x68] sm:$0xf]
      %v287 = vld [vmem:[%s215 + $0x6c] sm:$0xf]
      %v288 = vld [vmem:[%s215 + $0x70] sm:$0xf]
      %v289 = vld [vmem:[%s215 + $0x74] sm:$0xf]
      %v290 = vld [vmem:[%s215 + $0x78] sm:$0xf]
      %v291 = vld [vmem:[%s215 + $0x7c] sm:$0xf]
      %v292 = vld [vmem:[%s218] sm:$0x1]
      %v294 = vperm.slane %v292, 0
      %v328 = vunpack.c.l.b16 %v228
      %v329 = vunpack.c.h.b16 %v228
      %v330 = vunpack.c.l.b16 %v229
      %v331 = vunpack.c.h.b16 %v229
      %v332 = vunpack.c.l.b16 %v230
      %v333 = vunpack.c.h.b16 %v230
      %v334 = vunpack.c.l.b16 %v231
      %v335 = vunpack.c.h.b16 %v231
      %v336 = vunpack.c.l.b16 %v232
      %v337 = vunpack.c.h.b16 %v232
      %v338 = vunpack.c.l.b16 %v233
      %v339 = vunpack.c.h.b16 %v233
      %v340 = vunpack.c.l.b16 %v234
      %v341 = vunpack.c.h.b16 %v234
      %v342 = vunpack.c.l.b16 %v235
      %v343 = vunpack.c.h.b16 %v235
      %v344 = vunpack.c.l.b16 %v236
      %v345 = vunpack.c.h.b16 %v236
      %v346 = vunpack.c.l.b16 %v237
      %v347 = vunpack.c.h.b16 %v237
      %v348 = vunpack.c.l.b16 %v238
      %v349 = vunpack.c.h.b16 %v238
      %v350 = vunpack.c.l.b16 %v239
      %v351 = vunpack.c.h.b16 %v239
      %v352 = vunpack.c.l.b16 %v240
      %v353 = vunpack.c.h.b16 %v240
      %v354 = vunpack.c.l.b16 %v241
      %v355 = vunpack.c.h.b16 %v241
      %v356 = vunpack.c.l.b16 %v242
      %v357 = vunpack.c.h.b16 %v242
      %v358 = vunpack.c.l.b16 %v243
      %v359 = vunpack.c.h.b16 %v243
      %v360 = vunpack.c.l.b16 %v244
      %v361 = vunpack.c.h.b16 %v244
      %v362 = vunpack.c.l.b16 %v245
      %v363 = vunpack.c.h.b16 %v245
      %v364 = vunpack.c.l.b16 %v246
      %v365 = vunpack.c.h.b16 %v246
      %v366 = vunpack.c.l.b16 %v247
      %v367 = vunpack.c.h.b16 %v247
      %v368 = vunpack.c.l.b16 %v248
      %v369 = vunpack.c.h.b16 %v248
      %v370 = vunpack.c.l.b16 %v249
      %v371 = vunpack.c.h.b16 %v249
      %v372 = vunpack.c.l.b16 %v250
      %v373 = vunpack.c.h.b16 %v250
      %v374 = vunpack.c.l.b16 %v251
      %v375 = vunpack.c.h.b16 %v251
      %v376 = vunpack.c.l.b16 %v252
      %v377 = vunpack.c.h.b16 %v252
      %v378 = vunpack.c.l.b16 %v253
      %v379 = vunpack.c.h.b16 %v253
      %v380 = vunpack.c.l.b16 %v254
      %v381 = vunpack.c.h.b16 %v254
      %v382 = vunpack.c.l.b16 %v255
      %v383 = vunpack.c.h.b16 %v255
      %v384 = vunpack.c.l.b16 %v256
      %v385 = vunpack.c.h.b16 %v256
      %v386 = vunpack.c.l.b16 %v257
      %v387 = vunpack.c.h.b16 %v257
      %v388 = vunpack.c.l.b16 %v258
      %v389 = vunpack.c.h.b16 %v258
      %v390 = vunpack.c.l.b16 %v259
      %v391 = vunpack.c.h.b16 %v259
      %v392 = vpack.c.b16 %v330, %v328
      %v393 = vpack.c.b16 %v331, %v329
      %v394 = vpack.c.b16 %v334, %v332
      %v395 = vpack.c.b16 %v335, %v333
      %v396 = vpack.c.b16 %v338, %v336
      %v397 = vpack.c.b16 %v339, %v337
      %v398 = vpack.c.b16 %v342, %v340
      %v399 = vpack.c.b16 %v343, %v341
      %v400 = vpack.c.b16 %v346, %v344
      %v401 = vpack.c.b16 %v347, %v345
      %v402 = vpack.c.b16 %v350, %v348
      %v403 = vpack.c.b16 %v351, %v349
      %v404 = vpack.c.b16 %v354, %v352
      %v405 = vpack.c.b16 %v355, %v353
      %v406 = vpack.c.b16 %v358, %v356
      %v407 = vpack.c.b16 %v359, %v357
      %v408 = vpack.c.b16 %v362, %v360
      %v409 = vpack.c.b16 %v363, %v361
      %v410 = vpack.c.b16 %v366, %v364
      %v411 = vpack.c.b16 %v367, %v365
      %v412 = vpack.c.b16 %v370, %v368
      %v413 = vpack.c.b16 %v371, %v369
      %v414 = vpack.c.b16 %v374, %v372
      %v415 = vpack.c.b16 %v375, %v373
      %v416 = vpack.c.b16 %v378, %v376
      %v417 = vpack.c.b16 %v379, %v377
      %v418 = vpack.c.b16 %v382, %v380
      %v419 = vpack.c.b16 %v383, %v381
      %v420 = vpack.c.b16 %v386, %v384
      %v421 = vpack.c.b16 %v387, %v385
      %v422 = vpack.c.b16 %v390, %v388
      %v423 = vpack.c.b16 %v391, %v389
      %v488 = vunpack.c.l.b16 %v260
      %v489 = vunpack.c.l.b16 %v261
      %v490 = vunpack.c.l.b16 %v262
      %v491 = vunpack.c.l.b16 %v263
      %v492 = vunpack.c.l.b16 %v264
      %v493 = vunpack.c.l.b16 %v265
      %v494 = vunpack.c.l.b16 %v266
      %v495 = vunpack.c.l.b16 %v267
      %v496 = vunpack.c.l.b16 %v268
      %v497 = vunpack.c.l.b16 %v269
      %v498 = vunpack.c.l.b16 %v270
      %v499 = vunpack.c.l.b16 %v271
      %v500 = vunpack.c.l.b16 %v272
      %v501 = vunpack.c.l.b16 %v273
      %v502 = vunpack.c.l.b16 %v274
      %v503 = vunpack.c.l.b16 %v275
      %v504 = vunpack.c.l.b16 %v276
      %v505 = vunpack.c.l.b16 %v277
      %v506 = vunpack.c.l.b16 %v278
      %v507 = vunpack.c.l.b16 %v279
      %v508 = vunpack.c.l.b16 %v280
      %v509 = vunpack.c.l.b16 %v281
      %v510 = vunpack.c.l.b16 %v282
      %v511 = vunpack.c.l.b16 %v283
      %v512 = vunpack.c.l.b16 %v284
      %v513 = vunpack.c.l.b16 %v285
      %v514 = vunpack.c.l.b16 %v286
      %v515 = vunpack.c.l.b16 %v287
      %v516 = vunpack.c.l.b16 %v288
      %v517 = vunpack.c.l.b16 %v289
      %v518 = vunpack.c.l.b16 %v290
      %v519 = vunpack.c.l.b16 %v291
      %v520 = vpack.c.b16 %v489, %v488
      %v521 = vpack.c.b16 %v491, %v490
      %v522 = vpack.c.b16 %v493, %v492
      %v523 = vpack.c.b16 %v495, %v494
      %v524 = vpack.c.b16 %v497, %v496
      %v525 = vpack.c.b16 %v499, %v498
      %v526 = vpack.c.b16 %v501, %v500
      %v527 = vpack.c.b16 %v503, %v502
      %v528 = vpack.c.b16 %v505, %v504
      %v529 = vpack.c.b16 %v507, %v506
      %v530 = vpack.c.b16 %v509, %v508
      %v531 = vpack.c.b16 %v511, %v510
      %v532 = vpack.c.b16 %v513, %v512
      %v533 = vpack.c.b16 %v515, %v514
      %v534 = vpack.c.b16 %v517, %v516
      %v535 = vpack.c.b16 %v519, %v518
      %552 = vmatpush.bf16.msra.mxu0 %v527
      %553 = vmatpush.bf16.msra.mxu0 %v526
      %554 = vmatpush.bf16.msra.mxu0 %v525
      %555 = vmatpush.bf16.msra.mxu0 %v524
      %556 = vmatpush.bf16.msra.mxu0 %v523
      %557 = vmatpush.bf16.msra.mxu0 %v522
      %558 = vmatpush.bf16.msra.mxu0 %v521
      %559 = vmatpush.bf16.msra.mxu0 %v520
      %560 = vmatmul.bf16.gmra.mxu0 %v392
      %v561 = vpop.f32.mrf.mxu0
      %v562 = vadd.f32 %v294, %v561
      %v563 = vpop.f32.mrf.mxu0
      %v564 = vadd.f32 %v294, %v563
      %565 = vmatmul.bf16.gmra.mxu0 %v394
      %v566 = vpop.f32.mrf.mxu0
      %v567 = vadd.f32 %v294, %v566
      %v568 = vpop.f32.mrf.mxu0
      %v569 = vadd.f32 %v294, %v568
      %570 = vmatmul.bf16.gmra.mxu0 %v396
      %v571 = vpop.f32.mrf.mxu0
      %v572 = vadd.f32 %v294, %v571
      %v573 = vpop.f32.mrf.mxu0
      %v574 = vadd.f32 %v294, %v573
      %575 = vmatmul.bf16.gmra.mxu0 %v398
      %v576 = vpop.f32.mrf.mxu0
      %v577 = vadd.f32 %v294, %v576
      %v578 = vpop.f32.mrf.mxu0
      %v579 = vadd.f32 %v294, %v578
      %580 = vmatmul.bf16.gmra.mxu0 %v400
      %v581 = vpop.f32.mrf.mxu0
      %v582 = vadd.f32 %v294, %v581
      %v583 = vpop.f32.mrf.mxu0
      %v584 = vadd.f32 %v294, %v583
      %585 = vmatmul.bf16.gmra.mxu0 %v402
      %v586 = vpop.f32.mrf.mxu0
      %v587 = vadd.f32 %v294, %v586
      %v588 = vpop.f32.mrf.mxu0
      %v589 = vadd.f32 %v294, %v588
      %590 = vmatmul.bf16.gmra.mxu0 %v404
      %v591 = vpop.f32.mrf.mxu0
      %v592 = vadd.f32 %v294, %v591
      %v593 = vpop.f32.mrf.mxu0
      %v594 = vadd.f32 %v294, %v593
      %595 = vmatmul.bf16.gmra.mxu0 %v406
      %v596 = vpop.f32.mrf.mxu0
      %v597 = vadd.f32 %v294, %v596
      %v598 = vpop.f32.mrf.mxu0
      %v599 = vadd.f32 %v294, %v598
      %600 = vmatmul.bf16.gmra.mxu0 %v408
      %v601 = vpop.f32.mrf.mxu0
      %v602 = vadd.f32 %v294, %v601
      %v603 = vpop.f32.mrf.mxu0
      %v604 = vadd.f32 %v294, %v603
      %605 = vmatmul.bf16.gmra.mxu0 %v410
      %v606 = vpop.f32.mrf.mxu0
      %v607 = vadd.f32 %v294, %v606
      %v608 = vpop.f32.mrf.mxu0
      %v609 = vadd.f32 %v294, %v608
      %610 = vmatmul.bf16.gmra.mxu0 %v412
      %v611 = vpop.f32.mrf.mxu0
      %v612 = vadd.f32 %v294, %v611
      %v613 = vpop.f32.mrf.mxu0
      %v614 = vadd.f32 %v294, %v613
      %615 = vmatmul.bf16.gmra.mxu0 %v414
      %v616 = vpop.f32.mrf.mxu0
      %v617 = vadd.f32 %v294, %v616
      %v618 = vpop.f32.mrf.mxu0
      %v619 = vadd.f32 %v294, %v618
      %620 = vmatmul.bf16.gmra.mxu0 %v416
      %v621 = vpop.f32.mrf.mxu0
      %v622 = vadd.f32 %v294, %v621
      %v623 = vpop.f32.mrf.mxu0
      %v624 = vadd.f32 %v294, %v623
      %625 = vmatmul.bf16.gmra.mxu0 %v418
      %v626 = vpop.f32.mrf.mxu0
      %v627 = vadd.f32 %v294, %v626
      %v628 = vpop.f32.mrf.mxu0
      %v629 = vadd.f32 %v294, %v628
      %630 = vmatmul.bf16.gmra.mxu0 %v420
      %v631 = vpop.f32.mrf.mxu0
      %v632 = vadd.f32 %v294, %v631
      %v633 = vpop.f32.mrf.mxu0
      %v634 = vadd.f32 %v294, %v633
      %635 = vmatmul.bf16.gmra.mxu0 %v422
      %v636 = vpop.f32.mrf.mxu0
      %v637 = vadd.f32 %v294, %v636
      %v638 = vpop.f32.mrf.mxu0
      %v639 = vadd.f32 %v294, %v638
      %640 = vdwg.mxu0
      %641 = vmatpush.bf16.msra.mxu0 %v535
      %642 = vmatpush.bf16.msra.mxu0 %v534
      %643 = vmatpush.bf16.msra.mxu0 %v533
      %644 = vmatpush.bf16.msra.mxu0 %v532
      %645 = vmatpush.bf16.msra.mxu0 %v531
      %646 = vmatpush.bf16.msra.mxu0 %v530
      %647 = vmatpush.bf16.msra.mxu0 %v529
      %648 = vmatpush.bf16.msra.mxu0 %v528
      %649 = vmatmul.bf16.gmra.mxu0 %v393
      %v650 = vpop.f32.mrf.mxu0
      %v651 = vadd.f32 %v562, %v650
      %v652 = vpop.f32.mrf.mxu0
      %v653 = vadd.f32 %v564, %v652
      %654 = vmatmul.bf16.gmra.mxu0 %v395
      %v655 = vpop.f32.mrf.mxu0
      %v656 = vadd.f32 %v567, %v655
      %v657 = vpop.f32.mrf.mxu0
      %v658 = vadd.f32 %v569, %v657
      %659 = vmatmul.bf16.gmra.mxu0 %v397
      %v660 = vpop.f32.mrf.mxu0
      %v661 = vadd.f32 %v572, %v660
      %v662 = vpop.f32.mrf.mxu0
      %v663 = vadd.f32 %v574, %v662
      %664 = vmatmul.bf16.gmra.mxu0 %v399
      %v665 = vpop.f32.mrf.mxu0
      %v666 = vadd.f32 %v577, %v665
      %v667 = vpop.f32.mrf.mxu0
      %v668 = vadd.f32 %v579, %v667
      %669 = vmatmul.bf16.gmra.mxu0 %v401
      %v670 = vpop.f32.mrf.mxu0
      %v671 = vadd.f32 %v582, %v670
      %v672 = vpop.f32.mrf.mxu0
      %v673 = vadd.f32 %v584, %v672
      %674 = vmatmul.bf16.gmra.mxu0 %v403
      %v675 = vpop.f32.mrf.mxu0
      %v676 = vadd.f32 %v587, %v675
      %v677 = vpop.f32.mrf.mxu0
      %v678 = vadd.f32 %v589, %v677
      %679 = vmatmul.bf16.gmra.mxu0 %v405
      %v680 = vpop.f32.mrf.mxu0
      %v681 = vadd.f32 %v592, %v680
      %v682 = vpop.f32.mrf.mxu0
      %v683 = vadd.f32 %v594, %v682
      %684 = vmatmul.bf16.gmra.mxu0 %v407
      %v685 = vpop.f32.mrf.mxu0
      %v686 = vadd.f32 %v597, %v685
      %v687 = vpop.f32.mrf.mxu0
      %v688 = vadd.f32 %v599, %v687
      %689 = vmatmul.bf16.gmra.mxu0 %v409
      %v690 = vpop.f32.mrf.mxu0
      %v691 = vadd.f32 %v602, %v690
      %v692 = vpop.f32.mrf.mxu0
      %v693 = vadd.f32 %v604, %v692
      %694 = vmatmul.bf16.gmra.mxu0 %v411
      %v695 = vpop.f32.mrf.mxu0
      %v696 = vadd.f32 %v607, %v695
      %v697 = vpop.f32.mrf.mxu0
      %v698 = vadd.f32 %v609, %v697
      %699 = vmatmul.bf16.gmra.mxu0 %v413
      %v700 = vpop.f32.mrf.mxu0
      %v701 = vadd.f32 %v612, %v700
      %v702 = vpop.f32.mrf.mxu0
      %v703 = vadd.f32 %v614, %v702
      %704 = vmatmul.bf16.gmra.mxu0 %v415
      %v705 = vpop.f32.mrf.mxu0
      %v706 = vadd.f32 %v617, %v705
      %v707 = vpop.f32.mrf.mxu0
      %v708 = vadd.f32 %v619, %v707
      %709 = vmatmul.bf16.gmra.mxu0 %v417
      %v710 = vpop.f32.mrf.mxu0
      %v711 = vadd.f32 %v622, %v710
      %v712 = vpop.f32.mrf.mxu0
      %v713 = vadd.f32 %v624, %v712
      %714 = vmatmul.bf16.gmra.mxu0 %v419
      %v715 = vpop.f32.mrf.mxu0
      %v716 = vadd.f32 %v627, %v715
      %v717 = vpop.f32.mrf.mxu0
      %v718 = vadd.f32 %v629, %v717
      %719 = vmatmul.bf16.gmra.mxu0 %v421
      %v720 = vpop.f32.mrf.mxu0
      %v721 = vadd.f32 %v632, %v720
      %v722 = vpop.f32.mrf.mxu0
      %v723 = vadd.f32 %v634, %v722
      %724 = vmatmul.bf16.gmra.mxu0 %v423
      %v725 = vpop.f32.mrf.mxu0
      %v726 = vadd.f32 %v637, %v725
      %v727 = vpop.f32.mrf.mxu0
      %v728 = vadd.f32 %v639, %v727
      %729 = vdwg.mxu0
      %v730 = vmax.f32 %v651, 0.0
      %v731 = vmax.f32 %v653, 0.0
      %v732 = vmax.f32 %v656, 0.0
      %v733 = vmax.f32 %v658, 0.0
      %v734 = vmax.f32 %v661, 0.0
      %v735 = vmax.f32 %v663, 0.0
      %v736 = vmax.f32 %v666, 0.0
      %v737 = vmax.f32 %v668, 0.0
      %v738 = vmax.f32 %v671, 0.0
      %v739 = vmax.f32 %v673, 0.0
      %v740 = vmax.f32 %v676, 0.0
      %v741 = vmax.f32 %v678, 0.0
      %v742 = vmax.f32 %v681, 0.0
      %v743 = vmax.f32 %v683, 0.0
      %v744 = vmax.f32 %v686, 0.0
      %v745 = vmax.f32 %v688, 0.0
      %v746 = vmax.f32 %v691, 0.0
      %v747 = vmax.f32 %v693, 0.0
      %v748 = vmax.f32 %v696, 0.0
      %v749 = vmax.f32 %v698, 0.0
      %v750 = vmax.f32 %v701, 0.0
      %v751 = vmax.f32 %v703, 0.0
      %v752 = vmax.f32 %v706, 0.0
      %v753 = vmax.f32 %v708, 0.0
      %v754 = vmax.f32 %v711, 0.0
      %v755 = vmax.f32 %v713, 0.0
      %v756 = vmax.f32 %v716, 0.0
      %v757 = vmax.f32 %v718, 0.0
      %v758 = vmax.f32 %v721, 0.0
      %v759 = vmax.f32 %v723, 0.0
      %v760 = vmax.f32 %v726, 0.0
      %v761 = vmax.f32 %v728, 0.0
      %v762 = vpack.c.bf16 %v730, %v730
      %v763 = vpack.c.bf16 %v731, %v731
      %v764 = vpack.c.bf16 %v732, %v732
      %v765 = vpack.c.bf16 %v733, %v733
      %v766 = vpack.c.bf16 %v734, %v734
      %v767 = vpack.c.bf16 %v735, %v735
      %v768 = vpack.c.bf16 %v736, %v736
      %v769 = vpack.c.bf16 %v737, %v737
      %v770 = vpack.c.bf16 %v738, %v738
      %v771 = vpack.c.bf16 %v739, %v739
      %v772 = vpack.c.bf16 %v740, %v740
      %v773 = vpack.c.bf16 %v741, %v741
      %v774 = vpack.c.bf16 %v742, %v742
      %v775 = vpack.c.bf16 %v743, %v743
      %v776 = vpack.c.bf16 %v744, %v744
      %v777 = vpack.c.bf16 %v745, %v745
      %v778 = vpack.c.bf16 %v746, %v746
      %v779 = vpack.c.bf16 %v747, %v747
      %v780 = vpack.c.bf16 %v748, %v748
      %v781 = vpack.c.bf16 %v749, %v749
      %v782 = vpack.c.bf16 %v750, %v750
      %v783 = vpack.c.bf16 %v751, %v751
      %v784 = vpack.c.bf16 %v752, %v752
      %v785 = vpack.c.bf16 %v753, %v753
      %v786 = vpack.c.bf16 %v754, %v754
      %v787 = vpack.c.bf16 %v755, %v755
      %v788 = vpack.c.bf16 %v756, %v756
      %v789 = vpack.c.bf16 %v757, %v757
      %v790 = vpack.c.bf16 %v758, %v758
      %v791 = vpack.c.bf16 %v759, %v759
      %v792 = vpack.c.bf16 %v760, %v760
      %v793 = vpack.c.bf16 %v761, %v761
      %vm794 = vcmask 519168
      %795 = vst.msk [vmem:[%s226] sm:$0xf] %vm794, %v762
      %796 = vst.msk [vmem:[%s226 + $0x4] sm:$0xf] %vm794, %v763
      %797 = vst.msk [vmem:[%s226 + $0x8] sm:$0xf] %vm794, %v764
      %798 = vst.msk [vmem:[%s226 + $0xc] sm:$0xf] %vm794, %v765
      %799 = vst.msk [vmem:[%s226 + $0x10] sm:$0xf] %vm794, %v766
      %800 = vst.msk [vmem:[%s226 + $0x14] sm:$0xf] %vm794, %v767
      %801 = vst.msk [vmem:[%s226 + $0x18] sm:$0xf] %vm794, %v768
      %802 = vst.msk [vmem:[%s226 + $0x1c] sm:$0xf] %vm794, %v769
      %803 = vst.msk [vmem:[%s226 + $0x20] sm:$0xf] %vm794, %v770
      %804 = vst.msk [vmem:[%s226 + $0x24] sm:$0xf] %vm794, %v771
      %805 = vst.msk [vmem:[%s226 + $0x28] sm:$0xf] %vm794, %v772
      %806 = vst.msk [vmem:[%s226 + $0x2c] sm:$0xf] %vm794, %v773
      %807 = vst.msk [vmem:[%s226 + $0x30] sm:$0xf] %vm794, %v774
      %808 = vst.msk [vmem:[%s226 + $0x34] sm:$0xf] %vm794, %v775
      %809 = vst.msk [vmem:[%s226 + $0x38] sm:$0xf] %vm794, %v776
      %810 = vst.msk [vmem:[%s226 + $0x3c] sm:$0xf] %vm794, %v777
      %811 = vst.msk [vmem:[%s226 + $0x40] sm:$0xf] %vm794, %v778
      %812 = vst.msk [vmem:[%s226 + $0x44] sm:$0xf] %vm794, %v779
      %813 = vst.msk [vmem:[%s226 + $0x48] sm:$0xf] %vm794, %v780
      %814 = vst.msk [vmem:[%s226 + $0x4c] sm:$0xf] %vm794, %v781
      %815 = vst.msk [vmem:[%s226 + $0x50] sm:$0xf] %vm794, %v782
      %816 = vst.msk [vmem:[%s226 + $0x54] sm:$0xf] %vm794, %v783
      %817 = vst.msk [vmem:[%s226 + $0x58] sm:$0xf] %vm794, %v784
      %818 = vst.msk [vmem:[%s226 + $0x5c] sm:$0xf] %vm794, %v785
      %819 = vst.msk [vmem:[%s226 + $0x60] sm:$0xf] %vm794, %v786
      %820 = vst.msk [vmem:[%s226 + $0x64] sm:$0xf] %vm794, %v787
      %821 = vst.msk [vmem:[%s226 + $0x68] sm:$0xf] %vm794, %v788
      %822 = vst.msk [vmem:[%s226 + $0x6c] sm:$0xf] %vm794, %v789
      %823 = vst.msk [vmem:[%s226 + $0x70] sm:$0xf] %vm794, %v790
      %824 = vst.msk [vmem:[%s226 + $0x74] sm:$0xf] %vm794, %v791
      %825 = vst.msk [vmem:[%s226 + $0x78] sm:$0xf] %vm794, %v792
      %826 = vst.msk [vmem:[%s226 + $0x7c] sm:$0xf] %vm794, %v793
      %s827 = smul.u32 32, %s19
      %p828 = scmp.lt.s32.totalorder %s827, 63
      %s829 = scalar_select %p828, %s827, 63
      %p830 = scmp.lt.s32.totalorder %s18, 0
      %s831 = scalar_select %p830, %s18, 0
      %s832 = sadd.s32 %s831, %s829
      %s833 = smul.addr %s832, 4
      %s834 = scalar_lea.vmem %s3, %s833
      // Predicated region
      $region33: #{_lambda_.5} parent=31 // pred_check
        %p835 = pneg %p124
      $region34: #{_lambda_.5} parent=31 // pred_check_branch
        %837 = sbr.rel (%p835) target = $region36
      $region35: #{_lambda_.5} parent=31 // pred_region
        %s838 = smul.u32 32, %s19
      $region36: #{_lambda_.5} parent=31 // pred_fallthru
        _
    $region32: #{_lambda_.5} parent=5 // pred_fallthru
      _
    %p839 = scmp.le.s32.totalorder 2, %s9
    // Predicated region
    $region37: #{_lambda_.5} parent=5 // pred_check
      %p840 = pneg %p839
    $region38: #{_lambda_.5} parent=5 // pred_check_branch
      %842 = sbr.rel (%p840) target = $region40
    $region39: #{_lambda_.5} parent=5 // pred_region
      %s843 = ssub.s32 %s9, 2
      // Predicated region
      $region41: #{_lambda_.5} parent=39 // pred_check
        %p844 = pneg %p130
      $region42: #{_lambda_.5} parent=39 // pred_check_branch
        %846 = sbr.rel (%p844) target = $region44
      $region43: #{_lambda_.5} parent=39 // pred_region
        %s847 = smul.u32 32, %s21
        %p848 = scmp.lt.s32.totalorder %s847, 63
        %s849 = scalar_select %p848, %s847, 63
        %p850 = scmp.lt.s32.totalorder %s20, 0
        %s851 = scalar_select %p850, %s20, 0
        %s852 = sadd.s32 %s851, %s849
        %s853 = smul.addr %s852, 4
        %s854 = scalar_lea.vmem %s3, %s853
      $region44: #{_lambda_.5} parent=39 // pred_fallthru
        _
    $region40: #{_lambda_.5} parent=5 // pred_fallthru
      _
  $region6: #{_lambda_.5} parent=0 // loop_footer
    %s13 = sadd.s32 1, %s9
  $region7: #{_lambda_.5} parent=0 // loop_footer_branch
    %8 = sbr.rel target = $region3
  $region8: #{_lambda_.5} parent=0 // loop_exit
    _

// kernel: _lambda_.6
$region0: #{_lambda_.6}
  #allocation0 [shape = 'u32[]', space=smem, size = 0x4, offset = 0x4, fixed_abs, tag = 'smem constant byte address 0x4 - core index']
  #allocation1 [shape = 'u32[72,128]{1,0:T(1,128)}', space=vmem, size = 0x9000, scoped, tag = 'internal scratch']
  %s0 = inlined_call_operand.vmem [shape: bf16[128,640], index: 0, kind: input, shape index: {}]
  %s1 = inlined_call_operand.vmem [shape: bf16[640,64], index: 1, kind: input, shape index: {}]
  %s2 = inlined_call_operand.vmem [shape: f32[1,64], index: 2, kind: input, shape index: {}]
  %s3 = inlined_call_operand.vmem [shape: bf16[128,64], index: 3, kind: output, shape index: {}]
  %s4 = sld [smem:[#allocation0]]
  $region45: #{_lambda_.6} parent=0
    _
  %s6 = ssub.s32 1, %s4
  %s7 = scalar_select 0, %s6, %s4
  loop: start=0, step=1, limit=4
  $region2: #{_lambda_.6} parent=0 // loop_pre_header
    _
  $region3: #{_lambda_.6} parent=0 // loop_header
    %s9 = sphi 0, %s13
    %p10 = scmp.ge.s32.totalorder %s9, 4
    %s16 = sphi 0, %s28
    %s17 = sphi 0, %s24
    %s18 = sphi 0, %s16
    %s19 = sphi 0, %s17
    %s20 = sphi 0, %s18
    %s21 = sphi 0, %s19
    %s31 = sphi 0, %s33
    %s34 = sphi 0, %s31
    %s35 = sphi 0, %s34
    %s51 = sphi 0, %s35
    %s57 = sphi 0, %s59
    %s60 = sphi 0, %s57
    %s61 = sphi 0, %s60
    %s77 = sphi 0, %s61
    %s83 = sphi 0, %s85
    %s86 = sphi 0, %s83
    %s87 = sphi 0, %s86
    %s103 = sphi 0, %s87
    %s111 = sphi 0, %s113
    %s114 = sphi 0, %s111
    %s115 = sphi 0, %s114
    %s131 = sphi 0, %s115
  $region4: #{_lambda_.6} parent=0 // loop_header_branch
    %12 = sbr.rel (%p10) target = $region8
  $region5: #{_lambda_.6} parent=0 // loop_body
    %s14 = ssub.s32 %s9, 1
    %s15 = ssub.s32 %s9, 2
    %s22 = sadd.s32 1, %s17
    %p23 = scmp.ge.s32.totalorder %s22, 2
    %s24 = scalar_select %p23, 0, %s22
    %s25 = sadd.s32 1, %s16
    %s26 = scalar_select %p23, %s25, %s16
    %p27 = scmp.ge.s32.totalorder %s26, 1
    %s28 = scalar_select %p27, 0, %s26
    %s29 = ssub.s32 %s17, %s24
    %p30 = scmp.eq.s32.totalorder %s29, 0
    %s32 = sadd.s32 %s31, 1
    %s33 = scalar_select %p30, %s31, %s32
    %p36 = pneg %p30
    %p37 = scmp.eq.s32.totalorder %s9, 1
    %p38 = por %p36, %p37
    %p39 = scmp.ne.s32.totalorder %s31, %s34
    %p40 = scmp.eq.s32.totalorder %s9, 0
    %p41 = por %p39, %p40
    %p42 = scmp.ne.s32.totalorder %s31, %s34
    %p43 = scmp.eq.s32.totalorder %s14, 1
    %p44 = por %p42, %p43
    %p45 = scmp.ne.s32.totalorder %s34, %s35
    %p46 = scmp.eq.s32.totalorder %s14, 0
    %p47 = por %p45, %p46
    %p48 = scmp.ne.s32.totalorder %s34, %s35
    %p49 = scmp.eq.s32.totalorder %s15, 1
    %p50 = por %p48, %p49
    %p52 = scmp.ne.s32.totalorder %s35, %s51
    %p53 = scmp.eq.s32.totalorder %s15, 0
    %p54 = por %p52, %p53
    %s55 = ssub.s32 %s16, %s28
    %p56 = scmp.eq.s32.totalorder %s55, 0
    %s58 = sadd.s32 %s57, 1
    %s59 = scalar_select %p56, %s57, %s58
    %p62 = pneg %p56
    %p63 = scmp.eq.s32.totalorder %s9, 1
    %p64 = por %p62, %p63
    %p65 = scmp.ne.s32.totalorder %s57, %s60
    %p66 = scmp.eq.s32.totalorder %s9, 0
    %p67 = por %p65, %p66
    %p68 = scmp.ne.s32.totalorder %s57, %s60
    %p69 = scmp.eq.s32.totalorder %s14, 1
    %p70 = por %p68, %p69
    %p71 = scmp.ne.s32.totalorder %s60, %s61
    %p72 = scmp.eq.s32.totalorder %s14, 0
    %p73 = por %p71, %p72
    %p74 = scmp.ne.s32.totalorder %s60, %s61
    %p75 = scmp.eq.s32.totalorder %s15, 1
    %p76 = por %p74, %p75
    %p78 = scmp.ne.s32.totalorder %s61, %s77
    %p79 = scmp.eq.s32.totalorder %s15, 0
    %p80 = por %p78, %p79
    %s81 = ssub.s32 %s16, %s28
    %p82 = scmp.eq.s32.totalorder %s81, 0
    %s84 = sadd.s32 %s83, 1
    %s85 = scalar_select %p82, %s83, %s84
    %p88 = pneg %p82
    %p89 = scmp.eq.s32.totalorder %s9, 1
    %p90 = por %p88, %p89
    %p91 = scmp.ne.s32.totalorder %s83, %s86
    %p92 = scmp.eq.s32.totalorder %s9, 0
    %p93 = por %p91, %p92
    %p94 = scmp.ne.s32.totalorder %s83, %s86
    %p95 = scmp.eq.s32.totalorder %s14, 1
    %p96 = por %p94, %p95
    %p97 = scmp.ne.s32.totalorder %s86, %s87
    %p98 = scmp.eq.s32.totalorder %s14, 0
    %p99 = por %p97, %p98
    %p100 = scmp.ne.s32.totalorder %s86, %s87
    %p101 = scmp.eq.s32.totalorder %s15, 1
    %p102 = por %p100, %p101
    %p104 = scmp.ne.s32.totalorder %s87, %s103
    %p105 = scmp.eq.s32.totalorder %s15, 0
    %p106 = por %p104, %p105
    %s107 = ssub.s32 %s17, %s24
    %s108 = ssub.s32 %s16, %s28
    %s109 = sor.u32 %s107, %s108
    %p110 = scmp.eq.s32.totalorder %s109, 0
    %s112 = sadd.s32 %s111, 1
    %s113 = scalar_select %p110, %s111, %s112
    %p116 = pneg %p110
    %p117 = scmp.eq.s32.totalorder %s9, 1
    %p118 = por %p116, %p117
    %p119 = scmp.ne.s32.totalorder %s111, %s114
    %p120 = scmp.eq.s32.totalorder %s9, 0
    %p121 = por %p119, %p120
    %p122 = scmp.ne.s32.totalorder %s111, %s114
    %p123 = scmp.eq.s32.totalorder %s14, 1
    %p124 = por %p122, %p123
    %p125 = scmp.ne.s32.totalorder %s114, %s115
    %p126 = scmp.eq.s32.totalorder %s14, 0
    %p127 = por %p125, %p126
    %p128 = scmp.ne.s32.totalorder %s114, %s115
    %p129 = scmp.eq.s32.totalorder %s15, 1
    %p130 = por %p128, %p129
    %p132 = scmp.ne.s32.totalorder %s115, %s131
    %p133 = scmp.eq.s32.totalorder %s15, 0
    %p134 = por %p132, %p133
    %p135 = scmp.le.s32.totalorder 1, %s9
    %p136 = scmp.lt.s32.totalorder %s9, 3
    %p137 = pnand %p135, %p136
    %p138 = pneg %p137
    // Predicated region
    $region9: #{_lambda_.6} parent=5 // pred_check
      _
    $region10: #{_lambda_.6} parent=5 // pred_check_branch
      %140 = sbr.rel (%p137) target = $region12
    $region11: #{_lambda_.6} parent=5 // pred_region
      %s141 = ssub.s32 %s9, 1
      // Predicated region
      $region13: #{_lambda_.6} parent=11 // pred_check
        %p142 = pneg %p73
      $region14: #{_lambda_.6} parent=11 // pred_check_branch
        %144 = sbr.rel (%p142) target = $region16
      $region15: #{_lambda_.6} parent=11 // pred_region
        %p145 = scmp.lt.s32.totalorder %s18, 0
        %s146 = scalar_select %p145, %s18, 0
        %s147 = smul.addr %s146, 4
        %s148 = scalar_lea.vmem %s1, %s147
      $region16: #{_lambda_.6} parent=11 // pred_fallthru
        _
      // Predicated region
      $region17: #{_lambda_.6} parent=11 // pred_check
        %p149 = pneg %p99
      $region18: #{_lambda_.6} parent=11 // pred_check_branch
        %151 = sbr.rel (%p149) target = $region20
      $region19: #{_lambda_.6} parent=11 // pred_region
        %p152 = scmp.lt.s32.totalorder %s18, 0
        %s153 = scalar_select %p152, %s18, 0
        %s154 = scalar_lea.vmem %s2, %s153
      $region20: #{_lambda_.6} parent=11 // pred_fallthru
        _
    $region12: #{_lambda_.6} parent=5 // pred_fallthru
      _
    %p155 = scmp.lt.s32.totalorder %s9, 2
    // Predicated region
    $region21: #{_lambda_.6} parent=5 // pred_check
      %p156 = pneg %p155
    $region22: #{_lambda_.6} parent=5 // pred_check_branch
      %158 = sbr.rel (%p156) target = $region24
    $region23: #{_lambda_.6} parent=5 // pred_region
      // Predicated region
      $region25: #{_lambda_.6} parent=23 // pred_check
        %p159 = pneg %p41
      $region26: #{_lambda_.6} parent=23 // pred_check_branch
        %161 = sbr.rel (%p159) target = $region28
      $region27: #{_lambda_.6} parent=23 // pred_region
        %s162 = smul.u32 8, %s17
        %p163 = scmp.lt.s32.totalorder %s162, 15
        %s164 = scalar_select %p163, %s162, 15
        %s165 = smul.addr %s164, 5
        %s166 = smul.addr %s165, 4
        %s167 = scalar_lea.vmem %s0, %s166
        %s168 = smul.u32 8, %s17
      $region28: #{_lambda_.6} parent=23 // pred_fallthru
        _
    $region24: #{_lambda_.6} parent=5 // pred_fallthru
      _
    %p169 = scmp.le.s32.totalorder 1, %s9
    %p170 = scmp.lt.s32.totalorder %s9, 3
    %p171 = pnand %p169, %p170
    %p172 = pneg %p171
    // Predicated region
    $region29: #{_lambda_.6} parent=5 // pred_check
      _
    $region30: #{_lambda_.6} parent=5 // pred_check_branch
      %174 = sbr.rel (%p171) target = $region32
    $region31: #{_lambda_.6} parent=5 // pred_region
      %s175 = ssub.s32 %s9, 1
      %s176 = smul.u32 8, %s19
      %p177 = scmp.lt.s32.totalorder %s176, 15
      %s178 = scalar_select %p177, %s176, 15
      %s179 = smul.addr %s178, 5
      %s180 = smul.addr %s179, 4
      %s181 = scalar_lea.vmem %s0, %s180
      %p182 = pneg %p47
      %p183 = pneg %p44
      %p184 = scmp.lt.s32.totalorder %s18, 0
      %s185 = scalar_select %p184, %s18, 0
      %s186 = smul.addr %s185, 4
      %s187 = scalar_lea.vmem %s1, %s186
      %p188 = pneg %p73
      %p189 = pneg %p70
      %p190 = scmp.lt.s32.totalorder %s18, 0
      %s191 = scalar_select %p190, %s18, 0
      %s192 = scalar_lea.vmem %s2, %s191
      %p193 = pneg %p99
      %p194 = pneg %p96
      %p195 = pneg %p127
      %p196 = pneg %p124
      %s197 = smul.u32 8, %s19
      %p198 = scmp.lt.s32.totalorder %s197, 15
      %s199 = scalar_select %p198, %s197, 15
      %p200 = scmp.lt.s32.totalorder %s18, 0
      %s201 = scalar_select %p200, %s18, 0
      %s202 = sadd.s32 %s201, %s199
      %s203 = smul.addr %s202, 4
      %s204 = scalar_lea.vmem %s3, %s203
      %s205 = smul.u32 8, %s19
      %p206 = scmp.lt.s32.totalorder %s205, 15
      %s207 = scalar_select %p206, %s205, 15
      %s208 = smul.addr %s207, 5
      %s209 = smul.addr %s208, 4
      %s210 = scalar_lea.vmem %s0, %s209
      %s211 = smul.u32 8, %s19
      %p212 = scmp.lt.s32.totalorder %s18, 0
      %s213 = scalar_select %p212, %s18, 0
      %s214 = smul.addr %s213, 4
      %s215 = scalar_lea.vmem %s1, %s214
      %p216 = scmp.lt.s32.totalorder %s18, 0
      %s217 = scalar_select %p216, %s18, 0
      %s218 = scalar_lea.vmem %s2, %s217
      %s219 = smul.u32 8, %s19
      %p220 = scmp.lt.s32.totalorder %s219, 15
      %s221 = scalar_select %p220, %s219, 15
      %p222 = scmp.lt.s32.totalorder %s18, 0
      %s223 = scalar_select %p222, %s18, 0
      %s224 = sadd.s32 %s223, %s221
      %s225 = smul.addr %s224, 4
      %s226 = scalar_lea.vmem %s3, %s225
      %s227 = smul.u32 8, %s19
      %v228 = vld [vmem:[%s210] sm:$0xff]
      %v229 = vld [vmem:[%s210 + $0x8] sm:$0xff]
      %v230 = vld [vmem:[%s210 + $0x10] sm:$0xf]
      %v231 = vld [vmem:[%s210 + $0x14] sm:$0xff]
      %v232 = vld [vmem:[%s210 + $0x1c] sm:$0xff]
      %v233 = vld [vmem:[%s210 + $0x24] sm:$0xf]
      %v234 = vld [vmem:[%s210 + $0x28] sm:$0xff]
      %v235 = vld [vmem:[%s210 + $0x30] sm:$0xff]
      %v236 = vld [vmem:[%s210 + $0x38] sm:$0xf]
      %v237 = vld [vmem:[%s210 + $0x3c] sm:$0xff]
      %v238 = vld [vmem:[%s210 + $0x44] sm:$0xff]
      %v239 = vld [vmem:[%s210 + $0x4c] sm:$0xf]
      %v240 = vld [vmem:[%s210 + $0x50] sm:$0xff]
      %v241 = vld [vmem:[%s210 + $0x58] sm:$0xff]
      %v242 = vld [vmem:[%s210 + $0x60] sm:$0xf]
      %v243 = vld [vmem:[%s210 + $0x64] sm:$0xff]
      %v244 = vld [vmem:[%s210 + $0x6c] sm:$0xff]
      %v245 = vld [vmem:[%s210 + $0x74] sm:$0xf]
      %v246 = vld [vmem:[%s210 + $0x78] sm:$0xff]
      %v247 = vld [vmem:[%s210 + $0x80] sm:$0xff]
      %v248 = vld [vmem:[%s210 + $0x88] sm:$0xf]
      %v249 = vld [vmem:[%s210 + $0x8c] sm:$0xff]
      %v250 = vld [vmem:[%s210 + $0x94] sm:$0xff]
      %v251 = vld [vmem:[%s210 + $0x9c] sm:$0xf]
      %v252 = vld [vmem:[%s215] sm:$0xf]
      %v253 = vld [vmem:[%s215 + $0x4] sm:$0xf]
      %v254 = vld [vmem:[%s215 + $0x8] sm:$0xf]
      %v255 = vld [vmem:[%s215 + $0xc] sm:$0xf]
      %v256 = vld [vmem:[%s215 + $0x10] sm:$0xf]
      %v257 = vld [vmem:[%s215 + $0x14] sm:$0xf]
      %v258 = vld [vmem:[%s215 + $0x18] sm:$0xf]
      %v259 = vld [vmem:[%s215 + $0x1c] sm:$0xf]
      %v260 = vld [vmem:[%s215 + $0x20] sm:$0xf]
      %v261 = vld [vmem:[%s215 + $0x24] sm:$0xf]
      %v262 = vld [vmem:[%s215 + $0x28] sm:$0xf]
      %v263 = vld [vmem:[%s215 + $0x2c] sm:$0xf]
      %v264 = vld [vmem:[%s215 + $0x30] sm:$0xf]
      %v265 = vld [vmem:[%s215 + $0x34] sm:$0xf]
      %v266 = vld [vmem:[%s215 + $0x38] sm:$0xf]
      %v267 = vld [vmem:[%s215 + $0x3c] sm:$0xf]
      %v268 = vld [vmem:[%s215 + $0x40] sm:$0xf]
      %v269 = vld [vmem:[%s215 + $0x44] sm:$0xf]
      %v270 = vld [vmem:[%s215 + $0x48] sm:$0xf]
      %v271 = vld [vmem:[%s215 + $0x4c] sm:$0xf]
      %v272 = vld [vmem:[%s215 + $0x50] sm:$0xf]
      %v273 = vld [vmem:[%s215 + $0x54] sm:$0xf]
      %v274 = vld [vmem:[%s215 + $0x58] sm:$0xf]
      %v275 = vld [vmem:[%s215 + $0x5c] sm:$0xf]
      %v276 = vld [vmem:[%s215 + $0x60] sm:$0xf]
      %v277 = vld [vmem:[%s215 + $0x64] sm:$0xf]
      %v278 = vld [vmem:[%s215 + $0x68] sm:$0xf]
      %v279 = vld [vmem:[%s215 + $0x6c] sm:$0xf]
      %v280 = vld [vmem:[%s215 + $0x70] sm:$0xf]
      %v281 = vld [vmem:[%s215 + $0x74] sm:$0xf]
      %v282 = vld [vmem:[%s215 + $0x78] sm:$0xf]
      %v283 = vld [vmem:[%s215 + $0x7c] sm:$0xf]
      %v284 = vld [vmem:[%s215 + $0x80] sm:$0xf]
      %v285 = vld [vmem:[%s215 + $0x84] sm:$0xf]
      %v286 = vld [vmem:[%s215 + $0x88] sm:$0xf]
      %v287 = vld [vmem:[%s215 + $0x8c] sm:$0xf]
      %v288 = vld [vmem:[%s215 + $0x90] sm:$0xf]
      %v289 = vld [vmem:[%s215 + $0x94] sm:$0xf]
      %v290 = vld [vmem:[%s215 + $0x98] sm:$0xf]
      %v291 = vld [vmem:[%s215 + $0x9c] sm:$0xf]
      %v292 = vld [vmem:[%s215 + $0xa0] sm:$0xf]
      %v293 = vld [vmem:[%s215 + $0xa4] sm:$0xf]
      %v294 = vld [vmem:[%s215 + $0xa8] sm:$0xf]
      %v295 = vld [vmem:[%s215 + $0xac] sm:$0xf]
      %v296 = vld [vmem:[%s215 + $0xb0] sm:$0xf]
      %v297 = vld [vmem:[%s215 + $0xb4] sm:$0xf]
      %v298 = vld [vmem:[%s215 + $0xb8] sm:$0xf]
      %v299 = vld [vmem:[%s215 + $0xbc] sm:$0xf]
      %v300 = vld [vmem:[%s215 + $0xc0] sm:$0xf]
      %v301 = vld [vmem:[%s215 + $0xc4] sm:$0xf]
      %v302 = vld [vmem:[%s215 + $0xc8] sm:$0xf]
      %v303 = vld [vmem:[%s215 + $0xcc] sm:$0xf]
      %v304 = vld [vmem:[%s215 + $0xd0] sm:$0xf]
      %v305 = vld [vmem:[%s215 + $0xd4] sm:$0xf]
      %v306 = vld [vmem:[%s215 + $0xd8] sm:$0xf]
      %v307 = vld [vmem:[%s215 + $0xdc] sm:$0xf]
      %v308 = vld [vmem:[%s215 + $0xe0] sm:$0xf]
      %v309 = vld [vmem:[%s215 + $0xe4] sm:$0xf]
      %v310 = vld [vmem:[%s215 + $0xe8] sm:$0xf]
      %v311 = vld [vmem:[%s215 + $0xec] sm:$0xf]
      %v312 = vld [vmem:[%s215 + $0xf0] sm:$0xf]
      %v313 = vld [vmem:[%s215 + $0xf4] sm:$0xf]
      %v314 = vld [vmem:[%s215 + $0xf8] sm:$0xf]
      %v315 = vld [vmem:[%s215 + $0xfc] sm:$0xf]
      %v316 = vld [vmem:[%s215 + $0x100] sm:$0xf]
      %v317 = vld [vmem:[%s215 + $0x104] sm:$0xf]
      %v318 = vld [vmem:[%s215 + $0x108] sm:$0xf]
      %v319 = vld [vmem:[%s215 + $0x10c] sm:$0xf]
      %v320 = vld [vmem:[%s215 + $0x110] sm:$0xf]
      %v321 = vld [vmem:[%s215 + $0x114] sm:$0xf]
      %v322 = vld [vmem:[%s215 + $0x118] sm:$0xf]
      %v323 = vld [vmem:[%s215 + $0x11c] sm:$0xf]
      %v324 = vld [vmem:[%s215 + $0x120] sm:$0xf]
      %v325 = vld [vmem:[%s215 + $0x124] sm:$0xf]
      %v326 = vld [vmem:[%s215 + $0x128] sm:$0xf]
      %v327 = vld [vmem:[%s215 + $0x12c] sm:$0xf]
      %v328 = vld [vmem:[%s215 + $0x130] sm:$0xf]
      %v329 = vld [vmem:[%s215 + $0x134] sm:$0xf]
      %v330 = vld [vmem:[%s215 + $0x138] sm:$0xf]
      %v331 = vld [vmem:[%s215 + $0x13c] sm:$0xf]
      %v332 = vld [vmem:[%s218] sm:$0x1]
      %v334 = vperm.slane %v332, 0
      %v360 = vunpack.c.l.b16 %v228
      %v361 = vunpack.c.h.b16 %v228
      %v362 = vunpack.c.l.b16 %v229
      %v363 = vunpack.c.h.b16 %v229
      %v364 = vunpack.c.l.b16 %v230
      %v365 = vunpack.c.l.b16 %v231
      %v366 = vunpack.c.h.b16 %v231
      %v367 = vunpack.c.l.b16 %v232
      %v368 = vunpack.c.h.b16 %v232
      %v369 = vunpack.c.l.b16 %v233
      %v370 = vunpack.c.l.b16 %v234
      %v371 = vunpack.c.h.b16 %v234
      %v372 = vunpack.c.l.b16 %v235
      %v373 = vunpack.c.h.b16 %v235
      %v374 = vunpack.c.l.b16 %v236
      %v375 = vunpack.c.l.b16 %v237
      %v376 = vunpack.c.h.b16 %v237
      %v377 = vunpack.c.l.b16 %v238
      %v378 = vunpack.c.h.b16 %v238
      %v379 = vunpack.c.l.b16 %v239
      %v380 = vunpack.c.l.b16 %v240
      %v381 = vunpack.c.h.b16 %v240
      %v382 = vunpack.c.l.b16 %v241
      %v383 = vunpack.c.h.b16 %v241
      %v384 = vunpack.c.l.b16 %v242
      %v385 = vunpack.c.l.b16 %v243
      %v386 = vunpack.c.h.b16 %v243
      %v387 = vunpack.c.l.b16 %v244
      %v388 = vunpack.c.h.b16 %v244
      %v389 = vunpack.c.l.b16 %v245
      %v390 = vunpack.c.l.b16 %v246
      %v391 = vunpack.c.h.b16 %v246
      %v392 = vunpack.c.l.b16 %v247
      %v393 = vunpack.c.h.b16 %v247
      %v394 = vunpack.c.l.b16 %v248
      %v395 = vunpack.c.l.b16 %v249
      %v396 = vunpack.c.h.b16 %v249
      %v397 = vunpack.c.l.b16 %v250
      %v398 = vunpack.c.h.b16 %v250
      %v399 = vunpack.c.l.b16 %v251
      %v400 = vpack.c.b16 %v365, %v360
      %v401 = vpack.c.b16 %v366, %v361
      %v402 = vpack.c.b16 %v367, %v362
      %v403 = vpack.c.b16 %v368, %v363
      %v404 = vpack.c.b16 %v369, %v364
      %v405 = vpack.c.b16 %v375, %v370
      %v406 = vpack.c.b16 %v376, %v371
      %v407 = vpack.c.b16 %v377, %v372
      %v408 = vpack.c.b16 %v378, %v373
      %v409 = vpack.c.b16 %v379, %v374
      %v410 = vpack.c.b16 %v385, %v380
      %v411 = vpack.c.b16 %v386, %v381
      %v412 = vpack.c.b16 %v387, %v382
      %v413 = vpack.c.b16 %v388, %v383
      %v414 = vpack.c.b16 %v389, %v384
      %v415 = vpack.c.b16 %v395, %v390
      %v416 = vpack.c.b16 %v396, %v391
      %v417 = vpack.c.b16 %v397, %v392
      %v418 = vpack.c.b16 %v398, %v393
      %v419 = vpack.c.b16 %v399, %v394
      %v520 = vunpack.c.l.b16 %v252
      %v521 = vunpack.c.l.b16 %v253
      %v522 = vunpack.c.l.b16 %v254
      %v523 = vunpack.c.l.b16 %v255
      %v524 = vunpack.c.l.b16 %v256
      %v525 = vunpack.c.l.b16 %v257
      %v526 = vunpack.c.l.b16 %v258
      %v527 = vunpack.c.l.b16 %v259
      %v528 = vunpack.c.l.b16 %v260
      %v529 = vunpack.c.l.b16 %v261
      %v530 = vunpack.c.l.b16 %v262
      %v531 = vunpack.c.l.b16 %v263
      %v532 = vunpack.c.l.b16 %v264
      %v533 = vunpack.c.l.b16 %v265
      %v534 = vunpack.c.l.b16 %v266
      %v535 = vunpack.c.l.b16 %v267
      %v536 = vunpack.c.l.b16 %v268
      %v537 = vunpack.c.l.b16 %v269
      %v538 = vunpack.c.l.b16 %v270
      %v539 = vunpack.c.l.b16 %v271
      %v540 = vunpack.c.l.b16 %v272
      %v541 = vunpack.c.l.b16 %v273
      %v542 = vunpack.c.l.b16 %v274
      %v543 = vunpack.c.l.b16 %v275
      %v544 = vunpack.c.l.b16 %v276
      %v545 = vunpack.c.l.b16 %v277
      %v546 = vunpack.c.l.b16 %v278
      %v547 = vunpack.c.l.b16 %v279
      %v548 = vunpack.c.l.b16 %v280
      %v549 = vunpack.c.l.b16 %v281
      %v550 = vunpack.c.l.b16 %v282
      %v551 = vunpack.c.l.b16 %v283
      %v552 = vunpack.c.l.b16 %v284
      %v553 = vunpack.c.l.b16 %v285
      %v554 = vunpack.c.l.b16 %v286
      %v555 = vunpack.c.l.b16 %v287
      %v556 = vunpack.c.l.b16 %v288
      %v557 = vunpack.c.l.b16 %v289
      %v558 = vunpack.c.l.b16 %v290
      %v559 = vunpack.c.l.b16 %v291
      %v560 = vunpack.c.l.b16 %v292
      %v561 = vunpack.c.l.b16 %v293
      %v562 = vunpack.c.l.b16 %v294
      %v563 = vunpack.c.l.b16 %v295
      %v564 = vunpack.c.l.b16 %v296
      %v565 = vunpack.c.l.b16 %v297
      %v566 = vunpack.c.l.b16 %v298
      %v567 = vunpack.c.l.b16 %v299
      %v568 = vunpack.c.l.b16 %v300
      %v569 = vunpack.c.l.b16 %v301
      %v570 = vunpack.c.l.b16 %v302
      %v571 = vunpack.c.l.b16 %v303
      %v572 = vunpack.c.l.b16 %v304
      %v573 = vunpack.c.l.b16 %v305
      %v574 = vunpack.c.l.b16 %v306
      %v575 = vunpack.c.l.b16 %v307
      %v576 = vunpack.c.l.b16 %v308
      %v577 = vunpack.c.l.b16 %v309
      %v578 = vunpack.c.l.b16 %v310
      %v579 = vunpack.c.l.b16 %v311
      %v580 = vunpack.c.l.b16 %v312
      %v581 = vunpack.c.l.b16 %v313
      %v582 = vunpack.c.l.b16 %v314
      %v583 = vunpack.c.l.b16 %v315
      %v584 = vunpack.c.l.b16 %v316
      %v585 = vunpack.c.l.b16 %v317
      %v586 = vunpack.c.l.b16 %v318
      %v587 = vunpack.c.l.b16 %v319
      %v588 = vunpack.c.l.b16 %v320
      %v589 = vunpack.c.l.b16 %v321
      %v590 = vunpack.c.l.b16 %v322
      %v591 = vunpack.c.l.b16 %v323
      %v592 = vunpack.c.l.b16 %v324
      %v593 = vunpack.c.l.b16 %v325
      %v594 = vunpack.c.l.b16 %v326
      %v595 = vunpack.c.l.b16 %v327
      %v596 = vunpack.c.l.b16 %v328
      %v597 = vunpack.c.l.b16 %v329
      %v598 = vunpack.c.l.b16 %v330
      %v599 = vunpack.c.l.b16 %v331
      %v600 = vpack.c.b16 %v521, %v520
      %v601 = vpack.c.b16 %v523, %v522
      %v602 = vpack.c.b16 %v525, %v524
      %v603 = vpack.c.b16 %v527, %v526
      %v604 = vpack.c.b16 %v529, %v528
      %v605 = vpack.c.b16 %v531, %v530
      %v606 = vpack.c.b16 %v533, %v532
      %v607 = vpack.c.b16 %v535, %v534
      %v608 = vpack.c.b16 %v537, %v536
      %v609 = vpack.c.b16 %v539, %v538
      %v610 = vpack.c.b16 %v541, %v540
      %v611 = vpack.c.b16 %v543, %v542
      %v612 = vpack.c.b16 %v545, %v544
      %v613 = vpack.c.b16 %v547, %v546
      %v614 = vpack.c.b16 %v549, %v548
      %v615 = vpack.c.b16 %v551, %v550
      %v616 = vpack.c.b16 %v553, %v552
      %v617 = vpack.c.b16 %v555, %v554
      %v618 = vpack.c.b16 %v557, %v556
      %v619 = vpack.c.b16 %v559, %v558
      %v620 = vpack.c.b16 %v561, %v560
      %v621 = vpack.c.b16 %v563, %v562
      %v622 = vpack.c.b16 %v565, %v564
      %v623 = vpack.c.b16 %v567, %v566
      %v624 = vpack.c.b16 %v569, %v568
      %v625 = vpack.c.b16 %v571, %v570
      %v626 = vpack.c.b16 %v573, %v572
      %v627 = vpack.c.b16 %v575, %v574
      %v628 = vpack.c.b16 %v577, %v576
      %v629 = vpack.c.b16 %v579, %v578
      %v630 = vpack.c.b16 %v581, %v580
      %v631 = vpack.c.b16 %v583, %v582
      %v632 = vpack.c.b16 %v585, %v584
      %v633 = vpack.c.b16 %v587, %v586
      %v634 = vpack.c.b16 %v589, %v588
      %v635 = vpack.c.b16 %v591, %v590
      %v636 = vpack.c.b16 %v593, %v592
      %v637 = vpack.c.b16 %v595, %v594
      %v638 = vpack.c.b16 %v597, %v596
      %v639 = vpack.c.b16 %v599, %v598
      %680 = vmatpush.bf16.msra.mxu0 %v607
      %681 = vmatpush.bf16.msra.mxu0 %v606
      %682 = vmatpush.bf16.msra.mxu0 %v605
      %683 = vmatpush.bf16.msra.mxu0 %v604
      %684 = vmatpush.bf16.msra.mxu0 %v603
      %685 = vmatpush.bf16.msra.mxu0 %v602
      %686 = vmatpush.bf16.msra.mxu0 %v601
      %687 = vmatpush.bf16.msra.mxu0 %v600
      %688 = vmatmul.bf16.gmra.mxu0 %v400
      %v689 = vpop.f32.mrf.mxu0
      %v690 = vadd.f32 %v334, %v689
      %v691 = vpop.f32.mrf.mxu0
      %v692 = vadd.f32 %v334, %v691
      %693 = vmatmul.bf16.gmra.mxu0 %v405
      %v694 = vpop.f32.mrf.mxu0
      %v695 = vadd.f32 %v334, %v694
      %v696 = vpop.f32.mrf.mxu0
      %v697 = vadd.f32 %v334, %v696
      %698 = vmatmul.bf16.gmra.mxu0 %v410
      %v699 = vpop.f32.mrf.mxu0
      %v700 = vadd.f32 %v334, %v699
      %v701 = vpop.f32.mrf.mxu0
      %v702 = vadd.f32 %v334, %v701
      %703 = vmatmul.bf16.gmra.mxu0 %v415
      %v704 = vpop.f32.mrf.mxu0
      %v705 = vadd.f32 %v334, %v704
      %v706 = vpop.f32.mrf.mxu0
      %v707 = vadd.f32 %v334, %v706
      %708 = vdwg.mxu0
      %709 = vmatpush.bf16.msra.mxu0 %v615
      %710 = vmatpush.bf16.msra.mxu0 %v614
      %711 = vmatpush.bf16.msra.mxu0 %v613
      %712 = vmatpush.bf16.msra.mxu0 %v612
      %713 = vmatpush.bf16.msra.mxu0 %v611
      %714 = vmatpush.bf16.msra.mxu0 %v610
      %715 = vmatpush.bf16.msra.mxu0 %v609
      %716 = vmatpush.bf16.msra.mxu0 %v608
      %717 = vmatmul.bf16.gmra.mxu0 %v401
      %v718 = vpop.f32.mrf.mxu0
      %v719 = vadd.f32 %v690, %v718
      %v720 = vpop.f32.mrf.mxu0
      %v721 = vadd.f32 %v692, %v720
      %722 = vmatmul.bf16.gmra.mxu0 %v406
      %v723 = vpop.f32.mrf.mxu0
      %v724 = vadd.f32 %v695, %v723
      %v725 = vpop.f32.mrf.mxu0
      %v726 = vadd.f32 %v697, %v725
      %727 = vmatmul.bf16.gmra.mxu0 %v411
      %v728 = vpop.f32.mrf.mxu0
      %v729 = vadd.f32 %v700, %v728
      %v730 = vpop.f32.mrf.mxu0
      %v731 = vadd.f32 %v702, %v730
      %732 = vmatmul.bf16.gmra.mxu0 %v416
      %v733 = vpop.f32.mrf.mxu0
      %v734 = vadd.f32 %v705, %v733
      %v735 = vpop.f32.mrf.mxu0
      %v736 = vadd.f32 %v707, %v735
      %737 = vdwg.mxu0
      %738 = vmatpush.bf16.msra.mxu0 %v623
      %739 = vmatpush.bf16.msra.mxu0 %v622
      %740 = vmatpush.bf16.msra.mxu0 %v621
      %741 = vmatpush.bf16.msra.mxu0 %v620
      %742 = vmatpush.bf16.msra.mxu0 %v619
      %743 = vmatpush.bf16.msra.mxu0 %v618
      %744 = vmatpush.bf16.msra.mxu0 %v617
      %745 = vmatpush.bf16.msra.mxu0 %v616
      %746 = vmatmul.bf16.gmra.mxu0 %v402
      %v747 = vpop.f32.mrf.mxu0
      %v748 = vadd.f32 %v719, %v747
      %v749 = vpop.f32.mrf.mxu0
      %v750 = vadd.f32 %v721, %v749
      %751 = vmatmul.bf16.gmra.mxu0 %v407
      %v752 = vpop.f32.mrf.mxu0
      %v753 = vadd.f32 %v724, %v752
      %v754 = vpop.f32.mrf.mxu0
      %v755 = vadd.f32 %v726, %v754
      %756 = vmatmul.bf16.gmra.mxu0 %v412
      %v757 = vpop.f32.mrf.mxu0
      %v758 = vadd.f32 %v729, %v757
      %v759 = vpop.f32.mrf.mxu0
      %v760 = vadd.f32 %v731, %v759
      %761 = vmatmul.bf16.gmra.mxu0 %v417
      %v762 = vpop.f32.mrf.mxu0
      %v763 = vadd.f32 %v734, %v762
      %v764 = vpop.f32.mrf.mxu0
      %v765 = vadd.f32 %v736, %v764
      %766 = vdwg.mxu0
      %767 = vmatpush.bf16.msra.mxu0 %v631
      %768 = vmatpush.bf16.msra.mxu0 %v630
      %769 = vmatpush.bf16.msra.mxu0 %v629
      %770 = vmatpush.bf16.msra.mxu0 %v628
      %771 = vmatpush.bf16.msra.mxu0 %v627
      %772 = vmatpush.bf16.msra.mxu0 %v626
      %773 = vmatpush.bf16.msra.mxu0 %v625
      %774 = vmatpush.bf16.msra.mxu0 %v624
      %775 = vmatmul.bf16.gmra.mxu0 %v403
      %v776 = vpop.f32.mrf.mxu0
      %v777 = vadd.f32 %v748, %v776
      %v778 = vpop.f32.mrf.mxu0
      %v779 = vadd.f32 %v750, %v778
      %780 = vmatmul.bf16.gmra.mxu0 %v408
      %v781 = vpop.f32.mrf.mxu0
      %v782 = vadd.f32 %v753, %v781
      %v783 = vpop.f32.mrf.mxu0
      %v784 = vadd.f32 %v755, %v783
      %785 = vmatmul.bf16.gmra.mxu0 %v413
      %v786 = vpop.f32.mrf.mxu0
      %v787 = vadd.f32 %v758, %v786
      %v788 = vpop.f32.mrf.mxu0
      %v789 = vadd.f32 %v760, %v788
      %790 = vmatmul.bf16.gmra.mxu0 %v418
      %v791 = vpop.f32.mrf.mxu0
      %v792 = vadd.f32 %v763, %v791
      %v793 = vpop.f32.mrf.mxu0
      %v794 = vadd.f32 %v765, %v793
      %795 = vdwg.mxu0
      %796 = vmatpush.bf16.msra.mxu0 %v639
      %797 = vmatpush.bf16.msra.mxu0 %v638
      %798 = vmatpush.bf16.msra.mxu0 %v637
      %799 = vmatpush.bf16.msra.mxu0 %v636
      %800 = vmatpush.bf16.msra.mxu0 %v635
      %801 = vmatpush.bf16.msra.mxu0 %v634
      %802 = vmatpush.bf16.msra.mxu0 %v633
      %803 = vmatpush.bf16.msra.mxu0 %v632
      %804 = vmatmul.bf16.gmra.mxu0 %v404
      %v805 = vpop.f32.mrf.mxu0
      %v806 = vadd.f32 %v777, %v805
      %v807 = vpop.f32.mrf.mxu0
      %v808 = vadd.f32 %v779, %v807
      %809 = vmatmul.bf16.gmra.mxu0 %v409
      %v810 = vpop.f32.mrf.mxu0
      %v811 = vadd.f32 %v782, %v810
      %v812 = vpop.f32.mrf.mxu0
      %v813 = vadd.f32 %v784, %v812
      %814 = vmatmul.bf16.gmra.mxu0 %v414
      %v815 = vpop.f32.mrf.mxu0
      %v816 = vadd.f32 %v787, %v815
      %v817 = vpop.f32.mrf.mxu0
      %v818 = vadd.f32 %v789, %v817
      %819 = vmatmul.bf16.gmra.mxu0 %v419
      %v820 = vpop.f32.mrf.mxu0
      %v821 = vadd.f32 %v792, %v820
      %v822 = vpop.f32.mrf.mxu0
      %v823 = vadd.f32 %v794, %v822
      %824 = vdwg.mxu0
      %v825 = vmax.f32 %v806, 0.0
      %v826 = vmax.f32 %v808, 0.0
      %v827 = vmax.f32 %v811, 0.0
      %v828 = vmax.f32 %v813, 0.0
      %v829 = vmax.f32 %v816, 0.0
      %v830 = vmax.f32 %v818, 0.0
      %v831 = vmax.f32 %v821, 0.0
      %v832 = vmax.f32 %v823, 0.0
      %v833 = vpack.c.bf16 %v825, %v825
      %v834 = vpack.c.bf16 %v826, %v826
      %v835 = vpack.c.bf16 %v827, %v827
      %v836 = vpack.c.bf16 %v828, %v828
      %v837 = vpack.c.bf16 %v829, %v829
      %v838 = vpack.c.bf16 %v830, %v830
      %v839 = vpack.c.bf16 %v831, %v831
      %v840 = vpack.c.bf16 %v832, %v832
      %vm841 = vcmask 519168
      %842 = vst.msk [vmem:[%s226] sm:$0xf] %vm841, %v833
      %843 = vst.msk [vmem:[%s226 + $0x4] sm:$0xf] %vm841, %v834
      %844 = vst.msk [vmem:[%s226 + $0x8] sm:$0xf] %vm841, %v835
      %845 = vst.msk [vmem:[%s226 + $0xc] sm:$0xf] %vm841, %v836
      %846 = vst.msk [vmem:[%s226 + $0x10] sm:$0xf] %vm841, %v837
      %847 = vst.msk [vmem:[%s226 + $0x14] sm:$0xf] %vm841, %v838
      %848 = vst.msk [vmem:[%s226 + $0x18] sm:$0xf] %vm841, %v839
      %849 = vst.msk [vmem:[%s226 + $0x1c] sm:$0xf] %vm841, %v840
      %s850 = smul.u32 8, %s19
      %p851 = scmp.lt.s32.totalorder %s850, 15
      %s852 = scalar_select %p851, %s850, 15
      %p853 = scmp.lt.s32.totalorder %s18, 0
      %s854 = scalar_select %p853, %s18, 0
      %s855 = sadd.s32 %s854, %s852
      %s856 = smul.addr %s855, 4
      %s857 = scalar_lea.vmem %s3, %s856
      // Predicated region
      $region33: #{_lambda_.6} parent=31 // pred_check
        %p858 = pneg %p124
      $region34: #{_lambda_.6} parent=31 // pred_check_branch
        %860 = sbr.rel (%p858) target = $region36
      $region35: #{_lambda_.6} parent=31 // pred_region
        %s861 = smul.u32 8, %s19
      $region36: #{_lambda_.6} parent=31 // pred_fallthru
        _
    $region32: #{_lambda_.6} parent=5 // pred_fallthru
      _
    %p862 = scmp.le.s32.totalorder 2, %s9
    // Predicated region
    $region37: #{_lambda_.6} parent=5 // pred_check
      %p863 = pneg %p862
    $region38: #{_lambda_.6} parent=5 // pred_check_branch
      %865 = sbr.rel (%p863) target = $region40
    $region39: #{_lambda_.6} parent=5 // pred_region
      %s866 = ssub.s32 %s9, 2
      // Predicated region
      $region41: #{_lambda_.6} parent=39 // pred_check
        %p867 = pneg %p130
      $region42: #{_lambda_.6} parent=39 // pred_check_branch
        %869 = sbr.rel (%p867) target = $region44
      $region43: #{_lambda_.6} parent=39 // pred_region
        %s870 = smul.u32 8, %s21
        %p871 = scmp.lt.s32.totalorder %s870, 15
        %s872 = scalar_select %p871, %s870, 15
        %p873 = scmp.lt.s32.totalorder %s20, 0
        %s874 = scalar_select %p873, %s20, 0
        %s875 = sadd.s32 %s874, %s872
        %s876 = smul.addr %s875, 4
        %s877 = scalar_lea.vmem %s3, %s876
      $region44: #{_lambda_.6} parent=39 // pred_fallthru
        _
    $region40: #{_lambda_.6} parent=5 // pred_fallthru
      _
  $region6: #{_lambda_.6} parent=0 // loop_footer
    %s13 = sadd.s32 1, %s9
  $region7: #{_lambda_.6} parent=0 // loop_footer_branch
    %8 = sbr.rel target = $region3
  $region8: #{_lambda_.6} parent=0 // loop_exit
    _

// kernel: _lambda_.7
$region0: #{_lambda_.7}
  #allocation0 [shape = 'u32[]', space=smem, size = 0x4, offset = 0x4, fixed_abs, tag = 'smem constant byte address 0x4 - core index']
  #allocation1 [shape = 'u32[72,128]{1,0:T(1,128)}', space=vmem, size = 0x9000, scoped, tag = 'internal scratch']
  %s0 = inlined_call_operand.vmem [shape: bf16[128,640], index: 0, kind: input, shape index: {}]
  %s1 = inlined_call_operand.vmem [shape: bf16[640,64], index: 1, kind: input, shape index: {}]
  %s2 = inlined_call_operand.hbm [shape: f32[1,64], index: 2, kind: input, shape index: {}]
  %s3 = inlined_call_operand.vmem [shape: bf16[128,64], index: 3, kind: input, shape index: {}]
  %s4 = inlined_call_operand.vmem [shape: bf16[128,64], index: 4, kind: output, shape index: {}]
  %s5 = sld [smem:[#allocation0]]
  $region53: #{_lambda_.7} parent=0
    _
  %s7 = ssub.s32 1, %s5
  %s8 = scalar_select 0, %s7, %s5
  $region1: #{_lambda_.7} parent=0
    #allocation2 [shape = 'u8[512]{0}', space=vmem, size = 0x400, scoped, tag = 'input window, operand 2, single buffered']
    #allocation3 [shape = 's32[2]{0}', space=sflag, size = 0x8, scoped, tag = 'scoped memory for _lambda_.7']
    %9 = vsyncpa [#allocation3], 0
    loop: start=0, step=1, limit=4
    $region2: #{_lambda_.7} parent=1 // loop_pre_header
      _
    $region3: #{_lambda_.7} parent=1 // loop_header
      %s11 = sphi 0, %s15
      %p12 = scmp.ge.s32.totalorder %s11, 4
      %s18 = sphi 0, %s30
      %s19 = sphi 0, %s26
      %s20 = sphi 0, %s18
      %s21 = sphi 0, %s19
      %s22 = sphi 0, %s20
      %s23 = sphi 0, %s21
      %s33 = sphi 0, %s35
      %s36 = sphi 0, %s33
      %s37 = sphi 0, %s36
      %s53 = sphi 0, %s37
      %s59 = sphi 0, %s61
      %s62 = sphi 0, %s59
      %s63 = sphi 0, %s62
      %s79 = sphi 0, %s63
      %s85 = sphi 0, %s87
      %s88 = sphi 0, %s85
      %s89 = sphi 0, %s88
      %s105 = sphi 0, %s89
      %s113 = sphi 0, %s115
      %s116 = sphi 0, %s113
      %s117 = sphi 0, %s116
      %s133 = sphi 0, %s117
      %s141 = sphi 0, %s143
      %s144 = sphi 0, %s141
      %s145 = sphi 0, %s144
      %s161 = sphi 0, %s145
    $region4: #{_lambda_.7} parent=1 // loop_header_branch
      %14 = sbr.rel (%p12) target = $region8
    $region5: #{_lambda_.7} parent=1 // loop_body
      %s16 = ssub.s32 %s11, 1
      %s17 = ssub.s32 %s11, 2
      %s24 = sadd.s32 1, %s19
      %p25 = scmp.ge.s32.totalorder %s24, 2
      %s26 = scalar_select %p25, 0, %s24
      %s27 = sadd.s32 1, %s18
      %s28 = scalar_select %p25, %s27, %s18
      %p29 = scmp.ge.s32.totalorder %s28, 1
      %s30 = scalar_select %p29, 0, %s28
      %s31 = ssub.s32 %s19, %s26
      %p32 = scmp.eq.s32.totalorder %s31, 0
      %s34 = sadd.s32 %s33, 1
      %s35 = scalar_select %p32, %s33, %s34
      %p38 = pneg %p32
      %p39 = scmp.eq.s32.totalorder %s11, 1
      %p40 = por %p38, %p39
      %p41 = scmp.ne.s32.totalorder %s33, %s36
      %p42 = scmp.eq.s32.totalorder %s11, 0
      %p43 = por %p41, %p42
      %p44 = scmp.ne.s32.totalorder %s33, %s36
      %p45 = scmp.eq.s32.totalorder %s16, 1
      %p46 = por %p44, %p45
      %p47 = scmp.ne.s32.totalorder %s36, %s37
      %p48 = scmp.eq.s32.totalorder %s16, 0
      %p49 = por %p47, %p48
      %p50 = scmp.ne.s32.totalorder %s36, %s37
      %p51 = scmp.eq.s32.totalorder %s17, 1
      %p52 = por %p50, %p51
      %p54 = scmp.ne.s32.totalorder %s37, %s53
      %p55 = scmp.eq.s32.totalorder %s17, 0
      %p56 = por %p54, %p55
      %s57 = ssub.s32 %s18, %s30
      %p58 = scmp.eq.s32.totalorder %s57, 0
      %s60 = sadd.s32 %s59, 1
      %s61 = scalar_select %p58, %s59, %s60
      %p64 = pneg %p58
      %p65 = scmp.eq.s32.totalorder %s11, 1
      %p66 = por %p64, %p65
      %p67 = scmp.ne.s32.totalorder %s59, %s62
      %p68 = scmp.eq.s32.totalorder %s11, 0
      %p69 = por %p67, %p68
      %p70 = scmp.ne.s32.totalorder %s59, %s62
      %p71 = scmp.eq.s32.totalorder %s16, 1
      %p72 = por %p70, %p71
      %p73 = scmp.ne.s32.totalorder %s62, %s63
      %p74 = scmp.eq.s32.totalorder %s16, 0
      %p75 = por %p73, %p74
      %p76 = scmp.ne.s32.totalorder %s62, %s63
      %p77 = scmp.eq.s32.totalorder %s17, 1
      %p78 = por %p76, %p77
      %p80 = scmp.ne.s32.totalorder %s63, %s79
      %p81 = scmp.eq.s32.totalorder %s17, 0
      %p82 = por %p80, %p81
      %s83 = ssub.s32 %s18, %s30
      %p84 = scmp.eq.s32.totalorder %s83, 0
      %s86 = sadd.s32 %s85, 1
      %s87 = scalar_select %p84, %s85, %s86
      %p90 = pneg %p84
      %p91 = scmp.eq.s32.totalorder %s11, 1
      %p92 = por %p90, %p91
      %p93 = scmp.ne.s32.totalorder %s85, %s88
      %p94 = scmp.eq.s32.totalorder %s11, 0
      %p95 = por %p93, %p94
      %p96 = scmp.ne.s32.totalorder %s85, %s88
      %p97 = scmp.eq.s32.totalorder %s16, 1
      %p98 = por %p96, %p97
      %p99 = scmp.ne.s32.totalorder %s88, %s89
      %p100 = scmp.eq.s32.totalorder %s16, 0
      %p101 = por %p99, %p100
      %p102 = scmp.ne.s32.totalorder %s88, %s89
      %p103 = scmp.eq.s32.totalorder %s17, 1
      %p104 = por %p102, %p103
      %p106 = scmp.ne.s32.totalorder %s89, %s105
      %p107 = scmp.eq.s32.totalorder %s17, 0
      %p108 = por %p106, %p107
      %s109 = ssub.s32 %s19, %s26
      %s110 = ssub.s32 %s18, %s30
      %s111 = sor.u32 %s109, %s110
      %p112 = scmp.eq.s32.totalorder %s111, 0
      %s114 = sadd.s32 %s113, 1
      %s115 = scalar_select %p112, %s113, %s114
      %p118 = pneg %p112
      %p119 = scmp.eq.s32.totalorder %s11, 1
      %p120 = por %p118, %p119
      %p121 = scmp.ne.s32.totalorder %s113, %s116
      %p122 = scmp.eq.s32.totalorder %s11, 0
      %p123 = por %p121, %p122
      %p124 = scmp.ne.s32.totalorder %s113, %s116
      %p125 = scmp.eq.s32.totalorder %s16, 1
      %p126 = por %p124, %p125
      %p127 = scmp.ne.s32.totalorder %s116, %s117
      %p128 = scmp.eq.s32.totalorder %s16, 0
      %p129 = por %p127, %p128
      %p130 = scmp.ne.s32.totalorder %s116, %s117
      %p131 = scmp.eq.s32.totalorder %s17, 1
      %p132 = por %p130, %p131
      %p134 = scmp.ne.s32.totalorder %s117, %s133
      %p135 = scmp.eq.s32.totalorder %s17, 0
      %p136 = por %p134, %p135
      %s137 = ssub.s32 %s19, %s26
      %s138 = ssub.s32 %s18, %s30
      %s139 = sor.u32 %s137, %s138
      %p140 = scmp.eq.s32.totalorder %s139, 0
      %s142 = sadd.s32 %s141, 1
      %s143 = scalar_select %p140, %s141, %s142
      %p146 = pneg %p140
      %p147 = scmp.eq.s32.totalorder %s11, 1
      %p148 = por %p146, %p147
      %p149 = scmp.ne.s32.totalorder %s141, %s144
      %p150 = scmp.eq.s32.totalorder %s11, 0
      %p151 = por %p149, %p150
      %p152 = scmp.ne.s32.totalorder %s141, %s144
      %p153 = scmp.eq.s32.totalorder %s16, 1
      %p154 = por %p152, %p153
      %p155 = scmp.ne.s32.totalorder %s144, %s145
      %p156 = scmp.eq.s32.totalorder %s16, 0
      %p157 = por %p155, %p156
      %p158 = scmp.ne.s32.totalorder %s144, %s145
      %p159 = scmp.eq.s32.totalorder %s17, 1
      %p160 = por %p158, %p159
      %p162 = scmp.ne.s32.totalorder %s145, %s161
      %p163 = scmp.eq.s32.totalorder %s17, 0
      %p164 = por %p162, %p163
      %p165 = scmp.le.s32.totalorder 1, %s11
      %p166 = scmp.lt.s32.totalorder %s11, 3
      %p167 = pnand %p165, %p166
      %p168 = pneg %p167
      // Predicated region
      $region9: #{_lambda_.7} parent=5 // pred_check
        _
      $region10: #{_lambda_.7} parent=5 // pred_check_branch
        %170 = sbr.rel (%p167) target = $region12
      $region11: #{_lambda_.7} parent=5 // pred_region
        %s171 = ssub.s32 %s11, 1
        // Predicated region
        $region13: #{_lambda_.7} parent=11 // pred_check
          %p172 = pneg %p75
        $region14: #{_lambda_.7} parent=11 // pred_check_branch
          %174 = sbr.rel (%p172) target = $region16
        $region15: #{_lambda_.7} parent=11 // pred_region
          %p175 = scmp.lt.s32.totalorder %s20, 0
          %s176 = scalar_select %p175, %s20, 0
          %s177 = smul.addr %s176, 4
          %s178 = scalar_lea.vmem %s1, %s177
        $region16: #{_lambda_.7} parent=11 // pred_fallthru
          _
        // Predicated region
        $region17: #{_lambda_.7} parent=11 // pred_check
          %p179 = pneg %p101
        $region18: #{_lambda_.7} parent=11 // pred_check_branch
          %181 = sbr.rel (%p179) target = $region20
        $region19: #{_lambda_.7} parent=11 // pred_region
          %183 = vsyncadd [#allocation3], 0
          %s184 = scalar_lea.hbm %s2, %s20
          %s186 = sshll.u32 %s184, 4
          %s187 = int_to_ptr.hbm [resolvable:$true] %s186
          %s188 = sshll.u32 [#allocation2], 4
          %s189 = int_to_ptr.vmem [resolvable:$true] %s188
          %191 = dma.hbm_to_vmem [thread:$0]  %s187, 16, %s189, [#allocation3]
        $region20: #{_lambda_.7} parent=11 // pred_fallthru
          _
      $region12: #{_lambda_.7} parent=5 // pred_fallthru
        _
      %p192 = scmp.lt.s32.totalorder %s11, 2
      // Predicated region
      $region21: #{_lambda_.7} parent=5 // pred_check
        %p193 = pneg %p192
      $region22: #{_lambda_.7} parent=5 // pred_check_branch
        %195 = sbr.rel (%p193) target = $region24
      $region23: #{_lambda_.7} parent=5 // pred_region
        // Predicated region
        $region25: #{_lambda_.7} parent=23 // pred_check
          %p196 = pneg %p43
        $region26: #{_lambda_.7} parent=23 // pred_check_branch
          %198 = sbr.rel (%p196) target = $region28
        $region27: #{_lambda_.7} parent=23 // pred_region
          %s199 = smul.u32 8, %s19
          %p200 = scmp.lt.s32.totalorder %s199, 15
          %s201 = scalar_select %p200, %s199, 15
          %s202 = smul.addr %s201, 5
          %s203 = smul.addr %s202, 4
          %s204 = scalar_lea.vmem %s0, %s203
          %s205 = smul.u32 8, %s19
        $region28: #{_lambda_.7} parent=23 // pred_fallthru
          _
        // Predicated region
        $region29: #{_lambda_.7} parent=23 // pred_check
          %p206 = pneg %p123
        $region30: #{_lambda_.7} parent=23 // pred_check_branch
          %208 = sbr.rel (%p206) target = $region32
        $region31: #{_lambda_.7} parent=23 // pred_region
          %s209 = smul.u32 8, %s19
          %p210 = scmp.lt.s32.totalorder %s209, 15
          %s211 = scalar_select %p210, %s209, 15
          %p212 = scmp.lt.s32.totalorder %s18, 0
          %s213 = scalar_select %p212, %s18, 0
          %s214 = sadd.s32 %s213, %s211
          %s215 = smul.addr %s214, 4
          %s216 = scalar_lea.vmem %s3, %s215
          %s217 = smul.u32 8, %s19
        $region32: #{_lambda_.7} parent=23 // pred_fallthru
          _
      $region24: #{_lambda_.7} parent=5 // pred_fallthru
        _
      %p218 = scmp.le.s32.totalorder 1, %s11
      %p219 = scmp.lt.s32.totalorder %s11, 3
      %p220 = pnand %p218, %p219
      %p221 = pneg %p220
      // Predicated region
      $region33: #{_lambda_.7} parent=5 // pred_check
        _
      $region34: #{_lambda_.7} parent=5 // pred_check_branch
        %223 = sbr.rel (%p220) target = $region36
      $region35: #{_lambda_.7} parent=5 // pred_region
        %s224 = ssub.s32 %s11, 1
        // Predicated region
        $region37: #{_lambda_.7} parent=35 // pred_check
          %p225 = pneg %p101
        $region38: #{_lambda_.7} parent=35 // pred_check_branch
          %227 = sbr.rel (%p225) target = $region40
        $region39: #{_lambda_.7} parent=35 // pred_region
          %229 = dma.done [#allocation3], 16
        $region40: #{_lambda_.7} parent=35 // pred_fallthru
          _
        %s230 = smul.u32 8, %s21
        %p231 = scmp.lt.s32.totalorder %s230, 15
        %s232 = scalar_select %p231, %s230, 15
        %s233 = smul.addr %s232, 5
        %s234 = smul.addr %s233, 4
        %s235 = scalar_lea.vmem %s0, %s234
        %p236 = pneg %p49
        %p237 = pneg %p46
        %p238 = scmp.lt.s32.totalorder %s20, 0
        %s239 = scalar_select %p238, %s20, 0
        %s240 = smul.addr %s239, 4
        %s241 = scalar_lea.vmem %s1, %s240
        %p242 = pneg %p75
        %p243 = pneg %p72
        %p244 = pneg %p101
        %p245 = pneg %p98
        %s246 = smul.u32 8, %s21
        %p247 = scmp.lt.s32.totalorder %s246, 15
        %s248 = scalar_select %p247, %s246, 15
        %p249 = scmp.lt.s32.totalorder %s20, 0
        %s250 = scalar_select %p249, %s20, 0
        %s251 = sadd.s32 %s250, %s248
        %s252 = smul.addr %s251, 4
        %s253 = scalar_lea.vmem %s3, %s252
        %p254 = pneg %p129
        %p255 = pneg %p126
        %p256 = pneg %p157
        %p257 = pneg %p154
        %s258 = smul.u32 8, %s21
        %p259 = scmp.lt.s32.totalorder %s258, 15
        %s260 = scalar_select %p259, %s258, 15
        %p261 = scmp.lt.s32.totalorder %s20, 0
        %s262 = scalar_select %p261, %s20, 0
        %s263 = sadd.s32 %s262, %s260
        %s264 = smul.addr %s263, 4
        %s265 = scalar_lea.vmem %s4, %s264
        %s266 = smul.u32 8, %s21
        %p267 = scmp.lt.s32.totalorder %s266, 15
        %s268 = scalar_select %p267, %s266, 15
        %s269 = smul.addr %s268, 5
        %s270 = smul.addr %s269, 4
        %s271 = scalar_lea.vmem %s0, %s270
        %s272 = smul.u32 8, %s21
        %p273 = scmp.lt.s32.totalorder %s20, 0
        %s274 = scalar_select %p273, %s20, 0
        %s275 = smul.addr %s274, 4
        %s276 = scalar_lea.vmem %s1, %s275
        %s277 = smul.u32 8, %s21
        %p278 = scmp.lt.s32.totalorder %s277, 15
        %s279 = scalar_select %p278, %s277, 15
        %p280 = scmp.lt.s32.totalorder %s20, 0
        %s281 = scalar_select %p280, %s20, 0
        %s282 = sadd.s32 %s281, %s279
        %s283 = smul.addr %s282, 4
        %s284 = scalar_lea.vmem %s3, %s283
        %s285 = smul.u32 8, %s21
        %s286 = smul.u32 8, %s21
        %p287 = scmp.lt.s32.totalorder %s286, 15
        %s288 = scalar_select %p287, %s286, 15
        %p289 = scmp.lt.s32.totalorder %s20, 0
        %s290 = scalar_select %p289, %s20, 0
        %s291 = sadd.s32 %s290, %s288
        %s292 = smul.addr %s291, 4
        %s293 = scalar_lea.vmem %s4, %s292
        %s294 = smul.u32 8, %s21
        %v295 = vld [vmem:[%s271] sm:$0xff]
        %v296 = vld [vmem:[%s271 + $0x8] sm:$0xff]
        %v297 = vld [vmem:[%s271 + $0x10] sm:$0xf]
        %v298 = vld [vmem:[%s271 + $0x14] sm:$0xff]
        %v299 = vld [vmem:[%s271 + $0x1c] sm:$0xff]
        %v300 = vld [vmem:[%s271 + $0x24] sm:$0xf]
        %v301 = vld [vmem:[%s271 + $0x28] sm:$0xff]
        %v302 = vld [vmem:[%s271 + $0x30] sm:$0xff]
        %v303 = vld [vmem:[%s271 + $0x38] sm:$0xf]
        %v304 = vld [vmem:[%s271 + $0x3c] sm:$0xff]
        %v305 = vld [vmem:[%s271 + $0x44] sm:$0xff]
        %v306 = vld [vmem:[%s271 + $0x4c] sm:$0xf]
        %v307 = vld [vmem:[%s271 + $0x50] sm:$0xff]
        %v308 = vld [vmem:[%s271 + $0x58] sm:$0xff]
        %v309 = vld [vmem:[%s271 + $0x60] sm:$0xf]
        %v310 = vld [vmem:[%s271 + $0x64] sm:$0xff]
        %v311 = vld [vmem:[%s271 + $0x6c] sm:$0xff]
        %v312 = vld [vmem:[%s271 + $0x74] sm:$0xf]
        %v313 = vld [vmem:[%s271 + $0x78] sm:$0xff]
        %v314 = vld [vmem:[%s271 + $0x80] sm:$0xff]
        %v315 = vld [vmem:[%s271 + $0x88] sm:$0xf]
        %v316 = vld [vmem:[%s271 + $0x8c] sm:$0xff]
        %v317 = vld [vmem:[%s271 + $0x94] sm:$0xff]
        %v318 = vld [vmem:[%s271 + $0x9c] sm:$0xf]
        %v319 = vld [vmem:[%s276] sm:$0xf]
        %v320 = vld [vmem:[%s276 + $0x4] sm:$0xf]
        %v321 = vld [vmem:[%s276 + $0x8] sm:$0xf]
        %v322 = vld [vmem:[%s276 + $0xc] sm:$0xf]
        %v323 = vld [vmem:[%s276 + $0x10] sm:$0xf]
        %v324 = vld [vmem:[%s276 + $0x14] sm:$0xf]
        %v325 = vld [vmem:[%s276 + $0x18] sm:$0xf]
        %v326 = vld [vmem:[%s276 + $0x1c] sm:$0xf]
        %v327 = vld [vmem:[%s276 + $0x20] sm:$0xf]
        %v328 = vld [vmem:[%s276 + $0x24] sm:$0xf]
        %v329 = vld [vmem:[%s276 + $0x28] sm:$0xf]
        %v330 = vld [vmem:[%s276 + $0x2c] sm:$0xf]
        %v331 = vld [vmem:[%s276 + $0x30] sm:$0xf]
        %v332 = vld [vmem:[%s276 + $0x34] sm:$0xf]
        %v333 = vld [vmem:[%s276 + $0x38] sm:$0xf]
        %v334 = vld [vmem:[%s276 + $0x3c] sm:$0xf]
        %v335 = vld [vmem:[%s276 + $0x40] sm:$0xf]
        %v336 = vld [vmem:[%s276 + $0x44] sm:$0xf]
        %v337 = vld [vmem:[%s276 + $0x48] sm:$0xf]
        %v338 = vld [vmem:[%s276 + $0x4c] sm:$0xf]
        %v339 = vld [vmem:[%s276 + $0x50] sm:$0xf]
        %v340 = vld [vmem:[%s276 + $0x54] sm:$0xf]
        %v341 = vld [vmem:[%s276 + $0x58] sm:$0xf]
        %v342 = vld [vmem:[%s276 + $0x5c] sm:$0xf]
        %v343 = vld [vmem:[%s276 + $0x60] sm:$0xf]
        %v344 = vld [vmem:[%s276 + $0x64] sm:$0xf]
        %v345 = vld [vmem:[%s276 + $0x68] sm:$0xf]
        %v346 = vld [vmem:[%s276 + $0x6c] sm:$0xf]
        %v347 = vld [vmem:[%s276 + $0x70] sm:$0xf]
        %v348 = vld [vmem:[%s276 + $0x74] sm:$0xf]
        %v349 = vld [vmem:[%s276 + $0x78] sm:$0xf]
        %v350 = vld [vmem:[%s276 + $0x7c] sm:$0xf]
        %v351 = vld [vmem:[%s276 + $0x80] sm:$0xf]
        %v352 = vld [vmem:[%s276 + $0x84] sm:$0xf]
        %v353 = vld [vmem:[%s276 + $0x88] sm:$0xf]
        %v354 = vld [vmem:[%s276 + $0x8c] sm:$0xf]
        %v355 = vld [vmem:[%s276 + $0x90] sm:$0xf]
        %v356 = vld [vmem:[%s276 + $0x94] sm:$0xf]
        %v357 = vld [vmem:[%s276 + $0x98] sm:$0xf]
        %v358 = vld [vmem:[%s276 + $0x9c] sm:$0xf]
        %v359 = vld [vmem:[%s276 + $0xa0] sm:$0xf]
        %v360 = vld [vmem:[%s276 + $0xa4] sm:$0xf]
        %v361 = vld [vmem:[%s276 + $0xa8] sm:$0xf]
        %v362 = vld [vmem:[%s276 + $0xac] sm:$0xf]
        %v363 = vld [vmem:[%s276 + $0xb0] sm:$0xf]
        %v364 = vld [vmem:[%s276 + $0xb4] sm:$0xf]
        %v365 = vld [vmem:[%s276 + $0xb8] sm:$0xf]
        %v366 = vld [vmem:[%s276 + $0xbc] sm:$0xf]
        %v367 = vld [vmem:[%s276 + $0xc0] sm:$0xf]
        %v368 = vld [vmem:[%s276 + $0xc4] sm:$0xf]
        %v369 = vld [vmem:[%s276 + $0xc8] sm:$0xf]
        %v370 = vld [vmem:[%s276 + $0xcc] sm:$0xf]
        %v371 = vld [vmem:[%s276 + $0xd0] sm:$0xf]
        %v372 = vld [vmem:[%s276 + $0xd4] sm:$0xf]
        %v373 = vld [vmem:[%s276 + $0xd8] sm:$0xf]
        %v374 = vld [vmem:[%s276 + $0xdc] sm:$0xf]
        %v375 = vld [vmem:[%s276 + $0xe0] sm:$0xf]
        %v376 = vld [vmem:[%s276 + $0xe4] sm:$0xf]
        %v377 = vld [vmem:[%s276 + $0xe8] sm:$0xf]
        %v378 = vld [vmem:[%s276 + $0xec] sm:$0xf]
        %v379 = vld [vmem:[%s276 + $0xf0] sm:$0xf]
        %v380 = vld [vmem:[%s276 + $0xf4] sm:$0xf]
        %v381 = vld [vmem:[%s276 + $0xf8] sm:$0xf]
        %v382 = vld [vmem:[%s276 + $0xfc] sm:$0xf]
        %v383 = vld [vmem:[%s276 + $0x100] sm:$0xf]
        %v384 = vld [vmem:[%s276 + $0x104] sm:$0xf]
        %v385 = vld [vmem:[%s276 + $0x108] sm:$0xf]
        %v386 = vld [vmem:[%s276 + $0x10c] sm:$0xf]
        %v387 = vld [vmem:[%s276 + $0x110] sm:$0xf]
        %v388 = vld [vmem:[%s276 + $0x114] sm:$0xf]
        %v389 = vld [vmem:[%s276 + $0x118] sm:$0xf]
        %v390 = vld [vmem:[%s276 + $0x11c] sm:$0xf]
        %v391 = vld [vmem:[%s276 + $0x120] sm:$0xf]
        %v392 = vld [vmem:[%s276 + $0x124] sm:$0xf]
        %v393 = vld [vmem:[%s276 + $0x128] sm:$0xf]
        %v394 = vld [vmem:[%s276 + $0x12c] sm:$0xf]
        %v395 = vld [vmem:[%s276 + $0x130] sm:$0xf]
        %v396 = vld [vmem:[%s276 + $0x134] sm:$0xf]
        %v397 = vld [vmem:[%s276 + $0x138] sm:$0xf]
        %v398 = vld [vmem:[%s276 + $0x13c] sm:$0xf]
        %v399 = vld [vmem:[#allocation2] sm:$0x1]
        %v401 = vperm.slane %v399, 0
        %v427 = vunpack.c.l.b16 %v295
        %v428 = vunpack.c.h.b16 %v295
        %v429 = vunpack.c.l.b16 %v296
        %v430 = vunpack.c.h.b16 %v296
        %v431 = vunpack.c.l.b16 %v297
        %v432 = vunpack.c.l.b16 %v298
        %v433 = vunpack.c.h.b16 %v298
        %v434 = vunpack.c.l.b16 %v299
        %v435 = vunpack.c.h.b16 %v299
        %v436 = vunpack.c.l.b16 %v300
        %v437 = vunpack.c.l.b16 %v301
        %v438 = vunpack.c.h.b16 %v301
        %v439 = vunpack.c.l.b16 %v302
        %v440 = vunpack.c.h.b16 %v302
        %v441 = vunpack.c.l.b16 %v303
        %v442 = vunpack.c.l.b16 %v304
        %v443 = vunpack.c.h.b16 %v304
        %v444 = vunpack.c.l.b16 %v305
        %v445 = vunpack.c.h.b16 %v305
        %v446 = vunpack.c.l.b16 %v306
        %v447 = vunpack.c.l.b16 %v307
        %v448 = vunpack.c.h.b16 %v307
        %v449 = vunpack.c.l.b16 %v308
        %v450 = vunpack.c.h.b16 %v308
        %v451 = vunpack.c.l.b16 %v309
        %v452 = vunpack.c.l.b16 %v310
        %v453 = vunpack.c.h.b16 %v310
        %v454 = vunpack.c.l.b16 %v311
        %v455 = vunpack.c.h.b16 %v311
        %v456 = vunpack.c.l.b16 %v312
        %v457 = vunpack.c.l.b16 %v313
        %v458 = vunpack.c.h.b16 %v313
        %v459 = vunpack.c.l.b16 %v314
        %v460 = vunpack.c.h.b16 %v314
        %v461 = vunpack.c.l.b16 %v315
        %v462 = vunpack.c.l.b16 %v316
        %v463 = vunpack.c.h.b16 %v316
        %v464 = vunpack.c.l.b16 %v317
        %v465 = vunpack.c.h.b16 %v317
        %v466 = vunpack.c.l.b16 %v318
        %v467 = vpack.c.b16 %v432, %v427
        %v468 = vpack.c.b16 %v433, %v428
        %v469 = vpack.c.b16 %v434, %v429
        %v470 = vpack.c.b16 %v435, %v430
        %v471 = vpack.c.b16 %v436, %v431
        %v472 = vpack.c.b16 %v442, %v437
        %v473 = vpack.c.b16 %v443, %v438
        %v474 = vpack.c.b16 %v444, %v439
        %v475 = vpack.c.b16 %v445, %v440
        %v476 = vpack.c.b16 %v446, %v441
        %v477 = vpack.c.b16 %v452, %v447
        %v478 = vpack.c.b16 %v453, %v448
        %v479 = vpack.c.b16 %v454, %v449
        %v480 = vpack.c.b16 %v455, %v450
        %v481 = vpack.c.b16 %v456, %v451
        %v482 = vpack.c.b16 %v462, %v457
        %v483 = vpack.c.b16 %v463, %v458
        %v484 = vpack.c.b16 %v464, %v459
        %v485 = vpack.c.b16 %v465, %v460
        %v486 = vpack.c.b16 %v466, %v461
        %v587 = vunpack.c.l.b16 %v319
        %v588 = vunpack.c.l.b16 %v320
        %v589 = vunpack.c.l.b16 %v321
        %v590 = vunpack.c.l.b16 %v322
        %v591 = vunpack.c.l.b16 %v323
        %v592 = vunpack.c.l.b16 %v324
        %v593 = vunpack.c.l.b16 %v325
        %v594 = vunpack.c.l.b16 %v326
        %v595 = vunpack.c.l.b16 %v327
        %v596 = vunpack.c.l.b16 %v328
        %v597 = vunpack.c.l.b16 %v329
        %v598 = vunpack.c.l.b16 %v330
        %v599 = vunpack.c.l.b16 %v331
        %v600 = vunpack.c.l.b16 %v332
        %v601 = vunpack.c.l.b16 %v333
        %v602 = vunpack.c.l.b16 %v334
        %v603 = vunpack.c.l.b16 %v335
        %v604 = vunpack.c.l.b16 %v336
        %v605 = vunpack.c.l.b16 %v337
        %v606 = vunpack.c.l.b16 %v338
        %v607 = vunpack.c.l.b16 %v339
        %v608 = vunpack.c.l.b16 %v340
        %v609 = vunpack.c.l.b16 %v341
        %v610 = vunpack.c.l.b16 %v342
        %v611 = vunpack.c.l.b16 %v343
        %v612 = vunpack.c.l.b16 %v344
        %v613 = vunpack.c.l.b16 %v345
        %v614 = vunpack.c.l.b16 %v346
        %v615 = vunpack.c.l.b16 %v347
        %v616 = vunpack.c.l.b16 %v348
        %v617 = vunpack.c.l.b16 %v349
        %v618 = vunpack.c.l.b16 %v350
        %v619 = vunpack.c.l.b16 %v351
        %v620 = vunpack.c.l.b16 %v352
        %v621 = vunpack.c.l.b16 %v353
        %v622 = vunpack.c.l.b16 %v354
        %v623 = vunpack.c.l.b16 %v355
        %v624 = vunpack.c.l.b16 %v356
        %v625 = vunpack.c.l.b16 %v357
        %v626 = vunpack.c.l.b16 %v358
        %v627 = vunpack.c.l.b16 %v359
        %v628 = vunpack.c.l.b16 %v360
        %v629 = vunpack.c.l.b16 %v361
        %v630 = vunpack.c.l.b16 %v362
        %v631 = vunpack.c.l.b16 %v363
        %v632 = vunpack.c.l.b16 %v364
        %v633 = vunpack.c.l.b16 %v365
        %v634 = vunpack.c.l.b16 %v366
        %v635 = vunpack.c.l.b16 %v367
        %v636 = vunpack.c.l.b16 %v368
        %v637 = vunpack.c.l.b16 %v369
        %v638 = vunpack.c.l.b16 %v370
        %v639 = vunpack.c.l.b16 %v371
        %v640 = vunpack.c.l.b16 %v372
        %v641 = vunpack.c.l.b16 %v373
        %v642 = vunpack.c.l.b16 %v374
        %v643 = vunpack.c.l.b16 %v375
        %v644 = vunpack.c.l.b16 %v376
        %v645 = vunpack.c.l.b16 %v377
        %v646 = vunpack.c.l.b16 %v378
        %v647 = vunpack.c.l.b16 %v379
        %v648 = vunpack.c.l.b16 %v380
        %v649 = vunpack.c.l.b16 %v381
        %v650 = vunpack.c.l.b16 %v382
        %v651 = vunpack.c.l.b16 %v383
        %v652 = vunpack.c.l.b16 %v384
        %v653 = vunpack.c.l.b16 %v385
        %v654 = vunpack.c.l.b16 %v386
        %v655 = vunpack.c.l.b16 %v387
        %v656 = vunpack.c.l.b16 %v388
        %v657 = vunpack.c.l.b16 %v389
        %v658 = vunpack.c.l.b16 %v390
        %v659 = vunpack.c.l.b16 %v391
        %v660 = vunpack.c.l.b16 %v392
        %v661 = vunpack.c.l.b16 %v393
        %v662 = vunpack.c.l.b16 %v394
        %v663 = vunpack.c.l.b16 %v395
        %v664 = vunpack.c.l.b16 %v396
        %v665 = vunpack.c.l.b16 %v397
        %v666 = vunpack.c.l.b16 %v398
        %v667 = vpack.c.b16 %v588, %v587
        %v668 = vpack.c.b16 %v590, %v589
        %v669 = vpack.c.b16 %v592, %v591
        %v670 = vpack.c.b16 %v594, %v593
        %v671 = vpack.c.b16 %v596, %v595
        %v672 = vpack.c.b16 %v598, %v597
        %v673 = vpack.c.b16 %v600, %v599
        %v674 = vpack.c.b16 %v602, %v601
        %v675 = vpack.c.b16 %v604, %v603
        %v676 = vpack.c.b16 %v606, %v605
        %v677 = vpack.c.b16 %v608, %v607
        %v678 = vpack.c.b16 %v610, %v609
        %v679 = vpack.c.b16 %v612, %v611
        %v680 = vpack.c.b16 %v614, %v613
        %v681 = vpack.c.b16 %v616, %v615
        %v682 = vpack.c.b16 %v618, %v617
        %v683 = vpack.c.b16 %v620, %v619
        %v684 = vpack.c.b16 %v622, %v621
        %v685 = vpack.c.b16 %v624, %v623
        %v686 = vpack.c.b16 %v626, %v625
        %v687 = vpack.c.b16 %v628, %v627
        %v688 = vpack.c.b16 %v630, %v629
        %v689 = vpack.c.b16 %v632, %v631
        %v690 = vpack.c.b16 %v634, %v633
        %v691 = vpack.c.b16 %v636, %v635
        %v692 = vpack.c.b16 %v638, %v637
        %v693 = vpack.c.b16 %v640, %v639
        %v694 = vpack.c.b16 %v642, %v641
        %v695 = vpack.c.b16 %v644, %v643
        %v696 = vpack.c.b16 %v646, %v645
        %v697 = vpack.c.b16 %v648, %v647
        %v698 = vpack.c.b16 %v650, %v649
        %v699 = vpack.c.b16 %v652, %v651
        %v700 = vpack.c.b16 %v654, %v653
        %v701 = vpack.c.b16 %v656, %v655
        %v702 = vpack.c.b16 %v658, %v657
        %v703 = vpack.c.b16 %v660, %v659
        %v704 = vpack.c.b16 %v662, %v661
        %v705 = vpack.c.b16 %v664, %v663
        %v706 = vpack.c.b16 %v666, %v665
        %747 = vmatpush.bf16.msra.mxu0 %v674
        %748 = vmatpush.bf16.msra.mxu0 %v673
        %749 = vmatpush.bf16.msra.mxu0 %v672
        %750 = vmatpush.bf16.msra.mxu0 %v671
        %751 = vmatpush.bf16.msra.mxu0 %v670
        %752 = vmatpush.bf16.msra.mxu0 %v669
        %753 = vmatpush.bf16.msra.mxu0 %v668
        %754 = vmatpush.bf16.msra.mxu0 %v667
        %755 = vmatmul.bf16.gmra.mxu0 %v467
        %v756 = vpop.f32.mrf.mxu0
        %v757 = vadd.f32 %v401, %v756
        %v758 = vpop.f32.mrf.mxu0
        %v759 = vadd.f32 %v401, %v758
        %760 = vmatmul.bf16.gmra.mxu0 %v472
        %v761 = vpop.f32.mrf.mxu0
        %v762 = vadd.f32 %v401, %v761
        %v763 = vpop.f32.mrf.mxu0
        %v764 = vadd.f32 %v401, %v763
        %765 = vmatmul.bf16.gmra.mxu0 %v477
        %v766 = vpop.f32.mrf.mxu0
        %v767 = vadd.f32 %v401, %v766
        %v768 = vpop.f32.mrf.mxu0
        %v769 = vadd.f32 %v401, %v768
        %770 = vmatmul.bf16.gmra.mxu0 %v482
        %v771 = vpop.f32.mrf.mxu0
        %v772 = vadd.f32 %v401, %v771
        %v773 = vpop.f32.mrf.mxu0
        %v774 = vadd.f32 %v401, %v773
        %775 = vdwg.mxu0
        %776 = vmatpush.bf16.msra.mxu0 %v682
        %777 = vmatpush.bf16.msra.mxu0 %v681
        %778 = vmatpush.bf16.msra.mxu0 %v680
        %779 = vmatpush.bf16.msra.mxu0 %v679
        %780 = vmatpush.bf16.msra.mxu0 %v678
        %781 = vmatpush.bf16.msra.mxu0 %v677
        %782 = vmatpush.bf16.msra.mxu0 %v676
        %783 = vmatpush.bf16.msra.mxu0 %v675
        %784 = vmatmul.bf16.gmra.mxu0 %v468
        %v785 = vpop.f32.mrf.mxu0
        %v786 = vadd.f32 %v757, %v785
        %v787 = vpop.f32.mrf.mxu0
        %v788 = vadd.f32 %v759, %v787
        %789 = vmatmul.bf16.gmra.mxu0 %v473
        %v790 = vpop.f32.mrf.mxu0
        %v791 = vadd.f32 %v762, %v790
        %v792 = vpop.f32.mrf.mxu0
        %v793 = vadd.f32 %v764, %v792
        %794 = vmatmul.bf16.gmra.mxu0 %v478
        %v795 = vpop.f32.mrf.mxu0
        %v796 = vadd.f32 %v767, %v795
        %v797 = vpop.f32.mrf.mxu0
        %v798 = vadd.f32 %v769, %v797
        %799 = vmatmul.bf16.gmra.mxu0 %v483
        %v800 = vpop.f32.mrf.mxu0
        %v801 = vadd.f32 %v772, %v800
        %v802 = vpop.f32.mrf.mxu0
        %v803 = vadd.f32 %v774, %v802
        %804 = vdwg.mxu0
        %805 = vmatpush.bf16.msra.mxu0 %v690
        %806 = vmatpush.bf16.msra.mxu0 %v689
        %807 = vmatpush.bf16.msra.mxu0 %v688
        %808 = vmatpush.bf16.msra.mxu0 %v687
        %809 = vmatpush.bf16.msra.mxu0 %v686
        %810 = vmatpush.bf16.msra.mxu0 %v685
        %811 = vmatpush.bf16.msra.mxu0 %v684
        %812 = vmatpush.bf16.msra.mxu0 %v683
        %813 = vmatmul.bf16.gmra.mxu0 %v469
        %v814 = vpop.f32.mrf.mxu0
        %v815 = vadd.f32 %v786, %v814
        %v816 = vpop.f32.mrf.mxu0
        %v817 = vadd.f32 %v788, %v816
        %818 = vmatmul.bf16.gmra.mxu0 %v474
        %v819 = vpop.f32.mrf.mxu0
        %v820 = vadd.f32 %v791, %v819
        %v821 = vpop.f32.mrf.mxu0
        %v822 = vadd.f32 %v793, %v821
        %823 = vmatmul.bf16.gmra.mxu0 %v479
        %v824 = vpop.f32.mrf.mxu0
        %v825 = vadd.f32 %v796, %v824
        %v826 = vpop.f32.mrf.mxu0
        %v827 = vadd.f32 %v798, %v826
        %828 = vmatmul.bf16.gmra.mxu0 %v484
        %v829 = vpop.f32.mrf.mxu0
        %v830 = vadd.f32 %v801, %v829
        %v831 = vpop.f32.mrf.mxu0
        %v832 = vadd.f32 %v803, %v831
        %833 = vdwg.mxu0
        %834 = vmatpush.bf16.msra.mxu0 %v698
        %835 = vmatpush.bf16.msra.mxu0 %v697
        %836 = vmatpush.bf16.msra.mxu0 %v696
        %837 = vmatpush.bf16.msra.mxu0 %v695
        %838 = vmatpush.bf16.msra.mxu0 %v694
        %839 = vmatpush.bf16.msra.mxu0 %v693
        %840 = vmatpush.bf16.msra.mxu0 %v692
        %841 = vmatpush.bf16.msra.mxu0 %v691
        %842 = vmatmul.bf16.gmra.mxu0 %v470
        %v843 = vpop.f32.mrf.mxu0
        %v844 = vadd.f32 %v815, %v843
        %v845 = vpop.f32.mrf.mxu0
        %v846 = vadd.f32 %v817, %v845
        %847 = vmatmul.bf16.gmra.mxu0 %v475
        %v848 = vpop.f32.mrf.mxu0
        %v849 = vadd.f32 %v820, %v848
        %v850 = vpop.f32.mrf.mxu0
        %v851 = vadd.f32 %v822, %v850
        %852 = vmatmul.bf16.gmra.mxu0 %v480
        %v853 = vpop.f32.mrf.mxu0
        %v854 = vadd.f32 %v825, %v853
        %v855 = vpop.f32.mrf.mxu0
        %v856 = vadd.f32 %v827, %v855
        %857 = vmatmul.bf16.gmra.mxu0 %v485
        %v858 = vpop.f32.mrf.mxu0
        %v859 = vadd.f32 %v830, %v858
        %v860 = vpop.f32.mrf.mxu0
        %v861 = vadd.f32 %v832, %v860
        %862 = vdwg.mxu0
        %863 = vmatpush.bf16.msra.mxu0 %v706
        %864 = vmatpush.bf16.msra.mxu0 %v705
        %865 = vmatpush.bf16.msra.mxu0 %v704
        %866 = vmatpush.bf16.msra.mxu0 %v703
        %867 = vmatpush.bf16.msra.mxu0 %v702
        %868 = vmatpush.bf16.msra.mxu0 %v701
        %869 = vmatpush.bf16.msra.mxu0 %v700
        %870 = vmatpush.bf16.msra.mxu0 %v699
        %871 = vmatmul.bf16.gmra.mxu0 %v471
        %v872 = vpop.f32.mrf.mxu0
        %v873 = vadd.f32 %v844, %v872
        %v874 = vpop.f32.mrf.mxu0
        %v875 = vadd.f32 %v846, %v874
        %876 = vmatmul.bf16.gmra.mxu0 %v476
        %v877 = vpop.f32.mrf.mxu0
        %v878 = vadd.f32 %v849, %v877
        %v879 = vpop.f32.mrf.mxu0
        %v880 = vadd.f32 %v851, %v879
        %881 = vmatmul.bf16.gmra.mxu0 %v481
        %v882 = vpop.f32.mrf.mxu0
        %v883 = vadd.f32 %v854, %v882
        %v884 = vpop.f32.mrf.mxu0
        %v885 = vadd.f32 %v856, %v884
        %886 = vmatmul.bf16.gmra.mxu0 %v486
        %v887 = vpop.f32.mrf.mxu0
        %v888 = vadd.f32 %v859, %v887
        %v889 = vpop.f32.mrf.mxu0
        %v890 = vadd.f32 %v861, %v889
        %891 = vdwg.mxu0
        %v892 = vld [vmem:[%s284] sm:$0xf]
        %v893 = vld [vmem:[%s284 + $0x4] sm:$0xf]
        %v894 = vld [vmem:[%s284 + $0x8] sm:$0xf]
        %v895 = vld [vmem:[%s284 + $0xc] sm:$0xf]
        %v896 = vld [vmem:[%s284 + $0x10] sm:$0xf]
        %v897 = vld [vmem:[%s284 + $0x14] sm:$0xf]
        %v898 = vld [vmem:[%s284 + $0x18] sm:$0xf]
        %v899 = vld [vmem:[%s284 + $0x1c] sm:$0xf]
        %v900 = vunpack.c.l.bf16 %v892
        %v901 = vunpack.c.l.bf16 %v893
        %v902 = vunpack.c.l.bf16 %v894
        %v903 = vunpack.c.l.bf16 %v895
        %v904 = vunpack.c.l.bf16 %v896
        %v905 = vunpack.c.l.bf16 %v897
        %v906 = vunpack.c.l.bf16 %v898
        %v907 = vunpack.c.l.bf16 %v899
        %v908 = vadd.f32 %v873, %v900
        %v909 = vadd.f32 %v875, %v901
        %v910 = vadd.f32 %v878, %v902
        %v911 = vadd.f32 %v880, %v903
        %v912 = vadd.f32 %v883, %v904
        %v913 = vadd.f32 %v885, %v905
        %v914 = vadd.f32 %v888, %v906
        %v915 = vadd.f32 %v890, %v907
        %v916 = vmax.f32 %v908, 0.0
        %v917 = vmax.f32 %v909, 0.0
        %v918 = vmax.f32 %v910, 0.0
        %v919 = vmax.f32 %v911, 0.0
        %v920 = vmax.f32 %v912, 0.0
        %v921 = vmax.f32 %v913, 0.0
        %v922 = vmax.f32 %v914, 0.0
        %v923 = vmax.f32 %v915, 0.0
        %v924 = vpack.c.bf16 %v916, %v916
        %v925 = vpack.c.bf16 %v917, %v917
        %v926 = vpack.c.bf16 %v918, %v918
        %v927 = vpack.c.bf16 %v919, %v919
        %v928 = vpack.c.bf16 %v920, %v920
        %v929 = vpack.c.bf16 %v921, %v921
        %v930 = vpack.c.bf16 %v922, %v922
        %v931 = vpack.c.bf16 %v923, %v923
        %vm932 = vcmask 519168
        %933 = vst.msk [vmem:[%s293] sm:$0xf] %vm932, %v924
        %934 = vst.msk [vmem:[%s293 + $0x4] sm:$0xf] %vm932, %v925
        %935 = vst.msk [vmem:[%s293 + $0x8] sm:$0xf] %vm932, %v926
        %936 = vst.msk [vmem:[%s293 + $0xc] sm:$0xf] %vm932, %v927
        %937 = vst.msk [vmem:[%s293 + $0x10] sm:$0xf] %vm932, %v928
        %938 = vst.msk [vmem:[%s293 + $0x14] sm:$0xf] %vm932, %v929
        %939 = vst.msk [vmem:[%s293 + $0x18] sm:$0xf] %vm932, %v930
        %940 = vst.msk [vmem:[%s293 + $0x1c] sm:$0xf] %vm932, %v931
        %s941 = smul.u32 8, %s21
        %p942 = scmp.lt.s32.totalorder %s941, 15
        %s943 = scalar_select %p942, %s941, 15
        %p944 = scmp.lt.s32.totalorder %s20, 0
        %s945 = scalar_select %p944, %s20, 0
        %s946 = sadd.s32 %s945, %s943
        %s947 = smul.addr %s946, 4
        %s948 = scalar_lea.vmem %s4, %s947
        // Predicated region
        $region41: #{_lambda_.7} parent=35 // pred_check
          %p949 = pneg %p154
        $region42: #{_lambda_.7} parent=35 // pred_check_branch
          %951 = sbr.rel (%p949) target = $region44
        $region43: #{_lambda_.7} parent=35 // pred_region
          %s952 = smul.u32 8, %s21
        $region44: #{_lambda_.7} parent=35 // pred_fallthru
          _
      $region36: #{_lambda_.7} parent=5 // pred_fallthru
        _
      %p953 = scmp.le.s32.totalorder 2, %s11
      // Predicated region
      $region45: #{_lambda_.7} parent=5 // pred_check
        %p954 = pneg %p953
      $region46: #{_lambda_.7} parent=5 // pred_check_branch
        %956 = sbr.rel (%p954) target = $region48
      $region47: #{_lambda_.7} parent=5 // pred_region
        %s957 = ssub.s32 %s11, 2
        // Predicated region
        $region49: #{_lambda_.7} parent=47 // pred_check
          %p958 = pneg %p160
        $region50: #{_lambda_.7} parent=47 // pred_check_branch
          %960 = sbr.rel (%p958) target = $region52
        $region51: #{_lambda_.7} parent=47 // pred_region
          %s961 = smul.u32 8, %s23
          %p962 = scmp.lt.s32.totalorder %s961, 15
          %s963 = scalar_select %p962, %s961, 15
          %p964 = scmp.lt.s32.totalorder %s22, 0
          %s965 = scalar_select %p964, %s22, 0
          %s966 = sadd.s32 %s965, %s963
          %s967 = smul.addr %s966, 4
          %s968 = scalar_lea.vmem %s4, %s967
        $region52: #{_lambda_.7} parent=47 // pred_fallthru
          _
      $region48: #{_lambda_.7} parent=5 // pred_fallthru
        _
    $region6: #{_lambda_.7} parent=1 // loop_footer
      %s15 = sadd.s32 1, %s11
    $region7: #{_lambda_.7} parent=1 // loop_footer_branch
      %10 = sbr.rel target = $region3
    $region8: #{_lambda_.7} parent=1 // loop_exit
      _
    %969 = vsyncpa [#allocation3], 1
    %s970 = scalar_lea.sflag [#allocation3], 1
    %971 = vsyncpa %s970, 1

// kernel: _lambda_.8
$region0: #{_lambda_.8}
  #allocation0 [shape = 'u32[]', space=smem, size = 0x4, offset = 0x4, fixed_abs, tag = 'smem constant byte address 0x4 - core index']
  #allocation1 [shape = 'u32[72,128]{1,0:T(1,128)}', space=vmem, size = 0x9000, scoped, tag = 'internal scratch']
  %s0 = inlined_call_operand.vmem [shape: bf16[128,640], index: 0, kind: input, shape index: {}]
  %s1 = inlined_call_operand.vmem [shape: bf16[640,64], index: 1, kind: input, shape index: {}]
  %s2 = inlined_call_operand.hbm [shape: f32[1,64], index: 2, kind: input, shape index: {}]
  %s3 = inlined_call_operand.vmem [shape: bf16[128,64], index: 3, kind: output, shape index: {}]
  %s4 = sld [smem:[#allocation0]]
  $region49: #{_lambda_.8} parent=0
    _
  %s6 = ssub.s32 1, %s4
  %s7 = scalar_select 0, %s6, %s4
  $region1: #{_lambda_.8} parent=0
    #allocation2 [shape = 'u8[512]{0}', space=vmem, size = 0x400, scoped, tag = 'input window, operand 2, single buffered']
    #allocation3 [shape = 's32[2]{0}', space=sflag, size = 0x8, scoped, tag = 'scoped memory for _lambda_.8']
    %8 = vsyncpa [#allocation3], 0
    loop: start=0, step=1, limit=4
    $region2: #{_lambda_.8} parent=1 // loop_pre_header
      _
    $region3: #{_lambda_.8} parent=1 // loop_header
      %s10 = sphi 0, %s14
      %p11 = scmp.ge.s32.totalorder %s10, 4
      %s17 = sphi 0, %s29
      %s18 = sphi 0, %s25
      %s19 = sphi 0, %s17
      %s20 = sphi 0, %s18
      %s21 = sphi 0, %s19
      %s22 = sphi 0, %s20
      %s32 = sphi 0, %s34
      %s35 = sphi 0, %s32
      %s36 = sphi 0, %s35
      %s52 = sphi 0, %s36
      %s58 = sphi 0, %s60
      %s61 = sphi 0, %s58
      %s62 = sphi 0, %s61
      %s78 = sphi 0, %s62
      %s84 = sphi 0, %s86
      %s87 = sphi 0, %s84
      %s88 = sphi 0, %s87
      %s104 = sphi 0, %s88
      %s112 = sphi 0, %s114
      %s115 = sphi 0, %s112
      %s116 = sphi 0, %s115
      %s132 = sphi 0, %s116
    $region4: #{_lambda_.8} parent=1 // loop_header_branch
      %13 = sbr.rel (%p11) target = $region8
    $region5: #{_lambda_.8} parent=1 // loop_body
      %s15 = ssub.s32 %s10, 1
      %s16 = ssub.s32 %s10, 2
      %s23 = sadd.s32 1, %s18
      %p24 = scmp.ge.s32.totalorder %s23, 2
      %s25 = scalar_select %p24, 0, %s23
      %s26 = sadd.s32 1, %s17
      %s27 = scalar_select %p24, %s26, %s17
      %p28 = scmp.ge.s32.totalorder %s27, 1
      %s29 = scalar_select %p28, 0, %s27
      %s30 = ssub.s32 %s18, %s25
      %p31 = scmp.eq.s32.totalorder %s30, 0
      %s33 = sadd.s32 %s32, 1
      %s34 = scalar_select %p31, %s32, %s33
      %p37 = pneg %p31
      %p38 = scmp.eq.s32.totalorder %s10, 1
      %p39 = por %p37, %p38
      %p40 = scmp.ne.s32.totalorder %s32, %s35
      %p41 = scmp.eq.s32.totalorder %s10, 0
      %p42 = por %p40, %p41
      %p43 = scmp.ne.s32.totalorder %s32, %s35
      %p44 = scmp.eq.s32.totalorder %s15, 1
      %p45 = por %p43, %p44
      %p46 = scmp.ne.s32.totalorder %s35, %s36
      %p47 = scmp.eq.s32.totalorder %s15, 0
      %p48 = por %p46, %p47
      %p49 = scmp.ne.s32.totalorder %s35, %s36
      %p50 = scmp.eq.s32.totalorder %s16, 1
      %p51 = por %p49, %p50
      %p53 = scmp.ne.s32.totalorder %s36, %s52
      %p54 = scmp.eq.s32.totalorder %s16, 0
      %p55 = por %p53, %p54
      %s56 = ssub.s32 %s17, %s29
      %p57 = scmp.eq.s32.totalorder %s56, 0
      %s59 = sadd.s32 %s58, 1
      %s60 = scalar_select %p57, %s58, %s59
      %p63 = pneg %p57
      %p64 = scmp.eq.s32.totalorder %s10, 1
      %p65 = por %p63, %p64
      %p66 = scmp.ne.s32.totalorder %s58, %s61
      %p67 = scmp.eq.s32.totalorder %s10, 0
      %p68 = por %p66, %p67
      %p69 = scmp.ne.s32.totalorder %s58, %s61
      %p70 = scmp.eq.s32.totalorder %s15, 1
      %p71 = por %p69, %p70
      %p72 = scmp.ne.s32.totalorder %s61, %s62
      %p73 = scmp.eq.s32.totalorder %s15, 0
      %p74 = por %p72, %p73
      %p75 = scmp.ne.s32.totalorder %s61, %s62
      %p76 = scmp.eq.s32.totalorder %s16, 1
      %p77 = por %p75, %p76
      %p79 = scmp.ne.s32.totalorder %s62, %s78
      %p80 = scmp.eq.s32.totalorder %s16, 0
      %p81 = por %p79, %p80
      %s82 = ssub.s32 %s17, %s29
      %p83 = scmp.eq.s32.totalorder %s82, 0
      %s85 = sadd.s32 %s84, 1
      %s86 = scalar_select %p83, %s84, %s85
      %p89 = pneg %p83
      %p90 = scmp.eq.s32.totalorder %s10, 1
      %p91 = por %p89, %p90
      %p92 = scmp.ne.s32.totalorder %s84, %s87
      %p93 = scmp.eq.s32.totalorder %s10, 0
      %p94 = por %p92, %p93
      %p95 = scmp.ne.s32.totalorder %s84, %s87
      %p96 = scmp.eq.s32.totalorder %s15, 1
      %p97 = por %p95, %p96
      %p98 = scmp.ne.s32.totalorder %s87, %s88
      %p99 = scmp.eq.s32.totalorder %s15, 0
      %p100 = por %p98, %p99
      %p101 = scmp.ne.s32.totalorder %s87, %s88
      %p102 = scmp.eq.s32.totalorder %s16, 1
      %p103 = por %p101, %p102
      %p105 = scmp.ne.s32.totalorder %s88, %s104
      %p106 = scmp.eq.s32.totalorder %s16, 0
      %p107 = por %p105, %p106
      %s108 = ssub.s32 %s18, %s25
      %s109 = ssub.s32 %s17, %s29
      %s110 = sor.u32 %s108, %s109
      %p111 = scmp.eq.s32.totalorder %s110, 0
      %s113 = sadd.s32 %s112, 1
      %s114 = scalar_select %p111, %s112, %s113
      %p117 = pneg %p111
      %p118 = scmp.eq.s32.totalorder %s10, 1
      %p119 = por %p117, %p118
      %p120 = scmp.ne.s32.totalorder %s112, %s115
      %p121 = scmp.eq.s32.totalorder %s10, 0
      %p122 = por %p120, %p121
      %p123 = scmp.ne.s32.totalorder %s112, %s115
      %p124 = scmp.eq.s32.totalorder %s15, 1
      %p125 = por %p123, %p124
      %p126 = scmp.ne.s32.totalorder %s115, %s116
      %p127 = scmp.eq.s32.totalorder %s15, 0
      %p128 = por %p126, %p127
      %p129 = scmp.ne.s32.totalorder %s115, %s116
      %p130 = scmp.eq.s32.totalorder %s16, 1
      %p131 = por %p129, %p130
      %p133 = scmp.ne.s32.totalorder %s116, %s132
      %p134 = scmp.eq.s32.totalorder %s16, 0
      %p135 = por %p133, %p134
      %p136 = scmp.le.s32.totalorder 1, %s10
      %p137 = scmp.lt.s32.totalorder %s10, 3
      %p138 = pnand %p136, %p137
      %p139 = pneg %p138
      // Predicated region
      $region9: #{_lambda_.8} parent=5 // pred_check
        _
      $region10: #{_lambda_.8} parent=5 // pred_check_branch
        %141 = sbr.rel (%p138) target = $region12
      $region11: #{_lambda_.8} parent=5 // pred_region
        %s142 = ssub.s32 %s10, 1
        // Predicated region
        $region13: #{_lambda_.8} parent=11 // pred_check
          %p143 = pneg %p74
        $region14: #{_lambda_.8} parent=11 // pred_check_branch
          %145 = sbr.rel (%p143) target = $region16
        $region15: #{_lambda_.8} parent=11 // pred_region
          %p146 = scmp.lt.s32.totalorder %s19, 0
          %s147 = scalar_select %p146, %s19, 0
          %s148 = smul.addr %s147, 4
          %s149 = scalar_lea.vmem %s1, %s148
        $region16: #{_lambda_.8} parent=11 // pred_fallthru
          _
        // Predicated region
        $region17: #{_lambda_.8} parent=11 // pred_check
          %p150 = pneg %p100
        $region18: #{_lambda_.8} parent=11 // pred_check_branch
          %152 = sbr.rel (%p150) target = $region20
        $region19: #{_lambda_.8} parent=11 // pred_region
          %154 = vsyncadd [#allocation3], 0
          %s155 = scalar_lea.hbm %s2, %s19
          %s157 = sshll.u32 %s155, 4
          %s158 = int_to_ptr.hbm [resolvable:$true] %s157
          %s159 = sshll.u32 [#allocation2], 4
          %s160 = int_to_ptr.vmem [resolvable:$true] %s159
          %162 = dma.hbm_to_vmem [thread:$0]  %s158, 16, %s160, [#allocation3]
        $region20: #{_lambda_.8} parent=11 // pred_fallthru
          _
      $region12: #{_lambda_.8} parent=5 // pred_fallthru
        _
      %p163 = scmp.lt.s32.totalorder %s10, 2
      // Predicated region
      $region21: #{_lambda_.8} parent=5 // pred_check
        %p164 = pneg %p163
      $region22: #{_lambda_.8} parent=5 // pred_check_branch
        %166 = sbr.rel (%p164) target = $region24
      $region23: #{_lambda_.8} parent=5 // pred_region
        // Predicated region
        $region25: #{_lambda_.8} parent=23 // pred_check
          %p167 = pneg %p42
        $region26: #{_lambda_.8} parent=23 // pred_check_branch
          %169 = sbr.rel (%p167) target = $region28
        $region27: #{_lambda_.8} parent=23 // pred_region
          %s170 = smul.u32 8, %s18
          %p171 = scmp.lt.s32.totalorder %s170, 15
          %s172 = scalar_select %p171, %s170, 15
          %s173 = smul.addr %s172, 5
          %s174 = smul.addr %s173, 4
          %s175 = scalar_lea.vmem %s0, %s174
          %s176 = smul.u32 8, %s18
        $region28: #{_lambda_.8} parent=23 // pred_fallthru
          _
      $region24: #{_lambda_.8} parent=5 // pred_fallthru
        _
      %p177 = scmp.le.s32.totalorder 1, %s10
      %p178 = scmp.lt.s32.totalorder %s10, 3
      %p179 = pnand %p177, %p178
      %p180 = pneg %p179
      // Predicated region
      $region29: #{_lambda_.8} parent=5 // pred_check
        _
      $region30: #{_lambda_.8} parent=5 // pred_check_branch
        %182 = sbr.rel (%p179) target = $region32
      $region31: #{_lambda_.8} parent=5 // pred_region
        %s183 = ssub.s32 %s10, 1
        // Predicated region
        $region33: #{_lambda_.8} parent=31 // pred_check
          %p184 = pneg %p100
        $region34: #{_lambda_.8} parent=31 // pred_check_branch
          %186 = sbr.rel (%p184) target = $region36
        $region35: #{_lambda_.8} parent=31 // pred_region
          %188 = dma.done [#allocation3], 16
        $region36: #{_lambda_.8} parent=31 // pred_fallthru
          _
        %s189 = smul.u32 8, %s20
        %p190 = scmp.lt.s32.totalorder %s189, 15
        %s191 = scalar_select %p190, %s189, 15
        %s192 = smul.addr %s191, 5
        %s193 = smul.addr %s192, 4
        %s194 = scalar_lea.vmem %s0, %s193
        %p195 = pneg %p48
        %p196 = pneg %p45
        %p197 = scmp.lt.s32.totalorder %s19, 0
        %s198 = scalar_select %p197, %s19, 0
        %s199 = smul.addr %s198, 4
        %s200 = scalar_lea.vmem %s1, %s199
        %p201 = pneg %p74
        %p202 = pneg %p71
        %p203 = pneg %p100
        %p204 = pneg %p97
        %p205 = pneg %p128
        %p206 = pneg %p125
        %s207 = smul.u32 8, %s20
        %p208 = scmp.lt.s32.totalorder %s207, 15
        %s209 = scalar_select %p208, %s207, 15
        %p210 = scmp.lt.s32.totalorder %s19, 0
        %s211 = scalar_select %p210, %s19, 0
        %s212 = sadd.s32 %s211, %s209
        %s213 = smul.addr %s212, 4
        %s214 = scalar_lea.vmem %s3, %s213
        %s215 = smul.u32 8, %s20
        %p216 = scmp.lt.s32.totalorder %s215, 15
        %s217 = scalar_select %p216, %s215, 15
        %s218 = smul.addr %s217, 5
        %s219 = smul.addr %s218, 4
        %s220 = scalar_lea.vmem %s0, %s219
        %s221 = smul.u32 8, %s20
        %p222 = scmp.lt.s32.totalorder %s19, 0
        %s223 = scalar_select %p222, %s19, 0
        %s224 = smul.addr %s223, 4
        %s225 = scalar_lea.vmem %s1, %s224
        %s226 = smul.u32 8, %s20
        %p227 = scmp.lt.s32.totalorder %s226, 15
        %s228 = scalar_select %p227, %s226, 15
        %p229 = scmp.lt.s32.totalorder %s19, 0
        %s230 = scalar_select %p229, %s19, 0
        %s231 = sadd.s32 %s230, %s228
        %s232 = smul.addr %s231, 4
        %s233 = scalar_lea.vmem %s3, %s232
        %s234 = smul.u32 8, %s20
        %v235 = vld [vmem:[%s220] sm:$0xff]
        %v236 = vld [vmem:[%s220 + $0x8] sm:$0xff]
        %v237 = vld [vmem:[%s220 + $0x10] sm:$0xf]
        %v238 = vld [vmem:[%s220 + $0x14] sm:$0xff]
        %v239 = vld [vmem:[%s220 + $0x1c] sm:$0xff]
        %v240 = vld [vmem:[%s220 + $0x24] sm:$0xf]
        %v241 = vld [vmem:[%s220 + $0x28] sm:$0xff]
        %v242 = vld [vmem:[%s220 + $0x30] sm:$0xff]
        %v243 = vld [vmem:[%s220 + $0x38] sm:$0xf]
        %v244 = vld [vmem:[%s220 + $0x3c] sm:$0xff]
        %v245 = vld [vmem:[%s220 + $0x44] sm:$0xff]
        %v246 = vld [vmem:[%s220 + $0x4c] sm:$0xf]
        %v247 = vld [vmem:[%s220 + $0x50] sm:$0xff]
        %v248 = vld [vmem:[%s220 + $0x58] sm:$0xff]
        %v249 = vld [vmem:[%s220 + $0x60] sm:$0xf]
        %v250 = vld [vmem:[%s220 + $0x64] sm:$0xff]
        %v251 = vld [vmem:[%s220 + $0x6c] sm:$0xff]
        %v252 = vld [vmem:[%s220 + $0x74] sm:$0xf]
        %v253 = vld [vmem:[%s220 + $0x78] sm:$0xff]
        %v254 = vld [vmem:[%s220 + $0x80] sm:$0xff]
        %v255 = vld [vmem:[%s220 + $0x88] sm:$0xf]
        %v256 = vld [vmem:[%s220 + $0x8c] sm:$0xff]
        %v257 = vld [vmem:[%s220 + $0x94] sm:$0xff]
        %v258 = vld [vmem:[%s220 + $0x9c] sm:$0xf]
        %v259 = vld [vmem:[%s225] sm:$0xf]
        %v260 = vld [vmem:[%s225 + $0x4] sm:$0xf]
        %v261 = vld [vmem:[%s225 + $0x8] sm:$0xf]
        %v262 = vld [vmem:[%s225 + $0xc] sm:$0xf]
        %v263 = vld [vmem:[%s225 + $0x10] sm:$0xf]
        %v264 = vld [vmem:[%s225 + $0x14] sm:$0xf]
        %v265 = vld [vmem:[%s225 + $0x18] sm:$0xf]
        %v266 = vld [vmem:[%s225 + $0x1c] sm:$0xf]
        %v267 = vld [vmem:[%s225 + $0x20] sm:$0xf]
        %v268 = vld [vmem:[%s225 + $0x24] sm:$0xf]
        %v269 = vld [vmem:[%s225 + $0x28] sm:$0xf]
        %v270 = vld [vmem:[%s225 + $0x2c] sm:$0xf]
        %v271 = vld [vmem:[%s225 + $0x30] sm:$0xf]
        %v272 = vld [vmem:[%s225 + $0x34] sm:$0xf]
        %v273 = vld [vmem:[%s225 + $0x38] sm:$0xf]
        %v274 = vld [vmem:[%s225 + $0x3c] sm:$0xf]
        %v275 = vld [vmem:[%s225 + $0x40] sm:$0xf]
        %v276 = vld [vmem:[%s225 + $0x44] sm:$0xf]
        %v277 = vld [vmem:[%s225 + $0x48] sm:$0xf]
        %v278 = vld [vmem:[%s225 + $0x4c] sm:$0xf]
        %v279 = vld [vmem:[%s225 + $0x50] sm:$0xf]
        %v280 = vld [vmem:[%s225 + $0x54] sm:$0xf]
        %v281 = vld [vmem:[%s225 + $0x58] sm:$0xf]
        %v282 = vld [vmem:[%s225 + $0x5c] sm:$0xf]
        %v283 = vld [vmem:[%s225 + $0x60] sm:$0xf]
        %v284 = vld [vmem:[%s225 + $0x64] sm:$0xf]
        %v285 = vld [vmem:[%s225 + $0x68] sm:$0xf]
        %v286 = vld [vmem:[%s225 + $0x6c] sm:$0xf]
        %v287 = vld [vmem:[%s225 + $0x70] sm:$0xf]
        %v288 = vld [vmem:[%s225 + $0x74] sm:$0xf]
        %v289 = vld [vmem:[%s225 + $0x78] sm:$0xf]
        %v290 = vld [vmem:[%s225 + $0x7c] sm:$0xf]
        %v291 = vld [vmem:[%s225 + $0x80] sm:$0xf]
        %v292 = vld [vmem:[%s225 + $0x84] sm:$0xf]
        %v293 = vld [vmem:[%s225 + $0x88] sm:$0xf]
        %v294 = vld [vmem:[%s225 + $0x8c] sm:$0xf]
        %v295 = vld [vmem:[%s225 + $0x90] sm:$0xf]
        %v296 = vld [vmem:[%s225 + $0x94] sm:$0xf]
        %v297 = vld [vmem:[%s225 + $0x98] sm:$0xf]
        %v298 = vld [vmem:[%s225 + $0x9c] sm:$0xf]
        %v299 = vld [vmem:[%s225 + $0xa0] sm:$0xf]
        %v300 = vld [vmem:[%s225 + $0xa4] sm:$0xf]
        %v301 = vld [vmem:[%s225 + $0xa8] sm:$0xf]
        %v302 = vld [vmem:[%s225 + $0xac] sm:$0xf]
        %v303 = vld [vmem:[%s225 + $0xb0] sm:$0xf]
        %v304 = vld [vmem:[%s225 + $0xb4] sm:$0xf]
        %v305 = vld [vmem:[%s225 + $0xb8] sm:$0xf]
        %v306 = vld [vmem:[%s225 + $0xbc] sm:$0xf]
        %v307 = vld [vmem:[%s225 + $0xc0] sm:$0xf]
        %v308 = vld [vmem:[%s225 + $0xc4] sm:$0xf]
        %v309 = vld [vmem:[%s225 + $0xc8] sm:$0xf]
        %v310 = vld [vmem:[%s225 + $0xcc] sm:$0xf]
        %v311 = vld [vmem:[%s225 + $0xd0] sm:$0xf]
        %v312 = vld [vmem:[%s225 + $0xd4] sm:$0xf]
        %v313 = vld [vmem:[%s225 + $0xd8] sm:$0xf]
        %v314 = vld [vmem:[%s225 + $0xdc] sm:$0xf]
        %v315 = vld [vmem:[%s225 + $0xe0] sm:$0xf]
        %v316 = vld [vmem:[%s225 + $0xe4] sm:$0xf]
        %v317 = vld [vmem:[%s225 + $0xe8] sm:$0xf]
        %v318 = vld [vmem:[%s225 + $0xec] sm:$0xf]
        %v319 = vld [vmem:[%s225 + $0xf0] sm:$0xf]
        %v320 = vld [vmem:[%s225 + $0xf4] sm:$0xf]
        %v321 = vld [vmem:[%s225 + $0xf8] sm:$0xf]
        %v322 = vld [vmem:[%s225 + $0xfc] sm:$0xf]
        %v323 = vld [vmem:[%s225 + $0x100] sm:$0xf]
        %v324 = vld [vmem:[%s225 + $0x104] sm:$0xf]
        %v325 = vld [vmem:[%s225 + $0x108] sm:$0xf]
        %v326 = vld [vmem:[%s225 + $0x10c] sm:$0xf]
        %v327 = vld [vmem:[%s225 + $0x110] sm:$0xf]
        %v328 = vld [vmem:[%s225 + $0x114] sm:$0xf]
        %v329 = vld [vmem:[%s225 + $0x118] sm:$0xf]
        %v330 = vld [vmem:[%s225 + $0x11c] sm:$0xf]
        %v331 = vld [vmem:[%s225 + $0x120] sm:$0xf]
        %v332 = vld [vmem:[%s225 + $0x124] sm:$0xf]
        %v333 = vld [vmem:[%s225 + $0x128] sm:$0xf]
        %v334 = vld [vmem:[%s225 + $0x12c] sm:$0xf]
        %v335 = vld [vmem:[%s225 + $0x130] sm:$0xf]
        %v336 = vld [vmem:[%s225 + $0x134] sm:$0xf]
        %v337 = vld [vmem:[%s225 + $0x138] sm:$0xf]
        %v338 = vld [vmem:[%s225 + $0x13c] sm:$0xf]
        %v339 = vld [vmem:[#allocation2] sm:$0x1]
        %v341 = vperm.slane %v339, 0
        %v367 = vunpack.c.l.b16 %v235
        %v368 = vunpack.c.h.b16 %v235
        %v369 = vunpack.c.l.b16 %v236
        %v370 = vunpack.c.h.b16 %v236
        %v371 = vunpack.c.l.b16 %v237
        %v372 = vunpack.c.l.b16 %v238
        %v373 = vunpack.c.h.b16 %v238
        %v374 = vunpack.c.l.b16 %v239
        %v375 = vunpack.c.h.b16 %v239
        %v376 = vunpack.c.l.b16 %v240
        %v377 = vunpack.c.l.b16 %v241
        %v378 = vunpack.c.h.b16 %v241
        %v379 = vunpack.c.l.b16 %v242
        %v380 = vunpack.c.h.b16 %v242
        %v381 = vunpack.c.l.b16 %v243
        %v382 = vunpack.c.l.b16 %v244
        %v383 = vunpack.c.h.b16 %v244
        %v384 = vunpack.c.l.b16 %v245
        %v385 = vunpack.c.h.b16 %v245
        %v386 = vunpack.c.l.b16 %v246
        %v387 = vunpack.c.l.b16 %v247
        %v388 = vunpack.c.h.b16 %v247
        %v389 = vunpack.c.l.b16 %v248
        %v390 = vunpack.c.h.b16 %v248
        %v391 = vunpack.c.l.b16 %v249
        %v392 = vunpack.c.l.b16 %v250
        %v393 = vunpack.c.h.b16 %v250
        %v394 = vunpack.c.l.b16 %v251
        %v395 = vunpack.c.h.b16 %v251
        %v396 = vunpack.c.l.b16 %v252
        %v397 = vunpack.c.l.b16 %v253
        %v398 = vunpack.c.h.b16 %v253
        %v399 = vunpack.c.l.b16 %v254
        %v400 = vunpack.c.h.b16 %v254
        %v401 = vunpack.c.l.b16 %v255
        %v402 = vunpack.c.l.b16 %v256
        %v403 = vunpack.c.h.b16 %v256
        %v404 = vunpack.c.l.b16 %v257
        %v405 = vunpack.c.h.b16 %v257
        %v406 = vunpack.c.l.b16 %v258
        %v407 = vpack.c.b16 %v372, %v367
        %v408 = vpack.c.b16 %v373, %v368
        %v409 = vpack.c.b16 %v374, %v369
        %v410 = vpack.c.b16 %v375, %v370
        %v411 = vpack.c.b16 %v376, %v371
        %v412 = vpack.c.b16 %v382, %v377
        %v413 = vpack.c.b16 %v383, %v378
        %v414 = vpack.c.b16 %v384, %v379
        %v415 = vpack.c.b16 %v385, %v380
        %v416 = vpack.c.b16 %v386, %v381
        %v417 = vpack.c.b16 %v392, %v387
        %v418 = vpack.c.b16 %v393, %v388
        %v419 = vpack.c.b16 %v394, %v389
        %v420 = vpack.c.b16 %v395, %v390
        %v421 = vpack.c.b16 %v396, %v391
        %v422 = vpack.c.b16 %v402, %v397
        %v423 = vpack.c.b16 %v403, %v398
        %v424 = vpack.c.b16 %v404, %v399
        %v425 = vpack.c.b16 %v405, %v400
        %v426 = vpack.c.b16 %v406, %v401
        %v527 = vunpack.c.l.b16 %v259
        %v528 = vunpack.c.l.b16 %v260
        %v529 = vunpack.c.l.b16 %v261
        %v530 = vunpack.c.l.b16 %v262
        %v531 = vunpack.c.l.b16 %v263
        %v532 = vunpack.c.l.b16 %v264
        %v533 = vunpack.c.l.b16 %v265
        %v534 = vunpack.c.l.b16 %v266
        %v535 = vunpack.c.l.b16 %v267
        %v536 = vunpack.c.l.b16 %v268
        %v537 = vunpack.c.l.b16 %v269
        %v538 = vunpack.c.l.b16 %v270
        %v539 = vunpack.c.l.b16 %v271
        %v540 = vunpack.c.l.b16 %v272
        %v541 = vunpack.c.l.b16 %v273
        %v542 = vunpack.c.l.b16 %v274
        %v543 = vunpack.c.l.b16 %v275
        %v544 = vunpack.c.l.b16 %v276
        %v545 = vunpack.c.l.b16 %v277
        %v546 = vunpack.c.l.b16 %v278
        %v547 = vunpack.c.l.b16 %v279
        %v548 = vunpack.c.l.b16 %v280
        %v549 = vunpack.c.l.b16 %v281
        %v550 = vunpack.c.l.b16 %v282
        %v551 = vunpack.c.l.b16 %v283
        %v552 = vunpack.c.l.b16 %v284
        %v553 = vunpack.c.l.b16 %v285
        %v554 = vunpack.c.l.b16 %v286
        %v555 = vunpack.c.l.b16 %v287
        %v556 = vunpack.c.l.b16 %v288
        %v557 = vunpack.c.l.b16 %v289
        %v558 = vunpack.c.l.b16 %v290
        %v559 = vunpack.c.l.b16 %v291
        %v560 = vunpack.c.l.b16 %v292
        %v561 = vunpack.c.l.b16 %v293
        %v562 = vunpack.c.l.b16 %v294
        %v563 = vunpack.c.l.b16 %v295
        %v564 = vunpack.c.l.b16 %v296
        %v565 = vunpack.c.l.b16 %v297
        %v566 = vunpack.c.l.b16 %v298
        %v567 = vunpack.c.l.b16 %v299
        %v568 = vunpack.c.l.b16 %v300
        %v569 = vunpack.c.l.b16 %v301
        %v570 = vunpack.c.l.b16 %v302
        %v571 = vunpack.c.l.b16 %v303
        %v572 = vunpack.c.l.b16 %v304
        %v573 = vunpack.c.l.b16 %v305
        %v574 = vunpack.c.l.b16 %v306
        %v575 = vunpack.c.l.b16 %v307
        %v576 = vunpack.c.l.b16 %v308
        %v577 = vunpack.c.l.b16 %v309
        %v578 = vunpack.c.l.b16 %v310
        %v579 = vunpack.c.l.b16 %v311
        %v580 = vunpack.c.l.b16 %v312
        %v581 = vunpack.c.l.b16 %v313
        %v582 = vunpack.c.l.b16 %v314
        %v583 = vunpack.c.l.b16 %v315
        %v584 = vunpack.c.l.b16 %v316
        %v585 = vunpack.c.l.b16 %v317
        %v586 = vunpack.c.l.b16 %v318
        %v587 = vunpack.c.l.b16 %v319
        %v588 = vunpack.c.l.b16 %v320
        %v589 = vunpack.c.l.b16 %v321
        %v590 = vunpack.c.l.b16 %v322
        %v591 = vunpack.c.l.b16 %v323
        %v592 = vunpack.c.l.b16 %v324
        %v593 = vunpack.c.l.b16 %v325
        %v594 = vunpack.c.l.b16 %v326
        %v595 = vunpack.c.l.b16 %v327
        %v596 = vunpack.c.l.b16 %v328
        %v597 = vunpack.c.l.b16 %v329
        %v598 = vunpack.c.l.b16 %v330
        %v599 = vunpack.c.l.b16 %v331
        %v600 = vunpack.c.l.b16 %v332
        %v601 = vunpack.c.l.b16 %v333
        %v602 = vunpack.c.l.b16 %v334
        %v603 = vunpack.c.l.b16 %v335
        %v604 = vunpack.c.l.b16 %v336
        %v605 = vunpack.c.l.b16 %v337
        %v606 = vunpack.c.l.b16 %v338
        %v607 = vpack.c.b16 %v528, %v527
        %v608 = vpack.c.b16 %v530, %v529
        %v609 = vpack.c.b16 %v532, %v531
        %v610 = vpack.c.b16 %v534, %v533
        %v611 = vpack.c.b16 %v536, %v535
        %v612 = vpack.c.b16 %v538, %v537
        %v613 = vpack.c.b16 %v540, %v539
        %v614 = vpack.c.b16 %v542, %v541
        %v615 = vpack.c.b16 %v544, %v543
        %v616 = vpack.c.b16 %v546, %v545
        %v617 = vpack.c.b16 %v548, %v547
        %v618 = vpack.c.b16 %v550, %v549
        %v619 = vpack.c.b16 %v552, %v551
        %v620 = vpack.c.b16 %v554, %v553
        %v621 = vpack.c.b16 %v556, %v555
        %v622 = vpack.c.b16 %v558, %v557
        %v623 = vpack.c.b16 %v560, %v559
        %v624 = vpack.c.b16 %v562, %v561
        %v625 = vpack.c.b16 %v564, %v563
        %v626 = vpack.c.b16 %v566, %v565
        %v627 = vpack.c.b16 %v568, %v567
        %v628 = vpack.c.b16 %v570, %v569
        %v629 = vpack.c.b16 %v572, %v571
        %v630 = vpack.c.b16 %v574, %v573
        %v631 = vpack.c.b16 %v576, %v575
        %v632 = vpack.c.b16 %v578, %v577
        %v633 = vpack.c.b16 %v580, %v579
        %v634 = vpack.c.b16 %v582, %v581
        %v635 = vpack.c.b16 %v584, %v583
        %v636 = vpack.c.b16 %v586, %v585
        %v637 = vpack.c.b16 %v588, %v587
        %v638 = vpack.c.b16 %v590, %v589
        %v639 = vpack.c.b16 %v592, %v591
        %v640 = vpack.c.b16 %v594, %v593
        %v641 = vpack.c.b16 %v596, %v595
        %v642 = vpack.c.b16 %v598, %v597
        %v643 = vpack.c.b16 %v600, %v599
        %v644 = vpack.c.b16 %v602, %v601
        %v645 = vpack.c.b16 %v604, %v603
        %v646 = vpack.c.b16 %v606, %v605
        %687 = vmatpush.bf16.msra.mxu0 %v614
        %688 = vmatpush.bf16.msra.mxu0 %v613
        %689 = vmatpush.bf16.msra.mxu0 %v612
        %690 = vmatpush.bf16.msra.mxu0 %v611
        %691 = vmatpush.bf16.msra.mxu0 %v610
        %692 = vmatpush.bf16.msra.mxu0 %v609
        %693 = vmatpush.bf16.msra.mxu0 %v608
        %694 = vmatpush.bf16.msra.mxu0 %v607
        %695 = vmatmul.bf16.gmra.mxu0 %v407
        %v696 = vpop.f32.mrf.mxu0
        %v697 = vadd.f32 %v341, %v696
        %v698 = vpop.f32.mrf.mxu0
        %v699 = vadd.f32 %v341, %v698
        %700 = vmatmul.bf16.gmra.mxu0 %v412
        %v701 = vpop.f32.mrf.mxu0
        %v702 = vadd.f32 %v341, %v701
        %v703 = vpop.f32.mrf.mxu0
        %v704 = vadd.f32 %v341, %v703
        %705 = vmatmul.bf16.gmra.mxu0 %v417
        %v706 = vpop.f32.mrf.mxu0
        %v707 = vadd.f32 %v341, %v706
        %v708 = vpop.f32.mrf.mxu0
        %v709 = vadd.f32 %v341, %v708
        %710 = vmatmul.bf16.gmra.mxu0 %v422
        %v711 = vpop.f32.mrf.mxu0
        %v712 = vadd.f32 %v341, %v711
        %v713 = vpop.f32.mrf.mxu0
        %v714 = vadd.f32 %v341, %v713
        %715 = vdwg.mxu0
        %716 = vmatpush.bf16.msra.mxu0 %v622
        %717 = vmatpush.bf16.msra.mxu0 %v621
        %718 = vmatpush.bf16.msra.mxu0 %v620
        %719 = vmatpush.bf16.msra.mxu0 %v619
        %720 = vmatpush.bf16.msra.mxu0 %v618
        %721 = vmatpush.bf16.msra.mxu0 %v617
        %722 = vmatpush.bf16.msra.mxu0 %v616
        %723 = vmatpush.bf16.msra.mxu0 %v615
        %724 = vmatmul.bf16.gmra.mxu0 %v408
        %v725 = vpop.f32.mrf.mxu0
        %v726 = vadd.f32 %v697, %v725
        %v727 = vpop.f32.mrf.mxu0
        %v728 = vadd.f32 %v699, %v727
        %729 = vmatmul.bf16.gmra.mxu0 %v413
        %v730 = vpop.f32.mrf.mxu0
        %v731 = vadd.f32 %v702, %v730
        %v732 = vpop.f32.mrf.mxu0
        %v733 = vadd.f32 %v704, %v732
        %734 = vmatmul.bf16.gmra.mxu0 %v418
        %v735 = vpop.f32.mrf.mxu0
        %v736 = vadd.f32 %v707, %v735
        %v737 = vpop.f32.mrf.mxu0
        %v738 = vadd.f32 %v709, %v737
        %739 = vmatmul.bf16.gmra.mxu0 %v423
        %v740 = vpop.f32.mrf.mxu0
        %v741 = vadd.f32 %v712, %v740
        %v742 = vpop.f32.mrf.mxu0
        %v743 = vadd.f32 %v714, %v742
        %744 = vdwg.mxu0
        %745 = vmatpush.bf16.msra.mxu0 %v630
        %746 = vmatpush.bf16.msra.mxu0 %v629
        %747 = vmatpush.bf16.msra.mxu0 %v628
        %748 = vmatpush.bf16.msra.mxu0 %v627
        %749 = vmatpush.bf16.msra.mxu0 %v626
        %750 = vmatpush.bf16.msra.mxu0 %v625
        %751 = vmatpush.bf16.msra.mxu0 %v624
        %752 = vmatpush.bf16.msra.mxu0 %v623
        %753 = vmatmul.bf16.gmra.mxu0 %v409
        %v754 = vpop.f32.mrf.mxu0
        %v755 = vadd.f32 %v726, %v754
        %v756 = vpop.f32.mrf.mxu0
        %v757 = vadd.f32 %v728, %v756
        %758 = vmatmul.bf16.gmra.mxu0 %v414
        %v759 = vpop.f32.mrf.mxu0
        %v760 = vadd.f32 %v731, %v759
        %v761 = vpop.f32.mrf.mxu0
        %v762 = vadd.f32 %v733, %v761
        %763 = vmatmul.bf16.gmra.mxu0 %v419
        %v764 = vpop.f32.mrf.mxu0
        %v765 = vadd.f32 %v736, %v764
        %v766 = vpop.f32.mrf.mxu0
        %v767 = vadd.f32 %v738, %v766
        %768 = vmatmul.bf16.gmra.mxu0 %v424
        %v769 = vpop.f32.mrf.mxu0
        %v770 = vadd.f32 %v741, %v769
        %v771 = vpop.f32.mrf.mxu0
        %v772 = vadd.f32 %v743, %v771
        %773 = vdwg.mxu0
        %774 = vmatpush.bf16.msra.mxu0 %v638
        %775 = vmatpush.bf16.msra.mxu0 %v637
        %776 = vmatpush.bf16.msra.mxu0 %v636
        %777 = vmatpush.bf16.msra.mxu0 %v635
        %778 = vmatpush.bf16.msra.mxu0 %v634
        %779 = vmatpush.bf16.msra.mxu0 %v633
        %780 = vmatpush.bf16.msra.mxu0 %v632
        %781 = vmatpush.bf16.msra.mxu0 %v631
        %782 = vmatmul.bf16.gmra.mxu0 %v410
        %v783 = vpop.f32.mrf.mxu0
        %v784 = vadd.f32 %v755, %v783
        %v785 = vpop.f32.mrf.mxu0
        %v786 = vadd.f32 %v757, %v785
        %787 = vmatmul.bf16.gmra.mxu0 %v415
        %v788 = vpop.f32.mrf.mxu0
        %v789 = vadd.f32 %v760, %v788
        %v790 = vpop.f32.mrf.mxu0
        %v791 = vadd.f32 %v762, %v790
        %792 = vmatmul.bf16.gmra.mxu0 %v420
        %v793 = vpop.f32.mrf.mxu0
        %v794 = vadd.f32 %v765, %v793
        %v795 = vpop.f32.mrf.mxu0
        %v796 = vadd.f32 %v767, %v795
        %797 = vmatmul.bf16.gmra.mxu0 %v425
        %v798 = vpop.f32.mrf.mxu0
        %v799 = vadd.f32 %v770, %v798
        %v800 = vpop.f32.mrf.mxu0
        %v801 = vadd.f32 %v772, %v800
        %802 = vdwg.mxu0
        %803 = vmatpush.bf16.msra.mxu0 %v646
        %804 = vmatpush.bf16.msra.mxu0 %v645
        %805 = vmatpush.bf16.msra.mxu0 %v644
        %806 = vmatpush.bf16.msra.mxu0 %v643
        %807 = vmatpush.bf16.msra.mxu0 %v642
        %808 = vmatpush.bf16.msra.mxu0 %v641
        %809 = vmatpush.bf16.msra.mxu0 %v640
        %810 = vmatpush.bf16.msra.mxu0 %v639
        %811 = vmatmul.bf16.gmra.mxu0 %v411
        %v812 = vpop.f32.mrf.mxu0
        %v813 = vadd.f32 %v784, %v812
        %v814 = vpop.f32.mrf.mxu0
        %v815 = vadd.f32 %v786, %v814
        %816 = vmatmul.bf16.gmra.mxu0 %v416
        %v817 = vpop.f32.mrf.mxu0
        %v818 = vadd.f32 %v789, %v817
        %v819 = vpop.f32.mrf.mxu0
        %v820 = vadd.f32 %v791, %v819
        %821 = vmatmul.bf16.gmra.mxu0 %v421
        %v822 = vpop.f32.mrf.mxu0
        %v823 = vadd.f32 %v794, %v822
        %v824 = vpop.f32.mrf.mxu0
        %v825 = vadd.f32 %v796, %v824
        %826 = vmatmul.bf16.gmra.mxu0 %v426
        %v827 = vpop.f32.mrf.mxu0
        %v828 = vadd.f32 %v799, %v827
        %v829 = vpop.f32.mrf.mxu0
        %v830 = vadd.f32 %v801, %v829
        %831 = vdwg.mxu0
        %v832 = vmax.f32 %v813, 0.0
        %v833 = vmax.f32 %v815, 0.0
        %v834 = vmax.f32 %v818, 0.0
        %v835 = vmax.f32 %v820, 0.0
        %v836 = vmax.f32 %v823, 0.0
        %v837 = vmax.f32 %v825, 0.0
        %v838 = vmax.f32 %v828, 0.0
        %v839 = vmax.f32 %v830, 0.0
        %v840 = vpack.c.bf16 %v832, %v832
        %v841 = vpack.c.bf16 %v833, %v833
        %v842 = vpack.c.bf16 %v834, %v834
        %v843 = vpack.c.bf16 %v835, %v835
        %v844 = vpack.c.bf16 %v836, %v836
        %v845 = vpack.c.bf16 %v837, %v837
        %v846 = vpack.c.bf16 %v838, %v838
        %v847 = vpack.c.bf16 %v839, %v839
        %vm848 = vcmask 519168
        %849 = vst.msk [vmem:[%s233] sm:$0xf] %vm848, %v840
        %850 = vst.msk [vmem:[%s233 + $0x4] sm:$0xf] %vm848, %v841
        %851 = vst.msk [vmem:[%s233 + $0x8] sm:$0xf] %vm848, %v842
        %852 = vst.msk [vmem:[%s233 + $0xc] sm:$0xf] %vm848, %v843
        %853 = vst.msk [vmem:[%s233 + $0x10] sm:$0xf] %vm848, %v844
        %854 = vst.msk [vmem:[%s233 + $0x14] sm:$0xf] %vm848, %v845
        %855 = vst.msk [vmem:[%s233 + $0x18] sm:$0xf] %vm848, %v846
        %856 = vst.msk [vmem:[%s233 + $0x1c] sm:$0xf] %vm848, %v847
        %s857 = smul.u32 8, %s20
        %p858 = scmp.lt.s32.totalorder %s857, 15
        %s859 = scalar_select %p858, %s857, 15
        %p860 = scmp.lt.s32.totalorder %s19, 0
        %s861 = scalar_select %p860, %s19, 0
        %s862 = sadd.s32 %s861, %s859
        %s863 = smul.addr %s862, 4
        %s864 = scalar_lea.vmem %s3, %s863
        // Predicated region
        $region37: #{_lambda_.8} parent=31 // pred_check
          %p865 = pneg %p125
        $region38: #{_lambda_.8} parent=31 // pred_check_branch
          %867 = sbr.rel (%p865) target = $region40
        $region39: #{_lambda_.8} parent=31 // pred_region
          %s868 = smul.u32 8, %s20
        $region40: #{_lambda_.8} parent=31 // pred_fallthru
          _
      $region32: #{_lambda_.8} parent=5 // pred_fallthru
        _
      %p869 = scmp.le.s32.totalorder 2, %s10
      // Predicated region
      $region41: #{_lambda_.8} parent=5 // pred_check
        %p870 = pneg %p869
      $region42: #{_lambda_.8} parent=5 // pred_check_branch
        %872 = sbr.rel (%p870) target = $region44
      $region43: #{_lambda_.8} parent=5 // pred_region
        %s873 = ssub.s32 %s10, 2
        // Predicated region
        $region45: #{_lambda_.8} parent=43 // pred_check
          %p874 = pneg %p131
        $region46: #{_lambda_.8} parent=43 // pred_check_branch
          %876 = sbr.rel (%p874) target = $region48
        $region47: #{_lambda_.8} parent=43 // pred_region
          %s877 = smul.u32 8, %s22
          %p878 = scmp.lt.s32.totalorder %s877, 15
          %s879 = scalar_select %p878, %s877, 15
          %p880 = scmp.lt.s32.totalorder %s21, 0
          %s881 = scalar_select %p880, %s21, 0
          %s882 = sadd.s32 %s881, %s879
          %s883 = smul.addr %s882, 4
          %s884 = scalar_lea.vmem %s3, %s883
        $region48: #{_lambda_.8} parent=43 // pred_fallthru
          _
      $region44: #{_lambda_.8} parent=5 // pred_fallthru
        _
    $region6: #{_lambda_.8} parent=1 // loop_footer
      %s14 = sadd.s32 1, %s10
    $region7: #{_lambda_.8} parent=1 // loop_footer_branch
      %9 = sbr.rel target = $region3
    $region8: #{_lambda_.8} parent=1 // loop_exit
      _
    %885 = vsyncpa [#allocation3], 1
    %s886 = scalar_lea.sflag [#allocation3], 1
    %887 = vsyncpa %s886, 1

// kernel: _lambda_.9
$region0: #{_lambda_.9}
  #allocation0 [shape = 'u32[]', space=smem, size = 0x4, offset = 0x4, fixed_abs, tag = 'smem constant byte address 0x4 - core index']
  #allocation1 [shape = 'u32[72,128]{1,0:T(1,128)}', space=vmem, size = 0x9000, scoped, tag = 'internal scratch']
  %s0 = inlined_call_operand.vmem [shape: bf16[128,640], index: 0, kind: input, shape index: {}]
  %s1 = inlined_call_operand.hbm [shape: bf16[640,64], index: 1, kind: input, shape index: {}]
  %s2 = inlined_call_operand.hbm [shape: f32[1,64], index: 2, kind: input, shape index: {}]
  %s3 = inlined_call_operand.vmem [shape: bf16[128,64], index: 3, kind: input, shape index: {}]
  %s4 = inlined_call_operand.vmem [shape: bf16[128,64], index: 4, kind: output, shape index: {}]
  %s5 = sld [smem:[#allocation0]]
  $region57: #{_lambda_.9} parent=0
    _
  %s7 = ssub.s32 1, %s5
  %s8 = scalar_select 0, %s7, %s5
  $region1: #{_lambda_.9} parent=0
    #allocation2 [shape = 'u8[163840]{0}', space=vmem, size = 0x28000, scoped, tag = 'input window, operand 1, single buffered']
    #allocation3 [shape = 's32[2]{0}', space=sflag, size = 0x8, scoped, tag = 'scoped memory for _lambda_.9']
    #allocation4 [shape = 'u8[512]{0}', space=vmem, size = 0x400, scoped, tag = 'input window, operand 2, single buffered']
    #allocation5 [shape = 's32[1]{0}', space=sflag, size = 0x4, scoped, tag = 'scoped memory for _lambda_.9']
    %9 = vsyncpa [#allocation3], 0
    %10 = vsyncpa [#allocation5], 0
    loop: start=0, step=1, limit=4
    $region2: #{_lambda_.9} parent=1 // loop_pre_header
      _
    $region3: #{_lambda_.9} parent=1 // loop_header
      %s12 = sphi 0, %s16
      %p13 = scmp.ge.s32.totalorder %s12, 4
      %s19 = sphi 0, %s31
      %s20 = sphi 0, %s27
      %s21 = sphi 0, %s19
      %s22 = sphi 0, %s20
      %s23 = sphi 0, %s21
      %s24 = sphi 0, %s22
      %s34 = sphi 0, %s36
      %s37 = sphi 0, %s34
      %s38 = sphi 0, %s37
      %s54 = sphi 0, %s38
      %s60 = sphi 0, %s62
      %s63 = sphi 0, %s60
      %s64 = sphi 0, %s63
      %s80 = sphi 0, %s64
      %s86 = sphi 0, %s88
      %s89 = sphi 0, %s86
      %s90 = sphi 0, %s89
      %s106 = sphi 0, %s90
      %s114 = sphi 0, %s116
      %s117 = sphi 0, %s114
      %s118 = sphi 0, %s117
      %s134 = sphi 0, %s118
      %s142 = sphi 0, %s144
      %s145 = sphi 0, %s142
      %s146 = sphi 0, %s145
      %s162 = sphi 0, %s146
    $region4: #{_lambda_.9} parent=1 // loop_header_branch
      %15 = sbr.rel (%p13) target = $region8
    $region5: #{_lambda_.9} parent=1 // loop_body
      %s17 = ssub.s32 %s12, 1
      %s18 = ssub.s32 %s12, 2
      %s25 = sadd.s32 1, %s20
      %p26 = scmp.ge.s32.totalorder %s25, 2
      %s27 = scalar_select %p26, 0, %s25
      %s28 = sadd.s32 1, %s19
      %s29 = scalar_select %p26, %s28, %s19
      %p30 = scmp.ge.s32.totalorder %s29, 1
      %s31 = scalar_select %p30, 0, %s29
      %s32 = ssub.s32 %s20, %s27
      %p33 = scmp.eq.s32.totalorder %s32, 0
      %s35 = sadd.s32 %s34, 1
      %s36 = scalar_select %p33, %s34, %s35
      %p39 = pneg %p33
      %p40 = scmp.eq.s32.totalorder %s12, 1
      %p41 = por %p39, %p40
      %p42 = scmp.ne.s32.totalorder %s34, %s37
      %p43 = scmp.eq.s32.totalorder %s12, 0
      %p44 = por %p42, %p43
      %p45 = scmp.ne.s32.totalorder %s34, %s37
      %p46 = scmp.eq.s32.totalorder %s17, 1
      %p47 = por %p45, %p46
      %p48 = scmp.ne.s32.totalorder %s37, %s38
      %p49 = scmp.eq.s32.totalorder %s17, 0
      %p50 = por %p48, %p49
      %p51 = scmp.ne.s32.totalorder %s37, %s38
      %p52 = scmp.eq.s32.totalorder %s18, 1
      %p53 = por %p51, %p52
      %p55 = scmp.ne.s32.totalorder %s38, %s54
      %p56 = scmp.eq.s32.totalorder %s18, 0
      %p57 = por %p55, %p56
      %s58 = ssub.s32 %s19, %s31
      %p59 = scmp.eq.s32.totalorder %s58, 0
      %s61 = sadd.s32 %s60, 1
      %s62 = scalar_select %p59, %s60, %s61
      %p65 = pneg %p59
      %p66 = scmp.eq.s32.totalorder %s12, 1
      %p67 = por %p65, %p66
      %p68 = scmp.ne.s32.totalorder %s60, %s63
      %p69 = scmp.eq.s32.totalorder %s12, 0
      %p70 = por %p68, %p69
      %p71 = scmp.ne.s32.totalorder %s60, %s63
      %p72 = scmp.eq.s32.totalorder %s17, 1
      %p73 = por %p71, %p72
      %p74 = scmp.ne.s32.totalorder %s63, %s64
      %p75 = scmp.eq.s32.totalorder %s17, 0
      %p76 = por %p74, %p75
      %p77 = scmp.ne.s32.totalorder %s63, %s64
      %p78 = scmp.eq.s32.totalorder %s18, 1
      %p79 = por %p77, %p78
      %p81 = scmp.ne.s32.totalorder %s64, %s80
      %p82 = scmp.eq.s32.totalorder %s18, 0
      %p83 = por %p81, %p82
      %s84 = ssub.s32 %s19, %s31
      %p85 = scmp.eq.s32.totalorder %s84, 0
      %s87 = sadd.s32 %s86, 1
      %s88 = scalar_select %p85, %s86, %s87
      %p91 = pneg %p85
      %p92 = scmp.eq.s32.totalorder %s12, 1
      %p93 = por %p91, %p92
      %p94 = scmp.ne.s32.totalorder %s86, %s89
      %p95 = scmp.eq.s32.totalorder %s12, 0
      %p96 = por %p94, %p95
      %p97 = scmp.ne.s32.totalorder %s86, %s89
      %p98 = scmp.eq.s32.totalorder %s17, 1
      %p99 = por %p97, %p98
      %p100 = scmp.ne.s32.totalorder %s89, %s90
      %p101 = scmp.eq.s32.totalorder %s17, 0
      %p102 = por %p100, %p101
      %p103 = scmp.ne.s32.totalorder %s89, %s90
      %p104 = scmp.eq.s32.totalorder %s18, 1
      %p105 = por %p103, %p104
      %p107 = scmp.ne.s32.totalorder %s90, %s106
      %p108 = scmp.eq.s32.totalorder %s18, 0
      %p109 = por %p107, %p108
      %s110 = ssub.s32 %s20, %s27
      %s111 = ssub.s32 %s19, %s31
      %s112 = sor.u32 %s110, %s111
      %p113 = scmp.eq.s32.totalorder %s112, 0
      %s115 = sadd.s32 %s114, 1
      %s116 = scalar_select %p113, %s114, %s115
      %p119 = pneg %p113
      %p120 = scmp.eq.s32.totalorder %s12, 1
      %p121 = por %p119, %p120
      %p122 = scmp.ne.s32.totalorder %s114, %s117
      %p123 = scmp.eq.s32.totalorder %s12, 0
      %p124 = por %p122, %p123
      %p125 = scmp.ne.s32.totalorder %s114, %s117
      %p126 = scmp.eq.s32.totalorder %s17, 1
      %p127 = por %p125, %p126
      %p128 = scmp.ne.s32.totalorder %s117, %s118
      %p129 = scmp.eq.s32.totalorder %s17, 0
      %p130 = por %p128, %p129
      %p131 = scmp.ne.s32.totalorder %s117, %s118
      %p132 = scmp.eq.s32.totalorder %s18, 1
      %p133 = por %p131, %p132
      %p135 = scmp.ne.s32.totalorder %s118, %s134
      %p136 = scmp.eq.s32.totalorder %s18, 0
      %p137 = por %p135, %p136
      %s138 = ssub.s32 %s20, %s27
      %s139 = ssub.s32 %s19, %s31
      %s140 = sor.u32 %s138, %s139
      %p141 = scmp.eq.s32.totalorder %s140, 0
      %s143 = sadd.s32 %s142, 1
      %s144 = scalar_select %p141, %s142, %s143
      %p147 = pneg %p141
      %p148 = scmp.eq.s32.totalorder %s12, 1
      %p149 = por %p147, %p148
      %p150 = scmp.ne.s32.totalorder %s142, %s145
      %p151 = scmp.eq.s32.totalorder %s12, 0
      %p152 = por %p150, %p151
      %p153 = scmp.ne.s32.totalorder %s142, %s145
      %p154 = scmp.eq.s32.totalorder %s17, 1
      %p155 = por %p153, %p154
      %p156 = scmp.ne.s32.totalorder %s145, %s146
      %p157 = scmp.eq.s32.totalorder %s17, 0
      %p158 = por %p156, %p157
      %p159 = scmp.ne.s32.totalorder %s145, %s146
      %p160 = scmp.eq.s32.totalorder %s18, 1
      %p161 = por %p159, %p160
      %p163 = scmp.ne.s32.totalorder %s146, %s162
      %p164 = scmp.eq.s32.totalorder %s18, 0
      %p165 = por %p163, %p164
      %p166 = scmp.le.s32.totalorder 1, %s12
      %p167 = scmp.lt.s32.totalorder %s12, 3
      %p168 = pnand %p166, %p167
      %p169 = pneg %p168
      // Predicated region
      $region9: #{_lambda_.9} parent=5 // pred_check
        _
      $region10: #{_lambda_.9} parent=5 // pred_check_branch
        %171 = sbr.rel (%p168) target = $region12
      $region11: #{_lambda_.9} parent=5 // pred_region
        %s172 = ssub.s32 %s12, 1
        // Predicated region
        $region13: #{_lambda_.9} parent=11 // pred_check
          %p173 = pneg %p76
        $region14: #{_lambda_.9} parent=11 // pred_check_branch
          %175 = sbr.rel (%p173) target = $region16
        $region15: #{_lambda_.9} parent=11 // pred_region
          %177 = vsyncadd [#allocation3], 0
          %s178 = smul.addr %s21, 4
          %s179 = scalar_lea.hbm %s1, %s178
          %s180 = sshll.u32 %s179, 4
          %s181 = int_to_ptr.hbm [resolvable:$true] %s180
          %s182 = sshll.u32 [#allocation2], 4
          %s183 = int_to_ptr.vmem [resolvable:$true] %s182
          %188 = dma.hbm_to_vmem [thread:$0]  %s181, 5120, %s183, [#allocation3], 64, 64, 4
        $region16: #{_lambda_.9} parent=11 // pred_fallthru
          _
        // Predicated region
        $region17: #{_lambda_.9} parent=11 // pred_check
          %p189 = pneg %p102
        $region18: #{_lambda_.9} parent=11 // pred_check_branch
          %191 = sbr.rel (%p189) target = $region20
        $region19: #{_lambda_.9} parent=11 // pred_region
          %193 = vsyncadd [#allocation5], 0
          %s194 = scalar_lea.hbm %s2, %s21
          %s196 = sshll.u32 %s194, 4
          %s197 = int_to_ptr.hbm [resolvable:$true] %s196
          %s198 = sshll.u32 [#allocation4], 4
          %s199 = int_to_ptr.vmem [resolvable:$true] %s198
          %201 = dma.hbm_to_vmem [thread:$0]  %s197, 16, %s199, [#allocation5]
        $region20: #{_lambda_.9} parent=11 // pred_fallthru
          _
      $region12: #{_lambda_.9} parent=5 // pred_fallthru
        _
      %p202 = scmp.lt.s32.totalorder %s12, 2
      // Predicated region
      $region21: #{_lambda_.9} parent=5 // pred_check
        %p203 = pneg %p202
      $region22: #{_lambda_.9} parent=5 // pred_check_branch
        %205 = sbr.rel (%p203) target = $region24
      $region23: #{_lambda_.9} parent=5 // pred_region
        // Predicated region
        $region25: #{_lambda_.9} parent=23 // pred_check
          %p206 = pneg %p44
        $region26: #{_lambda_.9} parent=23 // pred_check_branch
          %208 = sbr.rel (%p206) target = $region28
        $region27: #{_lambda_.9} parent=23 // pred_region
          %s209 = smul.u32 8, %s20
          %p210 = scmp.lt.s32.totalorder %s209, 15
          %s211 = scalar_select %p210, %s209, 15
          %s212 = smul.addr %s211, 5
          %s213 = smul.addr %s212, 4
          %s214 = scalar_lea.vmem %s0, %s213
          %s215 = smul.u32 8, %s20
        $region28: #{_lambda_.9} parent=23 // pred_fallthru
          _
        // Predicated region
        $region29: #{_lambda_.9} parent=23 // pred_check
          %p216 = pneg %p124
        $region30: #{_lambda_.9} parent=23 // pred_check_branch
          %218 = sbr.rel (%p216) target = $region32
        $region31: #{_lambda_.9} parent=23 // pred_region
          %s219 = smul.u32 8, %s20
          %p220 = scmp.lt.s32.totalorder %s219, 15
          %s221 = scalar_select %p220, %s219, 15
          %p222 = scmp.lt.s32.totalorder %s19, 0
          %s223 = scalar_select %p222, %s19, 0
          %s224 = sadd.s32 %s223, %s221
          %s225 = smul.addr %s224, 4
          %s226 = scalar_lea.vmem %s3, %s225
          %s227 = smul.u32 8, %s20
        $region32: #{_lambda_.9} parent=23 // pred_fallthru
          _
      $region24: #{_lambda_.9} parent=5 // pred_fallthru
        _
      %p228 = scmp.le.s32.totalorder 1, %s12
      %p229 = scmp.lt.s32.totalorder %s12, 3
      %p230 = pnand %p228, %p229
      %p231 = pneg %p230
      // Predicated region
      $region33: #{_lambda_.9} parent=5 // pred_check
        _
      $region34: #{_lambda_.9} parent=5 // pred_check_branch
        %233 = sbr.rel (%p230) target = $region36
      $region35: #{_lambda_.9} parent=5 // pred_region
        %s234 = ssub.s32 %s12, 1
        // Predicated region
        $region37: #{_lambda_.9} parent=35 // pred_check
          %p235 = pneg %p76
        $region38: #{_lambda_.9} parent=35 // pred_check_branch
          %237 = sbr.rel (%p235) target = $region40
        $region39: #{_lambda_.9} parent=35 // pred_region
          %239 = dma.done [#allocation3], 5120
        $region40: #{_lambda_.9} parent=35 // pred_fallthru
          _
        // Predicated region
        $region41: #{_lambda_.9} parent=35 // pred_check
          %p240 = pneg %p102
        $region42: #{_lambda_.9} parent=35 // pred_check_branch
          %242 = sbr.rel (%p240) target = $region44
        $region43: #{_lambda_.9} parent=35 // pred_region
          %244 = dma.done [#allocation5], 16
        $region44: #{_lambda_.9} parent=35 // pred_fallthru
          _
        %s245 = smul.u32 8, %s22
        %p246 = scmp.lt.s32.totalorder %s245, 15
        %s247 = scalar_select %p246, %s245, 15
        %s248 = smul.addr %s247, 5
        %s249 = smul.addr %s248, 4
        %s250 = scalar_lea.vmem %s0, %s249
        %p251 = pneg %p50
        %p252 = pneg %p47
        %p253 = pneg %p76
        %p254 = pneg %p73
        %p255 = pneg %p102
        %p256 = pneg %p99
        %s257 = smul.u32 8, %s22
        %p258 = scmp.lt.s32.totalorder %s257, 15
        %s259 = scalar_select %p258, %s257, 15
        %p260 = scmp.lt.s32.totalorder %s21, 0
        %s261 = scalar_select %p260, %s21, 0
        %s262 = sadd.s32 %s261, %s259
        %s263 = smul.addr %s262, 4
        %s264 = scalar_lea.vmem %s3, %s263
        %p265 = pneg %p130
        %p266 = pneg %p127
        %p267 = pneg %p158
        %p268 = pneg %p155
        %s269 = smul.u32 8, %s22
        %p270 = scmp.lt.s32.totalorder %s269, 15
        %s271 = scalar_select %p270, %s269, 15
        %p272 = scmp.lt.s32.totalorder %s21, 0
        %s273 = scalar_select %p272, %s21, 0
        %s274 = sadd.s32 %s273, %s271
        %s275 = smul.addr %s274, 4
        %s276 = scalar_lea.vmem %s4, %s275
        %s277 = smul.u32 8, %s22
        %p278 = scmp.lt.s32.totalorder %s277, 15
        %s279 = scalar_select %p278, %s277, 15
        %s280 = smul.addr %s279, 5
        %s281 = smul.addr %s280, 4
        %s282 = scalar_lea.vmem %s0, %s281
        %s283 = smul.u32 8, %s22
        %s284 = smul.u32 8, %s22
        %p285 = scmp.lt.s32.totalorder %s284, 15
        %s286 = scalar_select %p285, %s284, 15
        %p287 = scmp.lt.s32.totalorder %s21, 0
        %s288 = scalar_select %p287, %s21, 0
        %s289 = sadd.s32 %s288, %s286
        %s290 = smul.addr %s289, 4
        %s291 = scalar_lea.vmem %s3, %s290
        %s292 = smul.u32 8, %s22
        %s293 = smul.u32 8, %s22
        %p294 = scmp.lt.s32.totalorder %s293, 15
        %s295 = scalar_select %p294, %s293, 15
        %p296 = scmp.lt.s32.totalorder %s21, 0
        %s297 = scalar_select %p296, %s21, 0
        %s298 = sadd.s32 %s297, %s295
        %s299 = smul.addr %s298, 4
        %s300 = scalar_lea.vmem %s4, %s299
        %s301 = smul.u32 8, %s22
        %v302 = vld [vmem:[%s282] sm:$0xff]
        %v303 = vld [vmem:[%s282 + $0x8] sm:$0xff]
        %v304 = vld [vmem:[%s282 + $0x10] sm:$0xf]
        %v305 = vld [vmem:[%s282 + $0x14] sm:$0xff]
        %v306 = vld [vmem:[%s282 + $0x1c] sm:$0xff]
        %v307 = vld [vmem:[%s282 + $0x24] sm:$0xf]
        %v308 = vld [vmem:[%s282 + $0x28] sm:$0xff]
        %v309 = vld [vmem:[%s282 + $0x30] sm:$0xff]
        %v310 = vld [vmem:[%s282 + $0x38] sm:$0xf]
        %v311 = vld [vmem:[%s282 + $0x3c] sm:$0xff]
        %v312 = vld [vmem:[%s282 + $0x44] sm:$0xff]
        %v313 = vld [vmem:[%s282 + $0x4c] sm:$0xf]
        %v314 = vld [vmem:[%s282 + $0x50] sm:$0xff]
        %v315 = vld [vmem:[%s282 + $0x58] sm:$0xff]
        %v316 = vld [vmem:[%s282 + $0x60] sm:$0xf]
        %v317 = vld [vmem:[%s282 + $0x64] sm:$0xff]
        %v318 = vld [vmem:[%s282 + $0x6c] sm:$0xff]
        %v319 = vld [vmem:[%s282 + $0x74] sm:$0xf]
        %v320 = vld [vmem:[%s282 + $0x78] sm:$0xff]
        %v321 = vld [vmem:[%s282 + $0x80] sm:$0xff]
        %v322 = vld [vmem:[%s282 + $0x88] sm:$0xf]
        %v323 = vld [vmem:[%s282 + $0x8c] sm:$0xff]
        %v324 = vld [vmem:[%s282 + $0x94] sm:$0xff]
        %v325 = vld [vmem:[%s282 + $0x9c] sm:$0xf]
        %v326 = vld [vmem:[#allocation2] sm:$0xf]
        %v327 = vld [vmem:[#allocation2 + $0x4] sm:$0xf]
        %v328 = vld [vmem:[#allocation2 + $0x8] sm:$0xf]
        %v329 = vld [vmem:[#allocation2 + $0xc] sm:$0xf]
        %v330 = vld [vmem:[#allocation2 + $0x10] sm:$0xf]
        %v331 = vld [vmem:[#allocation2 + $0x14] sm:$0xf]
        %v332 = vld [vmem:[#allocation2 + $0x18] sm:$0xf]
        %v333 = vld [vmem:[#allocation2 + $0x1c] sm:$0xf]
        %v334 = vld [vmem:[#allocation2 + $0x20] sm:$0xf]
        %v335 = vld [vmem:[#allocation2 + $0x24] sm:$0xf]
        %v336 = vld [vmem:[#allocation2 + $0x28] sm:$0xf]
        %v337 = vld [vmem:[#allocation2 + $0x2c] sm:$0xf]
        %v338 = vld [vmem:[#allocation2 + $0x30] sm:$0xf]
        %v339 = vld [vmem:[#allocation2 + $0x34] sm:$0xf]
        %v340 = vld [vmem:[#allocation2 + $0x38] sm:$0xf]
        %v341 = vld [vmem:[#allocation2 + $0x3c] sm:$0xf]
        %v342 = vld [vmem:[#allocation2 + $0x40] sm:$0xf]
        %v343 = vld [vmem:[#allocation2 + $0x44] sm:$0xf]
        %v344 = vld [vmem:[#allocation2 + $0x48] sm:$0xf]
        %v345 = vld [vmem:[#allocation2 + $0x4c] sm:$0xf]
        %v346 = vld [vmem:[#allocation2 + $0x50] sm:$0xf]
        %v347 = vld [vmem:[#allocation2 + $0x54] sm:$0xf]
        %v348 = vld [vmem:[#allocation2 + $0x58] sm:$0xf]
        %v349 = vld [vmem:[#allocation2 + $0x5c] sm:$0xf]
        %v350 = vld [vmem:[#allocation2 + $0x60] sm:$0xf]
        %v351 = vld [vmem:[#allocation2 + $0x64] sm:$0xf]
        %v352 = vld [vmem:[#allocation2 + $0x68] sm:$0xf]
        %v353 = vld [vmem:[#allocation2 + $0x6c] sm:$0xf]
        %v354 = vld [vmem:[#allocation2 + $0x70] sm:$0xf]
        %v355 = vld [vmem:[#allocation2 + $0x74] sm:$0xf]
        %v356 = vld [vmem:[#allocation2 + $0x78] sm:$0xf]
        %v357 = vld [vmem:[#allocation2 + $0x7c] sm:$0xf]
        %v358 = vld [vmem:[#allocation2 + $0x80] sm:$0xf]
        %v359 = vld [vmem:[#allocation2 + $0x84] sm:$0xf]
        %v360 = vld [vmem:[#allocation2 + $0x88] sm:$0xf]
        %v361 = vld [vmem:[#allocation2 + $0x8c] sm:$0xf]
        %v362 = vld [vmem:[#allocation2 + $0x90] sm:$0xf]
        %v363 = vld [vmem:[#allocation2 + $0x94] sm:$0xf]
        %v364 = vld [vmem:[#allocation2 + $0x98] sm:$0xf]
        %v365 = vld [vmem:[#allocation2 + $0x9c] sm:$0xf]
        %v366 = vld [vmem:[#allocation2 + $0xa0] sm:$0xf]
        %v367 = vld [vmem:[#allocation2 + $0xa4] sm:$0xf]
        %v368 = vld [vmem:[#allocation2 + $0xa8] sm:$0xf]
        %v369 = vld [vmem:[#allocation2 + $0xac] sm:$0xf]
        %v370 = vld [vmem:[#allocation2 + $0xb0] sm:$0xf]
        %v371 = vld [vmem:[#allocation2 + $0xb4] sm:$0xf]
        %v372 = vld [vmem:[#allocation2 + $0xb8] sm:$0xf]
        %v373 = vld [vmem:[#allocation2 + $0xbc] sm:$0xf]
        %v374 = vld [vmem:[#allocation2 + $0xc0] sm:$0xf]
        %v375 = vld [vmem:[#allocation2 + $0xc4] sm:$0xf]
        %v376 = vld [vmem:[#allocation2 + $0xc8] sm:$0xf]
        %v377 = vld [vmem:[#allocation2 + $0xcc] sm:$0xf]
        %v378 = vld [vmem:[#allocation2 + $0xd0] sm:$0xf]
        %v379 = vld [vmem:[#allocation2 + $0xd4] sm:$0xf]
        %v380 = vld [vmem:[#allocation2 + $0xd8] sm:$0xf]
        %v381 = vld [vmem:[#allocation2 + $0xdc] sm:$0xf]
        %v382 = vld [vmem:[#allocation2 + $0xe0] sm:$0xf]
        %v383 = vld [vmem:[#allocation2 + $0xe4] sm:$0xf]
        %v384 = vld [vmem:[#allocation2 + $0xe8] sm:$0xf]
        %v385 = vld [vmem:[#allocation2 + $0xec] sm:$0xf]
        %v386 = vld [vmem:[#allocation2 + $0xf0] sm:$0xf]
        %v387 = vld [vmem:[#allocation2 + $0xf4] sm:$0xf]
        %v388 = vld [vmem:[#allocation2 + $0xf8] sm:$0xf]
        %v389 = vld [vmem:[#allocation2 + $0xfc] sm:$0xf]
        %v390 = vld [vmem:[#allocation2 + $0x100] sm:$0xf]
        %v391 = vld [vmem:[#allocation2 + $0x104] sm:$0xf]
        %v392 = vld [vmem:[#allocation2 + $0x108] sm:$0xf]
        %v393 = vld [vmem:[#allocation2 + $0x10c] sm:$0xf]
        %v394 = vld [vmem:[#allocation2 + $0x110] sm:$0xf]
        %v395 = vld [vmem:[#allocation2 + $0x114] sm:$0xf]
        %v396 = vld [vmem:[#allocation2 + $0x118] sm:$0xf]
        %v397 = vld [vmem:[#allocation2 + $0x11c] sm:$0xf]
        %v398 = vld [vmem:[#allocation2 + $0x120] sm:$0xf]
        %v399 = vld [vmem:[#allocation2 + $0x124] sm:$0xf]
        %v400 = vld [vmem:[#allocation2 + $0x128] sm:$0xf]
        %v401 = vld [vmem:[#allocation2 + $0x12c] sm:$0xf]
        %v402 = vld [vmem:[#allocation2 + $0x130] sm:$0xf]
        %v403 = vld [vmem:[#allocation2 + $0x134] sm:$0xf]
        %v404 = vld [vmem:[#allocation2 + $0x138] sm:$0xf]
        %v405 = vld [vmem:[#allocation2 + $0x13c] sm:$0xf]
        %v406 = vld [vmem:[#allocation4] sm:$0x1]
        %v408 = vperm.slane %v406, 0
        %v434 = vunpack.c.l.b16 %v302
        %v435 = vunpack.c.h.b16 %v302
        %v436 = vunpack.c.l.b16 %v303
        %v437 = vunpack.c.h.b16 %v303
        %v438 = vunpack.c.l.b16 %v304
        %v439 = vunpack.c.l.b16 %v305
        %v440 = vunpack.c.h.b16 %v305
        %v441 = vunpack.c.l.b16 %v306
        %v442 = vunpack.c.h.b16 %v306
        %v443 = vunpack.c.l.b16 %v307
        %v444 = vunpack.c.l.b16 %v308
        %v445 = vunpack.c.h.b16 %v308
        %v446 = vunpack.c.l.b16 %v309
        %v447 = vunpack.c.h.b16 %v309
        %v448 = vunpack.c.l.b16 %v310
        %v449 = vunpack.c.l.b16 %v311
        %v450 = vunpack.c.h.b16 %v311
        %v451 = vunpack.c.l.b16 %v312
        %v452 = vunpack.c.h.b16 %v312
        %v453 = vunpack.c.l.b16 %v313
        %v454 = vunpack.c.l.b16 %v314
        %v455 = vunpack.c.h.b16 %v314
        %v456 = vunpack.c.l.b16 %v315
        %v457 = vunpack.c.h.b16 %v315
        %v458 = vunpack.c.l.b16 %v316
        %v459 = vunpack.c.l.b16 %v317
        %v460 = vunpack.c.h.b16 %v317
        %v461 = vunpack.c.l.b16 %v318
        %v462 = vunpack.c.h.b16 %v318
        %v463 = vunpack.c.l.b16 %v319
        %v464 = vunpack.c.l.b16 %v320
        %v465 = vunpack.c.h.b16 %v320
        %v466 = vunpack.c.l.b16 %v321
        %v467 = vunpack.c.h.b16 %v321
        %v468 = vunpack.c.l.b16 %v322
        %v469 = vunpack.c.l.b16 %v323
        %v470 = vunpack.c.h.b16 %v323
        %v471 = vunpack.c.l.b16 %v324
        %v472 = vunpack.c.h.b16 %v324
        %v473 = vunpack.c.l.b16 %v325
        %v474 = vpack.c.b16 %v439, %v434
        %v475 = vpack.c.b16 %v440, %v435
        %v476 = vpack.c.b16 %v441, %v436
        %v477 = vpack.c.b16 %v442, %v437
        %v478 = vpack.c.b16 %v443, %v438
        %v479 = vpack.c.b16 %v449, %v444
        %v480 = vpack.c.b16 %v450, %v445
        %v481 = vpack.c.b16 %v451, %v446
        %v482 = vpack.c.b16 %v452, %v447
        %v483 = vpack.c.b16 %v453, %v448
        %v484 = vpack.c.b16 %v459, %v454
        %v485 = vpack.c.b16 %v460, %v455
        %v486 = vpack.c.b16 %v461, %v456
        %v487 = vpack.c.b16 %v462, %v457
        %v488 = vpack.c.b16 %v463, %v458
        %v489 = vpack.c.b16 %v469, %v464
        %v490 = vpack.c.b16 %v470, %v465
        %v491 = vpack.c.b16 %v471, %v466
        %v492 = vpack.c.b16 %v472, %v467
        %v493 = vpack.c.b16 %v473, %v468
        %v594 = vunpack.c.l.b16 %v326
        %v595 = vunpack.c.l.b16 %v327
        %v596 = vunpack.c.l.b16 %v328
        %v597 = vunpack.c.l.b16 %v329
        %v598 = vunpack.c.l.b16 %v330
        %v599 = vunpack.c.l.b16 %v331
        %v600 = vunpack.c.l.b16 %v332
        %v601 = vunpack.c.l.b16 %v333
        %v602 = vunpack.c.l.b16 %v334
        %v603 = vunpack.c.l.b16 %v335
        %v604 = vunpack.c.l.b16 %v336
        %v605 = vunpack.c.l.b16 %v337
        %v606 = vunpack.c.l.b16 %v338
        %v607 = vunpack.c.l.b16 %v339
        %v608 = vunpack.c.l.b16 %v340
        %v609 = vunpack.c.l.b16 %v341
        %v610 = vunpack.c.l.b16 %v342
        %v611 = vunpack.c.l.b16 %v343
        %v612 = vunpack.c.l.b16 %v344
        %v613 = vunpack.c.l.b16 %v345
        %v614 = vunpack.c.l.b16 %v346
        %v615 = vunpack.c.l.b16 %v347
        %v616 = vunpack.c.l.b16 %v348
        %v617 = vunpack.c.l.b16 %v349
        %v618 = vunpack.c.l.b16 %v350
        %v619 = vunpack.c.l.b16 %v351
        %v620 = vunpack.c.l.b16 %v352
        %v621 = vunpack.c.l.b16 %v353
        %v622 = vunpack.c.l.b16 %v354
        %v623 = vunpack.c.l.b16 %v355
        %v624 = vunpack.c.l.b16 %v356
        %v625 = vunpack.c.l.b16 %v357
        %v626 = vunpack.c.l.b16 %v358
        %v627 = vunpack.c.l.b16 %v359
        %v628 = vunpack.c.l.b16 %v360
        %v629 = vunpack.c.l.b16 %v361
        %v630 = vunpack.c.l.b16 %v362
        %v631 = vunpack.c.l.b16 %v363
        %v632 = vunpack.c.l.b16 %v364
        %v633 = vunpack.c.l.b16 %v365
        %v634 = vunpack.c.l.b16 %v366
        %v635 = vunpack.c.l.b16 %v367
        %v636 = vunpack.c.l.b16 %v368
        %v637 = vunpack.c.l.b16 %v369
        %v638 = vunpack.c.l.b16 %v370
        %v639 = vunpack.c.l.b16 %v371
        %v640 = vunpack.c.l.b16 %v372
        %v641 = vunpack.c.l.b16 %v373
        %v642 = vunpack.c.l.b16 %v374
        %v643 = vunpack.c.l.b16 %v375
        %v644 = vunpack.c.l.b16 %v376
        %v645 = vunpack.c.l.b16 %v377
        %v646 = vunpack.c.l.b16 %v378
        %v647 = vunpack.c.l.b16 %v379
        %v648 = vunpack.c.l.b16 %v380
        %v649 = vunpack.c.l.b16 %v381
        %v650 = vunpack.c.l.b16 %v382
        %v651 = vunpack.c.l.b16 %v383
        %v652 = vunpack.c.l.b16 %v384
        %v653 = vunpack.c.l.b16 %v385
        %v654 = vunpack.c.l.b16 %v386
        %v655 = vunpack.c.l.b16 %v387
        %v656 = vunpack.c.l.b16 %v388
        %v657 = vunpack.c.l.b16 %v389
        %v658 = vunpack.c.l.b16 %v390
        %v659 = vunpack.c.l.b16 %v391
        %v660 = vunpack.c.l.b16 %v392
        %v661 = vunpack.c.l.b16 %v393
        %v662 = vunpack.c.l.b16 %v394
        %v663 = vunpack.c.l.b16 %v395
        %v664 = vunpack.c.l.b16 %v396
        %v665 = vunpack.c.l.b16 %v397
        %v666 = vunpack.c.l.b16 %v398
        %v667 = vunpack.c.l.b16 %v399
        %v668 = vunpack.c.l.b16 %v400
        %v669 = vunpack.c.l.b16 %v401
        %v670 = vunpack.c.l.b16 %v402
        %v671 = vunpack.c.l.b16 %v403
        %v672 = vunpack.c.l.b16 %v404
        %v673 = vunpack.c.l.b16 %v405
        %v674 = vpack.c.b16 %v595, %v594
        %v675 = vpack.c.b16 %v597, %v596
        %v676 = vpack.c.b16 %v599, %v598
        %v677 = vpack.c.b16 %v601, %v600
        %v678 = vpack.c.b16 %v603, %v602
        %v679 = vpack.c.b16 %v605, %v604
        %v680 = vpack.c.b16 %v607, %v606
        %v681 = vpack.c.b16 %v609, %v608
        %v682 = vpack.c.b16 %v611, %v610
        %v683 = vpack.c.b16 %v613, %v612
        %v684 = vpack.c.b16 %v615, %v614
        %v685 = vpack.c.b16 %v617, %v616
        %v686 = vpack.c.b16 %v619, %v618
        %v687 = vpack.c.b16 %v621, %v620
        %v688 = vpack.c.b16 %v623, %v622
        %v689 = vpack.c.b16 %v625, %v624
        %v690 = vpack.c.b16 %v627, %v626
        %v691 = vpack.c.b16 %v629, %v628
        %v692 = vpack.c.b16 %v631, %v630
        %v693 = vpack.c.b16 %v633, %v632
        %v694 = vpack.c.b16 %v635, %v634
        %v695 = vpack.c.b16 %v637, %v636
        %v696 = vpack.c.b16 %v639, %v638
        %v697 = vpack.c.b16 %v641, %v640
        %v698 = vpack.c.b16 %v643, %v642
        %v699 = vpack.c.b16 %v645, %v644
        %v700 = vpack.c.b16 %v647, %v646
        %v701 = vpack.c.b16 %v649, %v648
        %v702 = vpack.c.b16 %v651, %v650
        %v703 = vpack.c.b16 %v653, %v652
        %v704 = vpack.c.b16 %v655, %v654
        %v705 = vpack.c.b16 %v657, %v656
        %v706 = vpack.c.b16 %v659, %v658
        %v707 = vpack.c.b16 %v661, %v660
        %v708 = vpack.c.b16 %v663, %v662
        %v709 = vpack.c.b16 %v665, %v664
        %v710 = vpack.c.b16 %v667, %v666
        %v711 = vpack.c.b16 %v669, %v668
        %v712 = vpack.c.b16 %v671, %v670
        %v713 = vpack.c.b16 %v673, %v672
        %754 = vmatpush.bf16.msra.mxu0 %v681
        %755 = vmatpush.bf16.msra.mxu0 %v680
        %756 = vmatpush.bf16.msra.mxu0 %v679
        %757 = vmatpush.bf16.msra.mxu0 %v678
        %758 = vmatpush.bf16.msra.mxu0 %v677
        %759 = vmatpush.bf16.msra.mxu0 %v676
        %760 = vmatpush.bf16.msra.mxu0 %v675
        %761 = vmatpush.bf16.msra.mxu0 %v674
        %762 = vmatmul.bf16.gmra.mxu0 %v474
        %v763 = vpop.f32.mrf.mxu0
        %v764 = vadd.f32 %v408, %v763
        %v765 = vpop.f32.mrf.mxu0
        %v766 = vadd.f32 %v408, %v765
        %767 = vmatmul.bf16.gmra.mxu0 %v479
        %v768 = vpop.f32.mrf.mxu0
        %v769 = vadd.f32 %v408, %v768
        %v770 = vpop.f32.mrf.mxu0
        %v771 = vadd.f32 %v408, %v770
        %772 = vmatmul.bf16.gmra.mxu0 %v484
        %v773 = vpop.f32.mrf.mxu0
        %v774 = vadd.f32 %v408, %v773
        %v775 = vpop.f32.mrf.mxu0
        %v776 = vadd.f32 %v408, %v775
        %777 = vmatmul.bf16.gmra.mxu0 %v489
        %v778 = vpop.f32.mrf.mxu0
        %v779 = vadd.f32 %v408, %v778
        %v780 = vpop.f32.mrf.mxu0
        %v781 = vadd.f32 %v408, %v780
        %782 = vdwg.mxu0
        %783 = vmatpush.bf16.msra.mxu0 %v689
        %784 = vmatpush.bf16.msra.mxu0 %v688
        %785 = vmatpush.bf16.msra.mxu0 %v687
        %786 = vmatpush.bf16.msra.mxu0 %v686
        %787 = vmatpush.bf16.msra.mxu0 %v685
        %788 = vmatpush.bf16.msra.mxu0 %v684
        %789 = vmatpush.bf16.msra.mxu0 %v683
        %790 = vmatpush.bf16.msra.mxu0 %v682
        %791 = vmatmul.bf16.gmra.mxu0 %v475
        %v792 = vpop.f32.mrf.mxu0
        %v793 = vadd.f32 %v764, %v792
        %v794 = vpop.f32.mrf.mxu0
        %v795 = vadd.f32 %v766, %v794
        %796 = vmatmul.bf16.gmra.mxu0 %v480
        %v797 = vpop.f32.mrf.mxu0
        %v798 = vadd.f32 %v769, %v797
        %v799 = vpop.f32.mrf.mxu0
        %v800 = vadd.f32 %v771, %v799
        %801 = vmatmul.bf16.gmra.mxu0 %v485
        %v802 = vpop.f32.mrf.mxu0
        %v803 = vadd.f32 %v774, %v802
        %v804 = vpop.f32.mrf.mxu0
        %v805 = vadd.f32 %v776, %v804
        %806 = vmatmul.bf16.gmra.mxu0 %v490
        %v807 = vpop.f32.mrf.mxu0
        %v808 = vadd.f32 %v779, %v807
        %v809 = vpop.f32.mrf.mxu0
        %v810 = vadd.f32 %v781, %v809
        %811 = vdwg.mxu0
        %812 = vmatpush.bf16.msra.mxu0 %v697
        %813 = vmatpush.bf16.msra.mxu0 %v696
        %814 = vmatpush.bf16.msra.mxu0 %v695
        %815 = vmatpush.bf16.msra.mxu0 %v694
        %816 = vmatpush.bf16.msra.mxu0 %v693
        %817 = vmatpush.bf16.msra.mxu0 %v692
        %818 = vmatpush.bf16.msra.mxu0 %v691
        %819 = vmatpush.bf16.msra.mxu0 %v690
        %820 = vmatmul.bf16.gmra.mxu0 %v476
        %v821 = vpop.f32.mrf.mxu0
        %v822 = vadd.f32 %v793, %v821
        %v823 = vpop.f32.mrf.mxu0
        %v824 = vadd.f32 %v795, %v823
        %825 = vmatmul.bf16.gmra.mxu0 %v481
        %v826 = vpop.f32.mrf.mxu0
        %v827 = vadd.f32 %v798, %v826
        %v828 = vpop.f32.mrf.mxu0
        %v829 = vadd.f32 %v800, %v828
        %830 = vmatmul.bf16.gmra.mxu0 %v486
        %v831 = vpop.f32.mrf.mxu0
        %v832 = vadd.f32 %v803, %v831
        %v833 = vpop.f32.mrf.mxu0
        %v834 = vadd.f32 %v805, %v833
        %835 = vmatmul.bf16.gmra.mxu0 %v491
        %v836 = vpop.f32.mrf.mxu0
        %v837 = vadd.f32 %v808, %v836
        %v838 = vpop.f32.mrf.mxu0
        %v839 = vadd.f32 %v810, %v838
        %840 = vdwg.mxu0
        %841 = vmatpush.bf16.msra.mxu0 %v705
        %842 = vmatpush.bf16.msra.mxu0 %v704
        %843 = vmatpush.bf16.msra.mxu0 %v703
        %844 = vmatpush.bf16.msra.mxu0 %v702
        %845 = vmatpush.bf16.msra.mxu0 %v701
        %846 = vmatpush.bf16.msra.mxu0 %v700
        %847 = vmatpush.bf16.msra.mxu0 %v699
        %848 = vmatpush.bf16.msra.mxu0 %v698
        %849 = vmatmul.bf16.gmra.mxu0 %v477
        %v850 = vpop.f32.mrf.mxu0
        %v851 = vadd.f32 %v822, %v850
        %v852 = vpop.f32.mrf.mxu0
        %v853 = vadd.f32 %v824, %v852
        %854 = vmatmul.bf16.gmra.mxu0 %v482
        %v855 = vpop.f32.mrf.mxu0
        %v856 = vadd.f32 %v827, %v855
        %v857 = vpop.f32.mrf.mxu0
        %v858 = vadd.f32 %v829, %v857
        %859 = vmatmul.bf16.gmra.mxu0 %v487
        %v860 = vpop.f32.mrf.mxu0
        %v861 = vadd.f32 %v832, %v860
        %v862 = vpop.f32.mrf.mxu0
        %v863 = vadd.f32 %v834, %v862
        %864 = vmatmul.bf16.gmra.mxu0 %v492
        %v865 = vpop.f32.mrf.mxu0
        %v866 = vadd.f32 %v837, %v865
        %v867 = vpop.f32.mrf.mxu0
        %v868 = vadd.f32 %v839, %v867
        %869 = vdwg.mxu0
        %870 = vmatpush.bf16.msra.mxu0 %v713
        %871 = vmatpush.bf16.msra.mxu0 %v712
        %872 = vmatpush.bf16.msra.mxu0 %v711
        %873 = vmatpush.bf16.msra.mxu0 %v710
        %874 = vmatpush.bf16.msra.mxu0 %v709
        %875 = vmatpush.bf16.msra.mxu0 %v708
        %876 = vmatpush.bf16.msra.mxu0 %v707
        %877 = vmatpush.bf16.msra.mxu0 %v706
        %878 = vmatmul.bf16.gmra.mxu0 %v478
        %v879 = vpop.f32.mrf.mxu0
        %v880 = vadd.f32 %v851, %v879
        %v881 = vpop.f32.mrf.mxu0
        %v882 = vadd.f32 %v853, %v881
        %883 = vmatmul.bf16.gmra.mxu0 %v483
        %v884 = vpop.f32.mrf.mxu0
        %v885 = vadd.f32 %v856, %v884
        %v886 = vpop.f32.mrf.mxu0
        %v887 = vadd.f32 %v858, %v886
        %888 = vmatmul.bf16.gmra.mxu0 %v488
        %v889 = vpop.f32.mrf.mxu0
        %v890 = vadd.f32 %v861, %v889
        %v891 = vpop.f32.mrf.mxu0
        %v892 = vadd.f32 %v863, %v891
        %893 = vmatmul.bf16.gmra.mxu0 %v493
        %v894 = vpop.f32.mrf.mxu0
        %v895 = vadd.f32 %v866, %v894
        %v896 = vpop.f32.mrf.mxu0
        %v897 = vadd.f32 %v868, %v896
        %898 = vdwg.mxu0
        %v899 = vld [vmem:[%s291] sm:$0xf]
        %v900 = vld [vmem:[%s291 + $0x4] sm:$0xf]
        %v901 = vld [vmem:[%s291 + $0x8] sm:$0xf]
        %v902 = vld [vmem:[%s291 + $0xc] sm:$0xf]
        %v903 = vld [vmem:[%s291 + $0x10] sm:$0xf]
        %v904 = vld [vmem:[%s291 + $0x14] sm:$0xf]
        %v905 = vld [vmem:[%s291 + $0x18] sm:$0xf]
        %v906 = vld [vmem:[%s291 + $0x1c] sm:$0xf]
        %v907 = vunpack.c.l.bf16 %v899
        %v908 = vunpack.c.l.bf16 %v900
        %v909 = vunpack.c.l.bf16 %v901
        %v910 = vunpack.c.l.bf16 %v902
        %v911 = vunpack.c.l.bf16 %v903
        %v912 = vunpack.c.l.bf16 %v904
        %v913 = vunpack.c.l.bf16 %v905
        %v914 = vunpack.c.l.bf16 %v906
        %v915 = vadd.f32 %v880, %v907
        %v916 = vadd.f32 %v882, %v908
        %v917 = vadd.f32 %v885, %v909
        %v918 = vadd.f32 %v887, %v910
        %v919 = vadd.f32 %v890, %v911
        %v920 = vadd.f32 %v892, %v912
        %v921 = vadd.f32 %v895, %v913
        %v922 = vadd.f32 %v897, %v914
        %v923 = vmax.f32 %v915, 0.0
        %v924 = vmax.f32 %v916, 0.0
        %v925 = vmax.f32 %v917, 0.0
        %v926 = vmax.f32 %v918, 0.0
        %v927 = vmax.f32 %v919, 0.0
        %v928 = vmax.f32 %v920, 0.0
        %v929 = vmax.f32 %v921, 0.0
        %v930 = vmax.f32 %v922, 0.0
        %v931 = vpack.c.bf16 %v923, %v923
        %v932 = vpack.c.bf16 %v924, %v924
        %v933 = vpack.c.bf16 %v925, %v925
        %v934 = vpack.c.bf16 %v926, %v926
        %v935 = vpack.c.bf16 %v927, %v927
        %v936 = vpack.c.bf16 %v928, %v928
        %v937 = vpack.c.bf16 %v929, %v929
        %v938 = vpack.c.bf16 %v930, %v930
        %vm939 = vcmask 519168
        %940 = vst.msk [vmem:[%s300] sm:$0xf] %vm939, %v931
        %941 = vst.msk [vmem:[%s300 + $0x4] sm:$0xf] %vm939, %v932
        %942 = vst.msk [vmem:[%s300 + $0x8] sm:$0xf] %vm939, %v933
        %943 = vst.msk [vmem:[%s300 + $0xc] sm:$0xf] %vm939, %v934
        %944 = vst.msk [vmem:[%s300 + $0x10] sm:$0xf] %vm939, %v935
        %945 = vst.msk [vmem:[%s300 + $0x14] sm:$0xf] %vm939, %v936
        %946 = vst.msk [vmem:[%s300 + $0x18] sm:$0xf] %vm939, %v937
        %947 = vst.msk [vmem:[%s300 + $0x1c] sm:$0xf] %vm939, %v938
        %s948 = smul.u32 8, %s22
        %p949 = scmp.lt.s32.totalorder %s948, 15
        %s950 = scalar_select %p949, %s948, 15
        %p951 = scmp.lt.s32.totalorder %s21, 0
        %s952 = scalar_select %p951, %s21, 0
        %s953 = sadd.s32 %s952, %s950
        %s954 = smul.addr %s953, 4
        %s955 = scalar_lea.vmem %s4, %s954
        // Predicated region
        $region45: #{_lambda_.9} parent=35 // pred_check
          %p956 = pneg %p155
        $region46: #{_lambda_.9} parent=35 // pred_check_branch
          %958 = sbr.rel (%p956) target = $region48
        $region47: #{_lambda_.9} parent=35 // pred_region
          %s959 = smul.u32 8, %s22
        $region48: #{_lambda_.9} parent=35 // pred_fallthru
          _
      $region36: #{_lambda_.9} parent=5 // pred_fallthru
        _
      %p960 = scmp.le.s32.totalorder 2, %s12
      // Predicated region
      $region49: #{_lambda_.9} parent=5 // pred_check
        %p961 = pneg %p960
      $region50: #{_lambda_.9} parent=5 // pred_check_branch
        %963 = sbr.rel (%p961) target = $region52
      $region51: #{_lambda_.9} parent=5 // pred_region
        %s964 = ssub.s32 %s12, 2
        // Predicated region
        $region53: #{_lambda_.9} parent=51 // pred_check
          %p965 = pneg %p161
        $region54: #{_lambda_.9} parent=51 // pred_check_branch
          %967 = sbr.rel (%p965) target = $region56
        $region55: #{_lambda_.9} parent=51 // pred_region
          %s968 = smul.u32 8, %s24
          %p969 = scmp.lt.s32.totalorder %s968, 15
          %s970 = scalar_select %p969, %s968, 15
          %p971 = scmp.lt.s32.totalorder %s23, 0
          %s972 = scalar_select %p971, %s23, 0
          %s973 = sadd.s32 %s972, %s970
          %s974 = smul.addr %s973, 4
          %s975 = scalar_lea.vmem %s4, %s974
        $region56: #{_lambda_.9} parent=51 // pred_fallthru
          _
      $region52: #{_lambda_.9} parent=5 // pred_fallthru
        _
    $region6: #{_lambda_.9} parent=1 // loop_footer
      %s16 = sadd.s32 1, %s12
    $region7: #{_lambda_.9} parent=1 // loop_footer_branch
      %11 = sbr.rel target = $region3
    $region8: #{_lambda_.9} parent=1 // loop_exit
      _
    %976 = vsyncpa [#allocation3], 1
    %s977 = scalar_lea.sflag [#allocation3], 1
    %978 = vsyncpa %s977, 1
    %979 = vsyncpa [#allocation5], 1

</llo_original>
